<compile_context>
chip_gen: v7x
topology: tpu7x:2x2x1
jax: 0.10.0
libtpu: 0.0.40
codegen_flags: <defaults>
</compile_context>

<pallas_src>
import functools

import jax
import jax.numpy as jnp
import numpy as np
from jax.experimental import pallas as pl
from jax.experimental.pallas import tpu as pltpu


# ----------------------------------------------------------------------------
# Kernel
# ----------------------------------------------------------------------------
def _rdb_kernel(C, G0, G, H, W, compute_dtype, *refs):
    """refs = (x, conv_slab_0..C-1, conv_bias_0..C-1, lff_slab, lff_bias, out,
               stacked_scr, chunks_scr).

    Activations are (M, W*Cch) 2-D tiles with M = NB*H rows (batch folded into
    the matmul M dim) and lane index = w*Cch + channel.
    """
    x_ref = refs[0]
    conv_w = refs[1:1 + C]
    conv_b = refs[1 + C:1 + 2 * C]
    lff_w = refs[1 + 2 * C]
    lff_b = refs[2 + 2 * C]
    out_ref = refs[3 + 2 * C]
    stacked_scr = refs[4 + 2 * C]   # (M, 3*W*(G0+(C-1)*G)), compute_dtype
    chunks_scr = refs[5 + 2 * C]    # (M, W*(G0+C*G)),       compute_dtype

    M = x_ref.shape[0]
    # Row-within-image index: zero-masks rows that wrapped across an image
    # boundary after the sublane roll (== vertical SAME zero padding).
    row = jax.lax.broadcasted_iota(jnp.int32, (M, 1), 0) % H

    def stack3(a):
        """(M, L) f32 -> (M, 3L) compute_dtype: lane-concat of rows
        [h-1 | h | h+1] of the same image, zero-filled at the image edges."""
        up = jnp.where(row == 0, 0.0, pltpu.roll(a, 1, axis=0))          # a[h-1]
        dn = jnp.where(row == H - 1, 0.0, pltpu.roll(a, M - 1, axis=0))  # a[h+1]
        return jnp.concatenate([up, a, dn], axis=1).astype(compute_dtype)

    x = x_ref[...].astype(jnp.float32)                    # (M, W*G0)
    chunks_scr[:, 0:W * G0] = x.astype(compute_dtype)
    stacked_scr[:, 0:3 * W * G0] = stack3(x)

    # --- C dense conv layers: feat_c = ReLU(Conv3x3(concat(chunks 0..c))) ---
    for c in range(C):
        cin = G0 + c * G
        acc = jnp.dot(stacked_scr[:, 0:3 * W * cin], conv_w[c][...],
                      preferred_element_type=jnp.float32)   # one deep-K matmul
        feat = jnp.maximum(acc + conv_b[c][...], 0.0)       # (M, W*G), f32 VPU
        off = W * (G0 + c * G)
        chunks_scr[:, off:off + W * G] = feat.astype(compute_dtype)
        if c + 1 < C:                                       # last chunk only feeds LFF
            stacked_scr[:, 3 * off:3 * off + 3 * W * G] = stack3(feat)

    # --- LFF: 1x1 conv over the (virtual) dense concat, then residual add ---
    lff = jnp.dot(chunks_scr[...], lff_w[...],
                  preferred_element_type=jnp.float32)
    out_ref[...] = (lff + lff_b[...] + x).astype(out_ref.dtype)


# ----------------------------------------------------------------------------
# Host-side weight packing (pure XLA; pack once and reuse in production)
# ----------------------------------------------------------------------------
def _pack_conv_chunk(w_hwio, off, cch, W, G):
    """(3,3,Cin,G) HWIO conv weight -> banded (3*W*cch, W*G) matrix for one
    input chunk; the dx taps and horizontal zero padding are baked in."""
    wchunk = w_hwio[:, :, off:off + cch, :]                          # (3,3,cch,G)
    dx = jnp.arange(3)[:, None, None]
    wi = jnp.arange(W)[None, :, None]
    wo = jnp.arange(W)[None, None, :]
    band = (wi == wo + dx - 1).astype(w_hwio.dtype)                  # (3, W, W)
    big = jnp.einsum("xio,yxcg->yicog", band, wchunk)                # (3,W,cch,W,G)
    return big.reshape(3 * W * cch, W * G)


def _pack_lff_chunk(wlff, off, cch, W, G0):
    """(Cin_total, G0) 1x1 conv weight -> block-diagonal (W*cch, W*G0)."""
    eye = jnp.eye(W, dtype=wlff.dtype)
    big = jnp.einsum("io,cg->icog", eye, wlff[off:off + cch, :])     # (W,cch,W,G0)
    return big.reshape(W * cch, W * G0)


def pack_rdb_weights(conv_ws, conv_bs, wlff, blff, W,
                     compute_dtype=jnp.bfloat16):
    """Pack PyTorch-style RDB weights into per-layer matmul slabs + lane biases."""
    C = len(conv_ws)
    G = conv_ws[0].shape[-1]
    G0 = wlff.shape[-1]

    def chunk_off(j):          # (channel offset, width) of chunk j in the concat
        return (0, G0) if j == 0 else (G0 + (j - 1) * G, G)

    conv_slabs, conv_biases = [], []
    for c in range(C):
        parts = [_pack_conv_chunk(conv_ws[c].astype(jnp.float32),
                                  *chunk_off(j), W, G) for j in range(c + 1)]
        conv_slabs.append(jnp.concatenate(parts, 0).astype(compute_dtype))
        conv_biases.append(jnp.tile(conv_bs[c].reshape(1, G).astype(jnp.float32),
                                    (1, W)))
    lff_parts = [_pack_lff_chunk(wlff.astype(jnp.float32), *chunk_off(j), W, G0)
                 for j in range(C + 1)]
    lff_slab = jnp.concatenate(lff_parts, 0).astype(compute_dtype)
    lff_bias = jnp.tile(blff.reshape(1, G0).astype(jnp.float32), (1, W))
    return dict(C=C, G0=G0, G=G, W=W, conv_slabs=conv_slabs,
                conv_biases=conv_biases, lff_slab=lff_slab, lff_bias=lff_bias)


# ----------------------------------------------------------------------------
# Wrappers
# ----------------------------------------------------------------------------
def rdb_apply_packed_nhwc(x_nhwc, packed, *, compute_dtype=jnp.bfloat16,
                          images_per_step=None):
    """RDB forward, NHWC in / NHWC out, using pre-packed weights."""
    x = x_nhwc.astype(jnp.float32)
    N, H, W, G0 = x.shape
    C, G = packed["C"], packed["G"]
    assert packed["W"] == W and packed["G0"] == G0
    cin_total = G0 + C * G

    # Fold NB images into the matmul M dim.  Target ~128-256 rows per grid
    # step but keep >= 2 steps so v7x's two TensorCores both get work.
    if images_per_step is None:
        nb = min(max(1, N // 2), max(1, 256 // H))
        while N % nb:
            nb -= 1
    else:
        nb = int(images_per_step)
    assert N % nb == 0, "images_per_step must divide the batch"
    M = nb * H

    x_rows = x.reshape(N * H, W * G0)     # free row-major reshape; lane = w*G0+ch

    flat = [x_rows]
    in_specs = [pl.BlockSpec((M, W * G0), lambda i: (i, 0))]
    # Grid-invariant weight slabs / lane biases (block index pinned to (0, 0),
    # so they are DMA'd once and not re-fetched per grid step).
    for arr in (*packed["conv_slabs"], *packed["conv_biases"],
                packed["lff_slab"], packed["lff_bias"]):
        flat.append(arr)
        in_specs.append(pl.BlockSpec(arr.shape, lambda i: (0, 0)))

    kernel = functools.partial(_rdb_kernel, C, G0, G, H, W, compute_dtype)

    out = pl.pallas_call(
        kernel,
        out_shape=jax.ShapeDtypeStruct((N * H, W * G0), jnp.float32),
        grid_spec=pltpu.PrefetchScalarGridSpec(
            num_scalar_prefetch=0,
            grid=(N // nb,),
            in_specs=in_specs,
            out_specs=pl.BlockSpec((M, W * G0), lambda i: (i, 0)),
            scratch_shapes=[
                pltpu.VMEM((M, 3 * W * (G0 + (C - 1) * G)), compute_dtype),
                pltpu.VMEM((M, W * cin_total), compute_dtype),
            ]),
        compiler_params=pltpu.CompilerParams(
            dimension_semantics=("parallel",),       # batch blocks independent
            # Demo working set is ~2-4 MiB; 32 MiB also respects v7x's smaller
            # (64 MiB physical) VMEM.  Raise on v5e/v6e for larger H/NB tiles.
            vmem_limit_bytes=32 * 1024 * 1024),
    )(*flat)
    return out.reshape(N, H, W, G0)


def rdb_forward_nhwc(x_nhwc, conv_ws, conv_bs, wlff, blff, *,
                     compute_dtype=jnp.bfloat16, images_per_step=None):
    """Convenience wrapper: packs weights (cache this in production) and runs
    the kernel.  NHWC in / NHWC out."""
    packed = pack_rdb_weights(conv_ws, conv_bs, wlff, blff, x_nhwc.shape[2],
                              compute_dtype=compute_dtype)
    return rdb_apply_packed_nhwc(x_nhwc, packed, compute_dtype=compute_dtype,
                                 images_per_step=images_per_step)


def rdb_forward(x_nchw, conv_ws, conv_bs, wlff, blff, **kwargs):
    """NCHW wrapper matching the PyTorch module.  NHWC callers should use
    rdb_forward_nhwc / rdb_apply_packed_nhwc and skip the two HBM transposes."""
    x_nhwc = jnp.transpose(x_nchw, (0, 2, 3, 1))
    y = rdb_forward_nhwc(x_nhwc, conv_ws, conv_bs, wlff, blff, **kwargs)
    return jnp.transpose(y, (0, 3, 1, 2))


def reference_rdb(x_nchw, conv_ws, conv_bs, wlff, blff):
    """Pure-JAX reference (same math as the PyTorch module)."""
    x = jnp.transpose(x_nchw, (0, 2, 3, 1)).astype(jnp.float32)
    feat = x
    for w, b in zip(conv_ws, conv_bs):
        y = jax.lax.conv_general_dilated(
            feat, w, window_strides=(1, 1), padding="SAME",
            dimension_numbers=("NHWC", "HWIO", "NHWC"))
        feat = jnp.concatenate(
            [feat, jax.nn.relu(y + b.reshape(1, 1, 1, -1))], axis=-1)
    lff = jax.lax.conv_general_dilated(
        feat, wlff.reshape(1, 1, *wlff.shape), (1, 1), "SAME",
        dimension_numbers=("NHWC", "HWIO", "NHWC")) + blff.reshape(1, 1, 1, -1)
    return jnp.transpose(lff + x, (0, 3, 1, 2))


if __name__ == "__main__":
    # RDB(growRate0=8, growRate=8, nConvLayers=3), input (N=16, C=8, H=16, W=16):
    # NB=8 images fold into M=128 matmul rows per grid step, 2 grid steps.
    N, G0, G, C, H, W = 16, 8, 8, 3, 16, 16

    key = jax.random.PRNGKey(0)
    keys = jax.random.split(key, 2 * C + 3)
    conv_ws, conv_bs = [], []
    for c in range(C):
        cin = G0 + c * G
        conv_ws.append(0.1 * jax.random.normal(keys[2 * c], (3, 3, cin, G),
                                               jnp.float32))        # HWIO
        conv_bs.append(0.1 * jax.random.normal(keys[2 * c + 1], (1, G),
                                               jnp.float32))
    wlff = 0.1 * jax.random.normal(keys[2 * C], (G0 + C * G, G0), jnp.float32)
    blff = 0.1 * jax.random.normal(keys[2 * C + 1], (1, G0), jnp.float32)
    x = jax.random.normal(keys[2 * C + 2], (N, G0, H, W), jnp.float32)  # NCHW

    ref = jax.block_until_ready(reference_rdb(x, conv_ws, conv_bs, wlff, blff))

    # f32 operands: tight correctness check against the conv reference.
    out_f32 = jax.block_until_ready(
        rdb_forward(x, conv_ws, conv_bs, wlff, blff,
                    compute_dtype=jnp.float32))
    assert out_f32.shape == x.shape
    np.testing.assert_allclose(np.asarray(out_f32), np.asarray(ref),
                               atol=2e-3, rtol=2e-3)

    # Default path: bf16 MXU operands, f32 accumulation (fast on v5e/v6e/v7x);
    # loose tolerance only accounts for bf16 operand rounding.
    out_bf16 = jax.block_until_ready(
        rdb_forward(x, conv_ws, conv_bs, wlff, blff))
    np.testing.assert_allclose(np.asarray(out_bf16), np.asarray(ref),
                               atol=1e-1, rtol=1e-1)

    print("KERNEL_OK")
</pallas_src>

<mosaic_0001>
module attributes {stable_mosaic.version = 11 : i64} {
  func.func @_rdb_kernel(%arg0: i32, %arg1: memref<128x128xf32, #tpu.memory_space<vmem>>, %arg2: memref<384x128xf32, #tpu.memory_space<vmem>>, %arg3: memref<768x128xf32, #tpu.memory_space<vmem>>, %arg4: memref<1152x128xf32, #tpu.memory_space<vmem>>, %arg5: memref<1x128xf32, #tpu.memory_space<vmem>>, %arg6: memref<1x128xf32, #tpu.memory_space<vmem>>, %arg7: memref<1x128xf32, #tpu.memory_space<vmem>>, %arg8: memref<512x128xf32, #tpu.memory_space<vmem>>, %arg9: memref<1x128xf32, #tpu.memory_space<vmem>>, %arg10: memref<128x128xf32, #tpu.memory_space<vmem>>, %arg11: memref<128x1152xf32, #tpu.memory_space<vmem>>, %arg12: memref<128x512xf32, #tpu.memory_space<vmem>>) attributes {dimension_semantics = [#tpu.dimension_semantics<parallel>], iteration_bounds = array<i64: 2>, scalar_prefetch = 0 : i64, scratch_operands = 2 : i64, tpu.core_type = #tpu.core_type<tc>, window_params = [{transform_indices = @transform_0, window_bounds = array<i64: 128, 128>}, {pipeline_mode = #tpu.pipeline_mode<synchronous>, transform_indices = @transform_1, window_bounds = array<i64: 384, 128>}, {pipeline_mode = #tpu.pipeline_mode<synchronous>, transform_indices = @transform_2, window_bounds = array<i64: 768, 128>}, {pipeline_mode = #tpu.pipeline_mode<synchronous>, transform_indices = @transform_3, window_bounds = array<i64: 1152, 128>}, {pipeline_mode = #tpu.pipeline_mode<synchronous>, transform_indices = @transform_4, window_bounds = array<i64: 1, 128>}, {pipeline_mode = #tpu.pipeline_mode<synchronous>, transform_indices = @transform_5, window_bounds = array<i64: 1, 128>}, {pipeline_mode = #tpu.pipeline_mode<synchronous>, transform_indices = @transform_6, window_bounds = array<i64: 1, 128>}, {pipeline_mode = #tpu.pipeline_mode<synchronous>, transform_indices = @transform_7, window_bounds = array<i64: 512, 128>}, {pipeline_mode = #tpu.pipeline_mode<synchronous>, transform_indices = @transform_8, window_bounds = array<i64: 1, 128>}, {transform_indices = @transform_9, window_bounds = array<i64: 128, 128>}]} {
    %0 = tpu.iota {dimensions = array<i32: 0>} : vector<128x1xi32>
    %c16_i32 = arith.constant 16 : i32
    %c0_i32 = arith.constant 0 : i32
    %1 = arith.cmpi eq, %c16_i32, %c0_i32 : i32
    %c1_i32 = arith.constant 1 : i32
    %2 = arith.select %1, %c1_i32, %c16_i32 : i32
    %3 = vector.broadcast %2 : i32 to vector<128x1xi32>
    %4 = arith.remsi %0, %3 : vector<128x1xi32>
    %c0_i32_0 = arith.constant 0 : i32
    %5 = vector.broadcast %c0_i32_0 : i32 to vector<128x1xi32>
    %6 = arith.cmpi ne, %4, %5 : vector<128x1xi32>
    %c0_i32_1 = arith.constant 0 : i32
    %7 = vector.broadcast %c0_i32_1 : i32 to vector<128x1xi32>
    %8 = arith.cmpi slt, %4, %7 : vector<128x1xi32>
    %c0_i32_2 = arith.constant 0 : i32
    %9 = arith.cmpi slt, %2, %c0_i32_2 : i32
    %10 = vector.broadcast %9 : i1 to vector<128x1xi1>
    %11 = vector.broadcast %10 : vector<128x1xi1> to vector<128x1xi1>
    %12 = arith.xori %8, %11 : vector<128x1xi1>
    %13 = arith.andi %12, %6 : vector<128x1xi1>
    %14 = vector.broadcast %2 : i32 to vector<128x1xi32>
    %15 = arith.addi %4, %14 : vector<128x1xi32>
    %16 = arith.select %13, %15, %4 : vector<128x1xi1>, vector<128x1xi32>
    %c0 = arith.constant 0 : index
    %c0_3 = arith.constant 0 : index
    %17 = vector.load %arg1[%c0, %c0_3] : memref<128x128xf32, #tpu.memory_space<vmem>>, vector<128x128xf32>
    %c0_4 = arith.constant 0 : index
    %c0_5 = arith.constant 0 : index
    %18 = vector.load %arg12[%c0_4, %c0_5] : memref<128x512xf32, #tpu.memory_space<vmem>>, vector<128x128xf32>
    tpu.vector_store %arg12[%c0_4, %c0_5], %17 {strides = array<i32>} : memref<128x512xf32, #tpu.memory_space<vmem>>, vector<128x128xf32>,
    %c0_i32_6 = arith.constant 0 : i32
    %19 = vector.broadcast %c0_i32_6 : i32 to vector<128x1xi32>
    %20 = arith.cmpi eq, %16, %19 : vector<128x1xi32>
    %c1_i32_7 = arith.constant 1 : i32
    %21 = tpu.dynamic_rotate %17 by %c1_i32_7 dim 0 : vector<128x128xf32>, i32 -> vector<128x128xf32>
    %cst = arith.constant 0.000000e+00 : f32
    %22 = vector.shape_cast %20 : vector<128x1xi1> to vector<128x1xi1>
    %23 = vector.broadcast %22 : vector<128x1xi1> to vector<128x128xi1>
    %24 = vector.broadcast %cst : f32 to vector<128x128xf32>
    %25 = arith.select %23, %24, %21 : vector<128x128xi1>, vector<128x128xf32>
    %c15_i32 = arith.constant 15 : i32
    %26 = vector.broadcast %c15_i32 : i32 to vector<128x1xi32>
    %27 = arith.cmpi eq, %16, %26 : vector<128x1xi32>
    %c127_i32 = arith.constant 127 : i32
    %28 = tpu.dynamic_rotate %17 by %c127_i32 dim 0 : vector<128x128xf32>, i32 -> vector<128x128xf32>
    %cst_8 = arith.constant 0.000000e+00 : f32
    %29 = vector.shape_cast %27 : vector<128x1xi1> to vector<128x1xi1>
    %30 = vector.broadcast %29 : vector<128x1xi1> to vector<128x128xi1>
    %31 = vector.broadcast %cst_8 : f32 to vector<128x128xf32>
    %32 = arith.select %30, %31, %28 : vector<128x128xi1>, vector<128x128xf32>
    %33 = tpu.concatenate %25, %17, %32 in 1 : vector<128x128xf32>, vector<128x128xf32>, vector<128x128xf32> -> vector<128x384xf32>
    %c0_9 = arith.constant 0 : index
    %c0_10 = arith.constant 0 : index
    %34 = vector.load %arg11[%c0_9, %c0_10] : memref<128x1152xf32, #tpu.memory_space<vmem>>, vector<128x384xf32>
    tpu.vector_store %arg11[%c0_9, %c0_10], %33 {strides = array<i32>} : memref<128x1152xf32, #tpu.memory_space<vmem>>, vector<128x384xf32>,
    %c0_11 = arith.constant 0 : index
    %c0_12 = arith.constant 0 : index
    %35 = vector.load %arg11[%c0_11, %c0_12] : memref<128x1152xf32, #tpu.memory_space<vmem>>, vector<128x384xf32>
    %c0_13 = arith.constant 0 : index
    %c0_14 = arith.constant 0 : index
    %36 = vector.load %arg2[%c0_13, %c0_14] : memref<384x128xf32, #tpu.memory_space<vmem>>, vector<384x128xf32>
    %cst_15 = arith.constant dense<0.000000e+00> : vector<128x128xf32>
    %37 = tpu.matmul %35, %36, %cst_15 {dimension_numbers = #tpu.dot_dimension_numbers<[1], [0], [0], [1], [0, 0, 1, 1], [], []>} : vector<128x384xf32>, vector<384x128xf32>, vector<128x128xf32> -> vector<128x128xf32>
    %c0_16 = arith.constant 0 : index
    %c0_17 = arith.constant 0 : index
    %38 = vector.load %arg5[%c0_16, %c0_17] : memref<1x128xf32, #tpu.memory_space<vmem>>, vector<1x128xf32>
    %39 = vector.broadcast %38 : vector<1x128xf32> to vector<128x128xf32>
    %40 = arith.addf %37, %39 : vector<128x128xf32>
    %cst_18 = arith.constant 0.000000e+00 : f32
    %41 = vector.broadcast %cst_18 : f32 to vector<128x128xf32>
    %42 = arith.maximumf %40, %41 : vector<128x128xf32>
    %c0_19 = arith.constant 0 : index
    %c128 = arith.constant 128 : index
    %43 = vector.load %arg12[%c0_19, %c128] : memref<128x512xf32, #tpu.memory_space<vmem>>, vector<128x128xf32>
    tpu.vector_store %arg12[%c0_19, %c128], %42 {strides = array<i32>} : memref<128x512xf32, #tpu.memory_space<vmem>>, vector<128x128xf32>,
    %c0_i32_20 = arith.constant 0 : i32
    %44 = vector.broadcast %c0_i32_20 : i32 to vector<128x1xi32>
    %45 = arith.cmpi eq, %16, %44 : vector<128x1xi32>
    %c1_i32_21 = arith.constant 1 : i32
    %46 = tpu.dynamic_rotate %42 by %c1_i32_21 dim 0 : vector<128x128xf32>, i32 -> vector<128x128xf32>
    %cst_22 = arith.constant 0.000000e+00 : f32
    %47 = vector.shape_cast %45 : vector<128x1xi1> to vector<128x1xi1>
    %48 = vector.broadcast %47 : vector<128x1xi1> to vector<128x128xi1>
    %49 = vector.broadcast %cst_22 : f32 to vector<128x128xf32>
    %50 = arith.select %48, %49, %46 : vector<128x128xi1>, vector<128x128xf32>
    %c15_i32_23 = arith.constant 15 : i32
    %51 = vector.broadcast %c15_i32_23 : i32 to vector<128x1xi32>
    %52 = arith.cmpi eq, %16, %51 : vector<128x1xi32>
    %c127_i32_24 = arith.constant 127 : i32
    %53 = tpu.dynamic_rotate %42 by %c127_i32_24 dim 0 : vector<128x128xf32>, i32 -> vector<128x128xf32>
    %cst_25 = arith.constant 0.000000e+00 : f32
    %54 = vector.shape_cast %52 : vector<128x1xi1> to vector<128x1xi1>
    %55 = vector.broadcast %54 : vector<128x1xi1> to vector<128x128xi1>
    %56 = vector.broadcast %cst_25 : f32 to vector<128x128xf32>
    %57 = arith.select %55, %56, %53 : vector<128x128xi1>, vector<128x128xf32>
    %58 = tpu.concatenate %50, %42, %57 in 1 : vector<128x128xf32>, vector<128x128xf32>, vector<128x128xf32> -> vector<128x384xf32>
    %c0_26 = arith.constant 0 : index
    %c384 = arith.constant 384 : index
    %59 = vector.load %arg11[%c0_26, %c384] : memref<128x1152xf32, #tpu.memory_space<vmem>>, vector<128x384xf32>
    tpu.vector_store %arg11[%c0_26, %c384], %58 {strides = array<i32>} : memref<128x1152xf32, #tpu.memory_space<vmem>>, vector<128x384xf32>,
    %c0_27 = arith.constant 0 : index
    %c0_28 = arith.constant 0 : index
    %60 = vector.load %arg11[%c0_27, %c0_28] : memref<128x1152xf32, #tpu.memory_space<vmem>>, vector<128x768xf32>
    %c0_29 = arith.constant 0 : index
    %c0_30 = arith.constant 0 : index
    %61 = vector.load %arg3[%c0_29, %c0_30] : memref<768x128xf32, #tpu.memory_space<vmem>>, vector<768x128xf32>
    %cst_31 = arith.constant dense<0.000000e+00> : vector<128x128xf32>
    %62 = tpu.matmul %60, %61, %cst_31 {dimension_numbers = #tpu.dot_dimension_numbers<[1], [0], [0], [1], [0, 0, 1, 1], [], []>} : vector<128x768xf32>, vector<768x128xf32>, vector<128x128xf32> -> vector<128x128xf32>
    %c0_32 = arith.constant 0 : index
    %c0_33 = arith.constant 0 : index
    %63 = vector.load %arg6[%c0_32, %c0_33] : memref<1x128xf32, #tpu.memory_space<vmem>>, vector<1x128xf32>
    %64 = vector.broadcast %63 : vector<1x128xf32> to vector<128x128xf32>
    %65 = arith.addf %62, %64 : vector<128x128xf32>
    %cst_34 = arith.constant 0.000000e+00 : f32
    %66 = vector.broadcast %cst_34 : f32 to vector<128x128xf32>
    %67 = arith.maximumf %65, %66 : vector<128x128xf32>
    %c0_35 = arith.constant 0 : index
    %c256 = arith.constant 256 : index
    %68 = vector.load %arg12[%c0_35, %c256] : memref<128x512xf32, #tpu.memory_space<vmem>>, vector<128x128xf32>
    tpu.vector_store %arg12[%c0_35, %c256], %67 {strides = array<i32>} : memref<128x512xf32, #tpu.memory_space<vmem>>, vector<128x128xf32>,
    %c0_i32_36 = arith.constant 0 : i32
    %69 = vector.broadcast %c0_i32_36 : i32 to vector<128x1xi32>
    %70 = arith.cmpi eq, %16, %69 : vector<128x1xi32>
    %c1_i32_37 = arith.constant 1 : i32
    %71 = tpu.dynamic_rotate %67 by %c1_i32_37 dim 0 : vector<128x128xf32>, i32 -> vector<128x128xf32>
    %cst_38 = arith.constant 0.000000e+00 : f32
    %72 = vector.shape_cast %70 : vector<128x1xi1> to vector<128x1xi1>
    %73 = vector.broadcast %72 : vector<128x1xi1> to vector<128x128xi1>
    %74 = vector.broadcast %cst_38 : f32 to vector<128x128xf32>
    %75 = arith.select %73, %74, %71 : vector<128x128xi1>, vector<128x128xf32>
    %c15_i32_39 = arith.constant 15 : i32
    %76 = vector.broadcast %c15_i32_39 : i32 to vector<128x1xi32>
    %77 = arith.cmpi eq, %16, %76 : vector<128x1xi32>
    %c127_i32_40 = arith.constant 127 : i32
    %78 = tpu.dynamic_rotate %67 by %c127_i32_40 dim 0 : vector<128x128xf32>, i32 -> vector<128x128xf32>
    %cst_41 = arith.constant 0.000000e+00 : f32
    %79 = vector.shape_cast %77 : vector<128x1xi1> to vector<128x1xi1>
    %80 = vector.broadcast %79 : vector<128x1xi1> to vector<128x128xi1>
    %81 = vector.broadcast %cst_41 : f32 to vector<128x128xf32>
    %82 = arith.select %80, %81, %78 : vector<128x128xi1>, vector<128x128xf32>
    %83 = tpu.concatenate %75, %67, %82 in 1 : vector<128x128xf32>, vector<128x128xf32>, vector<128x128xf32> -> vector<128x384xf32>
    %c0_42 = arith.constant 0 : index
    %c768 = arith.constant 768 : index
    %84 = vector.load %arg11[%c0_42, %c768] : memref<128x1152xf32, #tpu.memory_space<vmem>>, vector<128x384xf32>
    tpu.vector_store %arg11[%c0_42, %c768], %83 {strides = array<i32>} : memref<128x1152xf32, #tpu.memory_space<vmem>>, vector<128x384xf32>,
    %c0_43 = arith.constant 0 : index
    %c0_44 = arith.constant 0 : index
    %85 = vector.load %arg11[%c0_43, %c0_44] : memref<128x1152xf32, #tpu.memory_space<vmem>>, vector<128x1152xf32>
    %c0_45 = arith.constant 0 : index
    %c0_46 = arith.constant 0 : index
    %86 = vector.load %arg4[%c0_45, %c0_46] : memref<1152x128xf32, #tpu.memory_space<vmem>>, vector<1152x128xf32>
    %cst_47 = arith.constant dense<0.000000e+00> : vector<128x128xf32>
    %87 = tpu.matmul %85, %86, %cst_47 {dimension_numbers = #tpu.dot_dimension_numbers<[1], [0], [0], [1], [0, 0, 1, 1], [], []>} : vector<128x1152xf32>, vector<1152x128xf32>, vector<128x128xf32> -> vector<128x128xf32>
    %c0_48 = arith.constant 0 : index
    %c0_49 = arith.constant 0 : index
    %88 = vector.load %arg7[%c0_48, %c0_49] : memref<1x128xf32, #tpu.memory_space<vmem>>, vector<1x128xf32>
    %89 = vector.broadcast %88 : vector<1x128xf32> to vector<128x128xf32>
    %90 = arith.addf %87, %89 : vector<128x128xf32>
    %cst_50 = arith.constant 0.000000e+00 : f32
    %91 = vector.broadcast %cst_50 : f32 to vector<128x128xf32>
    %92 = arith.maximumf %90, %91 : vector<128x128xf32>
    %c0_51 = arith.constant 0 : index
    %c384_52 = arith.constant 384 : index
    %93 = vector.load %arg12[%c0_51, %c384_52] : memref<128x512xf32, #tpu.memory_space<vmem>>, vector<128x128xf32>
    tpu.vector_store %arg12[%c0_51, %c384_52], %92 {strides = array<i32>} : memref<128x512xf32, #tpu.memory_space<vmem>>, vector<128x128xf32>,
    %c0_53 = arith.constant 0 : index
    %c0_54 = arith.constant 0 : index
    %94 = vector.load %arg12[%c0_53, %c0_54] : memref<128x512xf32, #tpu.memory_space<vmem>>, vector<128x512xf32>
    %c0_55 = arith.constant 0 : index
    %c0_56 = arith.constant 0 : index
    %95 = vector.load %arg8[%c0_55, %c0_56] : memref<512x128xf32, #tpu.memory_space<vmem>>, vector<512x128xf32>
    %cst_57 = arith.constant dense<0.000000e+00> : vector<128x128xf32>
    %96 = tpu.matmul %94, %95, %cst_57 {dimension_numbers = #tpu.dot_dimension_numbers<[1], [0], [0], [1], [0, 0, 1, 1], [], []>} : vector<128x512xf32>, vector<512x128xf32>, vector<128x128xf32> -> vector<128x128xf32>
    %c0_58 = arith.constant 0 : index
    %c0_59 = arith.constant 0 : index
    %97 = vector.load %arg9[%c0_58, %c0_59] : memref<1x128xf32, #tpu.memory_space<vmem>>, vector<1x128xf32>
    %98 = vector.broadcast %97 : vector<1x128xf32> to vector<128x128xf32>
    %99 = arith.addf %96, %98 : vector<128x128xf32>
    %100 = arith.addf %99, %17 : vector<128x128xf32>
    %c0_60 = arith.constant 0 : index
    %c0_61 = arith.constant 0 : index
    %101 = vector.load %arg10[%c0_60, %c0_61] : memref<128x128xf32, #tpu.memory_space<vmem>>, vector<128x128xf32>
    tpu.vector_store %arg10[%c0_60, %c0_61], %100 {strides = array<i32>} : memref<128x128xf32, #tpu.memory_space<vmem>>, vector<128x128xf32>,
    return
  }
  func.func @transform_0(%arg0: i32) -> (i32, i32) {
    %c0_i32 = arith.constant 0 : i32
    %c0_i32_0 = arith.constant 0 : i32
    return %arg0, %c0_i32 : i32, i32
  }
  func.func @transform_1(%arg0: i32) -> (i32, i32) {
    %c0_i32 = arith.constant 0 : i32
    %c0_i32_0 = arith.constant 0 : i32
    %c0_i32_1 = arith.constant 0 : i32
    return %c0_i32, %c0_i32_0 : i32, i32
  }
  func.func @transform_2(%arg0: i32) -> (i32, i32) {
    %c0_i32 = arith.constant 0 : i32
    %c0_i32_0 = arith.constant 0 : i32
    %c0_i32_1 = arith.constant 0 : i32
    return %c0_i32, %c0_i32_0 : i32, i32
  }
  func.func @transform_3(%arg0: i32) -> (i32, i32) {
    %c0_i32 = arith.constant 0 : i32
    %c0_i32_0 = arith.constant 0 : i32
    %c0_i32_1 = arith.constant 0 : i32
    return %c0_i32, %c0_i32_0 : i32, i32
  }
  func.func @transform_4(%arg0: i32) -> (i32, i32) {
    %c0_i32 = arith.constant 0 : i32
    %c0_i32_0 = arith.constant 0 : i32
    %c0_i32_1 = arith.constant 0 : i32
    return %c0_i32, %c0_i32_0 : i32, i32
  }
  func.func @transform_5(%arg0: i32) -> (i32, i32) {
    %c0_i32 = arith.constant 0 : i32
    %c0_i32_0 = arith.constant 0 : i32
    %c0_i32_1 = arith.constant 0 : i32
    return %c0_i32, %c0_i32_0 : i32, i32
  }
  func.func @transform_6(%arg0: i32) -> (i32, i32) {
    %c0_i32 = arith.constant 0 : i32
    %c0_i32_0 = arith.constant 0 : i32
    %c0_i32_1 = arith.constant 0 : i32
    return %c0_i32, %c0_i32_0 : i32, i32
  }
  func.func @transform_7(%arg0: i32) -> (i32, i32) {
    %c0_i32 = arith.constant 0 : i32
    %c0_i32_0 = arith.constant 0 : i32
    %c0_i32_1 = arith.constant 0 : i32
    return %c0_i32, %c0_i32_0 : i32, i32
  }
  func.func @transform_8(%arg0: i32) -> (i32, i32) {
    %c0_i32 = arith.constant 0 : i32
    %c0_i32_0 = arith.constant 0 : i32
    %c0_i32_1 = arith.constant 0 : i32
    return %c0_i32, %c0_i32_0 : i32, i32
  }
  func.func @transform_9(%arg0: i32) -> (i32, i32) {
    %c0_i32 = arith.constant 0 : i32
    %c0_i32_0 = arith.constant 0 : i32
    return %arg0, %c0_i32 : i32, i32
  }
}

</mosaic_0001>

<llo_original>
// kernel: tpu_custom_call.1
$region0: #{tpu_custom_call.1}
  #allocation0 [shape = 'u32[]', space=smem, size = 0x4, offset = 0x4, fixed_abs, tag = 'smem constant byte address 0x4 - core index']
  #allocation1 [shape = 'u32[144,128]{1,0:T(1,128)}', space=vmem, size = 0x12000, scoped, tag = 'internal scratch']
  #allocation2 [shape = 'f32[128,1152]{1,0:T(8,128)}', space=vmem, size = 0x90000, scoped, tag = 'scratch operand']
  #allocation3 [shape = 'f32[128,512]{1,0:T(8,128)}', space=vmem, size = 0x40000, scoped, tag = 'scratch operand']
  %s0 = inlined_call_operand.hbm [shape: f32[256,128], index: 0, kind: input, shape index: {}]
  %s1 = inlined_call_operand.hbm [shape: f32[384,128], index: 1, kind: input, shape index: {}]
  %s2 = inlined_call_operand.hbm [shape: f32[768,128], index: 2, kind: input, shape index: {}]
  %s3 = inlined_call_operand.hbm [shape: f32[1152,128], index: 3, kind: input, shape index: {}]
  %s4 = inlined_call_operand.vmem [shape: f32[1,128], index: 4, kind: input, shape index: {}]
  %s5 = inlined_call_operand.vmem [shape: f32[1,128], index: 5, kind: input, shape index: {}]
  %s6 = inlined_call_operand.vmem [shape: f32[1,128], index: 6, kind: input, shape index: {}]
  %s7 = inlined_call_operand.hbm [shape: f32[512,128], index: 7, kind: input, shape index: {}]
  %s8 = inlined_call_operand.vmem [shape: f32[1,128], index: 8, kind: input, shape index: {}]
  %s9 = inlined_call_operand.hbm [shape: f32[256,128], index: 9, kind: output, shape index: {}]
  %s10 = sld [smem:[#allocation0]]
  $region89: #{tpu_custom_call.1} parent=0
    _
  %s12 = ssub.s32 1, %s10
  %s13 = scalar_select 0, %s12, %s10
  $region1: #{tpu_custom_call.1} parent=0
    #allocation4 [shape = 'u8[131072]{0}', space=vmem, size = 0x20000, scoped, tag = 'input window, operand 0']
    #allocation5 [shape = 's32[2]{0}', space=sflag, size = 0x8, scoped, tag = 'scoped memory for tpu_custom_call.1']
    #allocation6 [shape = 's32[2]{0}', space=sflag, size = 0x8, scoped, tag = 'scoped memory for tpu_custom_call.1']
    #allocation7 [shape = 'u8[196608]{0}', space=vmem, size = 0x30000, scoped, tag = 'input window, operand 1, single buffered']
    #allocation8 [shape = 's32[1]{0}', space=sflag, size = 0x4, scoped, tag = 'scoped memory for tpu_custom_call.1']
    #allocation9 [shape = 'u8[393216]{0}', space=vmem, size = 0x60000, scoped, tag = 'input window, operand 2, single buffered']
    #allocation10 [shape = 'u8[589824]{0}', space=vmem, size = 0x90000, scoped, tag = 'input window, operand 3, single buffered']
    #allocation11 [shape = 's32[1]{0}', space=sflag, size = 0x4, scoped, tag = 'scoped memory for tpu_custom_call.1']
    #allocation12 [shape = 'u8[262144]{0}', space=vmem, size = 0x40000, scoped, tag = 'input window, operand 7, single buffered']
    #allocation13 [shape = 'u8[131072]{0}', space=vmem, size = 0x20000, scoped, tag = 'output window, operand 0']
    %14 = vsyncpa [#allocation5], 0
    %s15 = scalar_lea.sflag [#allocation5], 1
    %16 = vsyncpa %s15, 0
    %17 = vsyncpa [#allocation8], 0
    %18 = vsyncpa [#allocation11], 0
    %19 = vsyncpa [#allocation6], 0
    %s20 = scalar_lea.sflag [#allocation6], 1
    %21 = vsyncpa %s20, 0
    loop: start=0, step=1, limit=4
    $region2: #{tpu_custom_call.1} parent=1 // loop_pre_header
      _
    $region3: #{tpu_custom_call.1} parent=1 // loop_header
      %s23 = sphi 0, %s27
      %p24 = scmp.ge.s32.totalorder %s23, 4
      %s33 = sphi 0, %s35
      %s36 = sphi 0, %s33
      %s37 = sphi 0, %s36
      %s53 = sphi 0, %s37
      %s57 = sphi 0, %s57
      %s59 = sphi 0, %s57
      %s60 = sphi 0, %s59
      %s74 = sphi 0, %s60
      %s78 = sphi 0, %s78
      %s80 = sphi 0, %s78
      %s81 = sphi 0, %s80
      %s95 = sphi 0, %s81
      %s99 = sphi 0, %s99
      %s101 = sphi 0, %s99
      %s102 = sphi 0, %s101
      %s116 = sphi 0, %s102
      %s120 = sphi 0, %s120
      %s122 = sphi 0, %s120
      %s123 = sphi 0, %s122
      %s137 = sphi 0, %s123
      %s141 = sphi 0, %s141
      %s143 = sphi 0, %s141
      %s144 = sphi 0, %s143
      %s158 = sphi 0, %s144
      %s162 = sphi 0, %s162
      %s164 = sphi 0, %s162
      %s165 = sphi 0, %s164
      %s179 = sphi 0, %s165
      %s183 = sphi 0, %s183
      %s185 = sphi 0, %s183
      %s186 = sphi 0, %s185
      %s200 = sphi 0, %s186
      %s204 = sphi 0, %s204
      %s206 = sphi 0, %s204
      %s207 = sphi 0, %s206
      %s221 = sphi 0, %s207
      %s227 = sphi 0, %s229
      %s230 = sphi 0, %s227
      %s231 = sphi 0, %s230
      %s247 = sphi 0, %s231
    $region4: #{tpu_custom_call.1} parent=1 // loop_header_branch
      %26 = sbr.rel (%p24) target = $region8
    $region5: #{tpu_custom_call.1} parent=1 // loop_body
      %s28 = ssub.s32 %s23, 1
      %s29 = ssub.s32 %s23, 2
      %s30 = sadd.s32 %s23, 1
      %s31 = ssub.s32 %s23, %s30
      %p32 = scmp.eq.s32.totalorder %s31, 0
      %s34 = sadd.s32 %s33, 1
      %s35 = scalar_select %p32, %s33, %s34
      %p38 = pneg %p32
      %p39 = scmp.eq.s32.totalorder %s23, 1
      %p40 = por %p38, %p39
      %p41 = scmp.ne.s32.totalorder %s33, %s36
      %p42 = scmp.eq.s32.totalorder %s23, 0
      %p43 = por %p41, %p42
      %p44 = scmp.ne.s32.totalorder %s33, %s36
      %p45 = scmp.eq.s32.totalorder %s28, 1
      %p46 = por %p44, %p45
      %p47 = scmp.ne.s32.totalorder %s36, %s37
      %p48 = scmp.eq.s32.totalorder %s28, 0
      %p49 = por %p47, %p48
      %p50 = scmp.ne.s32.totalorder %s36, %s37
      %p51 = scmp.eq.s32.totalorder %s29, 1
      %p52 = por %p50, %p51
      %p54 = scmp.ne.s32.totalorder %s37, %s53
      %p55 = scmp.eq.s32.totalorder %s29, 0
      %p56 = por %p54, %p55
      %s58 = sadd.s32 %s57, 1
      %p61 = scmp.eq.s32.totalorder %s23, 1
      %p62 = scmp.ne.s32.totalorder %s57, %s59
      %p63 = scmp.eq.s32.totalorder %s23, 0
      %p64 = por %p62, %p63
      %p65 = scmp.ne.s32.totalorder %s57, %s59
      %p66 = scmp.eq.s32.totalorder %s28, 1
      %p67 = por %p65, %p66
      %p68 = scmp.ne.s32.totalorder %s59, %s60
      %p69 = scmp.eq.s32.totalorder %s28, 0
      %p70 = por %p68, %p69
      %p71 = scmp.ne.s32.totalorder %s59, %s60
      %p72 = scmp.eq.s32.totalorder %s29, 1
      %p73 = por %p71, %p72
      %p75 = scmp.ne.s32.totalorder %s60, %s74
      %p76 = scmp.eq.s32.totalorder %s29, 0
      %p77 = por %p75, %p76
      %s79 = sadd.s32 %s78, 1
      %p82 = scmp.eq.s32.totalorder %s23, 1
      %p83 = scmp.ne.s32.totalorder %s78, %s80
      %p84 = scmp.eq.s32.totalorder %s23, 0
      %p85 = por %p83, %p84
      %p86 = scmp.ne.s32.totalorder %s78, %s80
      %p87 = scmp.eq.s32.totalorder %s28, 1
      %p88 = por %p86, %p87
      %p89 = scmp.ne.s32.totalorder %s80, %s81
      %p90 = scmp.eq.s32.totalorder %s28, 0
      %p91 = por %p89, %p90
      %p92 = scmp.ne.s32.totalorder %s80, %s81
      %p93 = scmp.eq.s32.totalorder %s29, 1
      %p94 = por %p92, %p93
      %p96 = scmp.ne.s32.totalorder %s81, %s95
      %p97 = scmp.eq.s32.totalorder %s29, 0
      %p98 = por %p96, %p97
      %s100 = sadd.s32 %s99, 1
      %p103 = scmp.eq.s32.totalorder %s23, 1
      %p104 = scmp.ne.s32.totalorder %s99, %s101
      %p105 = scmp.eq.s32.totalorder %s23, 0
      %p106 = por %p104, %p105
      %p107 = scmp.ne.s32.totalorder %s99, %s101
      %p108 = scmp.eq.s32.totalorder %s28, 1
      %p109 = por %p107, %p108
      %p110 = scmp.ne.s32.totalorder %s101, %s102
      %p111 = scmp.eq.s32.totalorder %s28, 0
      %p112 = por %p110, %p111
      %p113 = scmp.ne.s32.totalorder %s101, %s102
      %p114 = scmp.eq.s32.totalorder %s29, 1
      %p115 = por %p113, %p114
      %p117 = scmp.ne.s32.totalorder %s102, %s116
      %p118 = scmp.eq.s32.totalorder %s29, 0
      %p119 = por %p117, %p118
      %s121 = sadd.s32 %s120, 1
      %p124 = scmp.eq.s32.totalorder %s23, 1
      %p125 = scmp.ne.s32.totalorder %s120, %s122
      %p126 = scmp.eq.s32.totalorder %s23, 0
      %p127 = por %p125, %p126
      %p128 = scmp.ne.s32.totalorder %s120, %s122
      %p129 = scmp.eq.s32.totalorder %s28, 1
      %p130 = por %p128, %p129
      %p131 = scmp.ne.s32.totalorder %s122, %s123
      %p132 = scmp.eq.s32.totalorder %s28, 0
      %p133 = por %p131, %p132
      %p134 = scmp.ne.s32.totalorder %s122, %s123
      %p135 = scmp.eq.s32.totalorder %s29, 1
      %p136 = por %p134, %p135
      %p138 = scmp.ne.s32.totalorder %s123, %s137
      %p139 = scmp.eq.s32.totalorder %s29, 0
      %p140 = por %p138, %p139
      %s142 = sadd.s32 %s141, 1
      %p145 = scmp.eq.s32.totalorder %s23, 1
      %p146 = scmp.ne.s32.totalorder %s141, %s143
      %p147 = scmp.eq.s32.totalorder %s23, 0
      %p148 = por %p146, %p147
      %p149 = scmp.ne.s32.totalorder %s141, %s143
      %p150 = scmp.eq.s32.totalorder %s28, 1
      %p151 = por %p149, %p150
      %p152 = scmp.ne.s32.totalorder %s143, %s144
      %p153 = scmp.eq.s32.totalorder %s28, 0
      %p154 = por %p152, %p153
      %p155 = scmp.ne.s32.totalorder %s143, %s144
      %p156 = scmp.eq.s32.totalorder %s29, 1
      %p157 = por %p155, %p156
      %p159 = scmp.ne.s32.totalorder %s144, %s158
      %p160 = scmp.eq.s32.totalorder %s29, 0
      %p161 = por %p159, %p160
      %s163 = sadd.s32 %s162, 1
      %p166 = scmp.eq.s32.totalorder %s23, 1
      %p167 = scmp.ne.s32.totalorder %s162, %s164
      %p168 = scmp.eq.s32.totalorder %s23, 0
      %p169 = por %p167, %p168
      %p170 = scmp.ne.s32.totalorder %s162, %s164
      %p171 = scmp.eq.s32.totalorder %s28, 1
      %p172 = por %p170, %p171
      %p173 = scmp.ne.s32.totalorder %s164, %s165
      %p174 = scmp.eq.s32.totalorder %s28, 0
      %p175 = por %p173, %p174
      %p176 = scmp.ne.s32.totalorder %s164, %s165
      %p177 = scmp.eq.s32.totalorder %s29, 1
      %p178 = por %p176, %p177
      %p180 = scmp.ne.s32.totalorder %s165, %s179
      %p181 = scmp.eq.s32.totalorder %s29, 0
      %p182 = por %p180, %p181
      %s184 = sadd.s32 %s183, 1
      %p187 = scmp.eq.s32.totalorder %s23, 1
      %p188 = scmp.ne.s32.totalorder %s183, %s185
      %p189 = scmp.eq.s32.totalorder %s23, 0
      %p190 = por %p188, %p189
      %p191 = scmp.ne.s32.totalorder %s183, %s185
      %p192 = scmp.eq.s32.totalorder %s28, 1
      %p193 = por %p191, %p192
      %p194 = scmp.ne.s32.totalorder %s185, %s186
      %p195 = scmp.eq.s32.totalorder %s28, 0
      %p196 = por %p194, %p195
      %p197 = scmp.ne.s32.totalorder %s185, %s186
      %p198 = scmp.eq.s32.totalorder %s29, 1
      %p199 = por %p197, %p198
      %p201 = scmp.ne.s32.totalorder %s186, %s200
      %p202 = scmp.eq.s32.totalorder %s29, 0
      %p203 = por %p201, %p202
      %s205 = sadd.s32 %s204, 1
      %p208 = scmp.eq.s32.totalorder %s23, 1
      %p209 = scmp.ne.s32.totalorder %s204, %s206
      %p210 = scmp.eq.s32.totalorder %s23, 0
      %p211 = por %p209, %p210
      %p212 = scmp.ne.s32.totalorder %s204, %s206
      %p213 = scmp.eq.s32.totalorder %s28, 1
      %p214 = por %p212, %p213
      %p215 = scmp.ne.s32.totalorder %s206, %s207
      %p216 = scmp.eq.s32.totalorder %s28, 0
      %p217 = por %p215, %p216
      %p218 = scmp.ne.s32.totalorder %s206, %s207
      %p219 = scmp.eq.s32.totalorder %s29, 1
      %p220 = por %p218, %p219
      %p222 = scmp.ne.s32.totalorder %s207, %s221
      %p223 = scmp.eq.s32.totalorder %s29, 0
      %p224 = por %p222, %p223
      %s225 = ssub.s32 %s23, %s30
      %p226 = scmp.eq.s32.totalorder %s225, 0
      %s228 = sadd.s32 %s227, 1
      %s229 = scalar_select %p226, %s227, %s228
      %p232 = pneg %p226
      %p233 = scmp.eq.s32.totalorder %s23, 1
      %p234 = por %p232, %p233
      %p235 = scmp.ne.s32.totalorder %s227, %s230
      %p236 = scmp.eq.s32.totalorder %s23, 0
      %p237 = por %p235, %p236
      %p238 = scmp.ne.s32.totalorder %s227, %s230
      %p239 = scmp.eq.s32.totalorder %s28, 1
      %p240 = por %p238, %p239
      %p241 = scmp.ne.s32.totalorder %s230, %s231
      %p242 = scmp.eq.s32.totalorder %s28, 0
      %p243 = por %p241, %p242
      %p244 = scmp.ne.s32.totalorder %s230, %s231
      %p245 = scmp.eq.s32.totalorder %s29, 1
      %p246 = por %p244, %p245
      %p248 = scmp.ne.s32.totalorder %s231, %s247
      %p249 = scmp.eq.s32.totalorder %s29, 0
      %p250 = por %p248, %p249
      %p251 = scmp.le.s32.totalorder 1, %s23
      %p252 = scmp.lt.s32.totalorder %s23, 3
      %p253 = pnand %p251, %p252
      %p254 = pneg %p253
      // Predicated region
      $region9: #{tpu_custom_call.1} parent=5 // pred_check
        _
      $region10: #{tpu_custom_call.1} parent=5 // pred_check_branch
        %256 = sbr.rel (%p253) target = $region12
      $region11: #{tpu_custom_call.1} parent=5 // pred_region
        %s257 = ssub.s32 %s23, 1
        // Predicated region
        $region13: #{tpu_custom_call.1} parent=11 // pred_check
          %p258 = pneg %p70
        $region14: #{tpu_custom_call.1} parent=11 // pred_check_branch
          %260 = sbr.rel (%p258) target = $region16
        $region15: #{tpu_custom_call.1} parent=11 // pred_region
          %s262 = ssub.s32 6144, 6144
          %263 = vsyncadd [#allocation8], %s262
          %s264 = sshll.u32 [#allocation7], 4
          %s265 = int_to_ptr.vmem [resolvable:$true] %s264
          %270 = dma.hbm_to_vmem [thread:$0]  %s1, 6144, %s265, [#allocation8], 128, 128, 8
        $region16: #{tpu_custom_call.1} parent=11 // pred_fallthru
          _
        // Predicated region
        $region17: #{tpu_custom_call.1} parent=11 // pred_check
          %p271 = pneg %p91
        $region18: #{tpu_custom_call.1} parent=11 // pred_check_branch
          %273 = sbr.rel (%p271) target = $region20
        $region19: #{tpu_custom_call.1} parent=11 // pred_region
          %s275 = ssub.s32 12288, 12288
          %276 = vsyncadd [#allocation8], %s275
          %s277 = sshll.u32 [#allocation9], 4
          %s278 = int_to_ptr.vmem [resolvable:$true] %s277
          %283 = dma.hbm_to_vmem [thread:$0]  %s2, 12288, %s278, [#allocation8], 128, 128, 8
        $region20: #{tpu_custom_call.1} parent=11 // pred_fallthru
          _
        // Predicated region
        $region21: #{tpu_custom_call.1} parent=11 // pred_check
          %p284 = pneg %p112
        $region22: #{tpu_custom_call.1} parent=11 // pred_check_branch
          %286 = sbr.rel (%p284) target = $region24
        $region23: #{tpu_custom_call.1} parent=11 // pred_region
          %s288 = ssub.s32 18432, 18432
          %289 = vsyncadd [#allocation11], %s288
          %s290 = sshll.u32 [#allocation10], 4
          %s291 = int_to_ptr.vmem [resolvable:$true] %s290
          %296 = dma.hbm_to_vmem [thread:$0]  %s3, 18432, %s291, [#allocation11], 128, 128, 8
        $region24: #{tpu_custom_call.1} parent=11 // pred_fallthru
          _
        // Predicated region
        $region25: #{tpu_custom_call.1} parent=11 // pred_check
          %p297 = pneg %p133
        $region26: #{tpu_custom_call.1} parent=11 // pred_check_branch
          %299 = sbr.rel (%p297) target = $region28
        $region27: #{tpu_custom_call.1} parent=11 // pred_region
          _
        $region28: #{tpu_custom_call.1} parent=11 // pred_fallthru
          _
        // Predicated region
        $region29: #{tpu_custom_call.1} parent=11 // pred_check
          %p300 = pneg %p154
        $region30: #{tpu_custom_call.1} parent=11 // pred_check_branch
          %302 = sbr.rel (%p300) target = $region32
        $region31: #{tpu_custom_call.1} parent=11 // pred_region
          _
        $region32: #{tpu_custom_call.1} parent=11 // pred_fallthru
          _
        // Predicated region
        $region33: #{tpu_custom_call.1} parent=11 // pred_check
          %p303 = pneg %p175
        $region34: #{tpu_custom_call.1} parent=11 // pred_check_branch
          %305 = sbr.rel (%p303) target = $region36
        $region35: #{tpu_custom_call.1} parent=11 // pred_region
          _
        $region36: #{tpu_custom_call.1} parent=11 // pred_fallthru
          _
        // Predicated region
        $region37: #{tpu_custom_call.1} parent=11 // pred_check
          %p306 = pneg %p196
        $region38: #{tpu_custom_call.1} parent=11 // pred_check_branch
          %308 = sbr.rel (%p306) target = $region40
        $region39: #{tpu_custom_call.1} parent=11 // pred_region
          %s310 = ssub.s32 8192, 8192
          %311 = vsyncadd [#allocation11], %s310
          %s312 = sshll.u32 [#allocation12], 4
          %s313 = int_to_ptr.vmem [resolvable:$true] %s312
          %318 = dma.hbm_to_vmem [thread:$0]  %s7, 8192, %s313, [#allocation11], 128, 128, 8
        $region40: #{tpu_custom_call.1} parent=11 // pred_fallthru
          _
        // Predicated region
        $region41: #{tpu_custom_call.1} parent=11 // pred_check
          %p319 = pneg %p217
        $region42: #{tpu_custom_call.1} parent=11 // pred_check_branch
          %321 = sbr.rel (%p319) target = $region44
        $region43: #{tpu_custom_call.1} parent=11 // pred_region
          _
        $region44: #{tpu_custom_call.1} parent=11 // pred_fallthru
          _
      $region12: #{tpu_custom_call.1} parent=5 // pred_fallthru
        _
      %p322 = scmp.lt.s32.totalorder %s23, 2
      // Predicated region
      $region45: #{tpu_custom_call.1} parent=5 // pred_check
        %p323 = pneg %p322
      $region46: #{tpu_custom_call.1} parent=5 // pred_check_branch
        %325 = sbr.rel (%p323) target = $region48
      $region47: #{tpu_custom_call.1} parent=5 // pred_region
        // Predicated region
        $region49: #{tpu_custom_call.1} parent=47 // pred_check
          %p326 = pneg %p43
        $region50: #{tpu_custom_call.1} parent=47 // pred_check_branch
          %328 = sbr.rel (%p326) target = $region52
        $region51: #{tpu_custom_call.1} parent=47 // pred_region
          %s329 = sand.u32 %s33, 1
          %s330 = scalar_lea.sflag [#allocation5], %s329
          %s331 = sand.u32 %s33, 1
          %s332 = smul.addr %s331, 128
          %s333 = scalar_lea.vmem [#allocation4], %s332
          %s334 = smul.u32 16, %s23
          %s336 = ssub.s32 2048, 2048
          %337 = vsyncadd %s330, %s336
          %s338 = smul.addr %s334, 128
          %s339 = scalar_lea.hbm %s0, %s338
          %s340 = sshll.u32 %s333, 4
          %s341 = int_to_ptr.vmem [resolvable:$true] %s340
          %346 = dma.hbm_to_vmem [thread:$0]  %s339, 2048, %s341, %s330, 128, 128, 8
        $region52: #{tpu_custom_call.1} parent=47 // pred_fallthru
          _
      $region48: #{tpu_custom_call.1} parent=5 // pred_fallthru
        _
      %p347 = scmp.le.s32.totalorder 1, %s23
      %p348 = scmp.lt.s32.totalorder %s23, 3
      %p349 = pnand %p347, %p348
      %p350 = pneg %p349
      // Predicated region
      $region53: #{tpu_custom_call.1} parent=5 // pred_check
        _
      $region54: #{tpu_custom_call.1} parent=5 // pred_check_branch
        %352 = sbr.rel (%p349) target = $region56
      $region55: #{tpu_custom_call.1} parent=5 // pred_region
        %s353 = ssub.s32 %s23, 1
        %s354 = sand.u32 %s36, 1
        %s355 = scalar_lea.sflag [#allocation5], %s354
        %s356 = sand.u32 %s36, 1
        %s357 = smul.addr %s356, 128
        %s358 = scalar_lea.vmem [#allocation4], %s357
        // Predicated region
        $region57: #{tpu_custom_call.1} parent=55 // pred_check
          %p359 = pneg %p49
        $region58: #{tpu_custom_call.1} parent=55 // pred_check_branch
          %361 = sbr.rel (%p359) target = $region60
        $region59: #{tpu_custom_call.1} parent=55 // pred_region
          %362 = dma.done %s355, 2048
        $region60: #{tpu_custom_call.1} parent=55 // pred_fallthru
          _
        // Predicated region
        $region61: #{tpu_custom_call.1} parent=55 // pred_check
          %p363 = pneg %p70
        $region62: #{tpu_custom_call.1} parent=55 // pred_check_branch
          %365 = sbr.rel (%p363) target = $region64
        $region63: #{tpu_custom_call.1} parent=55 // pred_region
          %366 = dma.done [#allocation8], 6144
        $region64: #{tpu_custom_call.1} parent=55 // pred_fallthru
          _
        // Predicated region
        $region65: #{tpu_custom_call.1} parent=55 // pred_check
          %p367 = pneg %p91
        $region66: #{tpu_custom_call.1} parent=55 // pred_check_branch
          %369 = sbr.rel (%p367) target = $region68
        $region67: #{tpu_custom_call.1} parent=55 // pred_region
          %370 = dma.done [#allocation8], 12288
        $region68: #{tpu_custom_call.1} parent=55 // pred_fallthru
          _
        // Predicated region
        $region69: #{tpu_custom_call.1} parent=55 // pred_check
          %p371 = pneg %p112
        $region70: #{tpu_custom_call.1} parent=55 // pred_check_branch
          %373 = sbr.rel (%p371) target = $region72
        $region71: #{tpu_custom_call.1} parent=55 // pred_region
          %374 = dma.done [#allocation11], 18432
        $region72: #{tpu_custom_call.1} parent=55 // pred_fallthru
          _
        // Predicated region
        $region73: #{tpu_custom_call.1} parent=55 // pred_check
          %p375 = pneg %p196
        $region74: #{tpu_custom_call.1} parent=55 // pred_check_branch
          %377 = sbr.rel (%p375) target = $region76
        $region75: #{tpu_custom_call.1} parent=55 // pred_region
          %378 = dma.done [#allocation11], 8192
        $region76: #{tpu_custom_call.1} parent=55 // pred_fallthru
          _
        %s379 = sand.u32 %s36, 1
        %s380 = scalar_lea.sflag [#allocation5], %s379
        %s381 = sand.u32 %s36, 1
        %s382 = smul.addr %s381, 128
        %s383 = scalar_lea.vmem [#allocation4], %s382
        %p384 = pneg %p49
        %p385 = pneg %p46
        %p386 = pneg %p70
        %p387 = pneg %p67
        %p388 = pneg %p91
        %p389 = pneg %p88
        %p390 = pneg %p112
        %p391 = pneg %p109
        %p392 = pneg %p133
        %p393 = pneg %p130
        %p394 = pneg %p154
        %p395 = pneg %p151
        %p396 = pneg %p175
        %p397 = pneg %p172
        %p398 = pneg %p196
        %p399 = pneg %p193
        %p400 = pneg %p217
        %p401 = pneg %p214
        %p402 = pneg %p243
        %p403 = pneg %p240
        %s404 = sand.u32 %s230, 1
        %s405 = scalar_lea.sflag [#allocation6], %s404
        %s406 = sand.u32 %s230, 1
        %s407 = smul.addr %s406, 128
        %s408 = scalar_lea.vmem [#allocation13], %s407
        %s409 = smul.u32 16, %s28
        %s410 = smul.u32 16, %s28
        %v411 = vlaneseq
        %v412 = vshrl.u32 %v411, 7
        %v413 = vadd.s32 %v412, 8
        %v414 = vadd.s32 %v412, 16
        %v415 = vadd.s32 %v412, 24
        %v416 = vadd.s32 %v412, 32
        %v417 = vadd.s32 %v412, 40
        %v418 = vadd.s32 %v412, 48
        %v419 = vadd.s32 %v412, 56
        %v420 = vadd.s32 %v412, 64
        %v421 = vadd.s32 %v412, 72
        %v422 = vadd.s32 %v412, 80
        %v423 = vadd.s32 %v412, 88
        %v424 = vadd.s32 %v412, 96
        %v425 = vadd.s32 %v412, 104
        %v426 = vadd.s32 %v412, 112
        %v427 = vadd.s32 %v412, 120
        %vm428 = vcmp.lt.s32.totalorder %v412, 0
        %v429 = vsub.s32 0, %v412
        %v430 = vsel %vm428, %v429, %v412
        %v431 = vshrl.u32 %v430, 4
        %v432 = vand.u32 %v430, 15
        %v433 = vsub.s32 0, %v432
        %v434 = vsel %vm428, %v433, %v432
        %vm435 = vcmp.lt.s32.totalorder %v413, 0
        %v436 = vsub.s32 0, %v413
        %v437 = vsel %vm435, %v436, %v413
        %v438 = vshrl.u32 %v437, 4
        %v439 = vand.u32 %v437, 15
        %v440 = vsub.s32 0, %v439
        %v441 = vsel %vm435, %v440, %v439
        %vm442 = vcmp.lt.s32.totalorder %v414, 0
        %v443 = vsub.s32 0, %v414
        %v444 = vsel %vm442, %v443, %v414
        %v445 = vshrl.u32 %v444, 4
        %v446 = vand.u32 %v444, 15
        %v447 = vsub.s32 0, %v446
        %v448 = vsel %vm442, %v447, %v446
        %vm449 = vcmp.lt.s32.totalorder %v415, 0
        %v450 = vsub.s32 0, %v415
        %v451 = vsel %vm449, %v450, %v415
        %v452 = vshrl.u32 %v451, 4
        %v453 = vand.u32 %v451, 15
        %v454 = vsub.s32 0, %v453
        %v455 = vsel %vm449, %v454, %v453
        %vm456 = vcmp.lt.s32.totalorder %v416, 0
        %v457 = vsub.s32 0, %v416
        %v458 = vsel %vm456, %v457, %v416
        %v459 = vshrl.u32 %v458, 4
        %v460 = vand.u32 %v458, 15
        %v461 = vsub.s32 0, %v460
        %v462 = vsel %vm456, %v461, %v460
        %vm463 = vcmp.lt.s32.totalorder %v417, 0
        %v464 = vsub.s32 0, %v417
        %v465 = vsel %vm463, %v464, %v417
        %v466 = vshrl.u32 %v465, 4
        %v467 = vand.u32 %v465, 15
        %v468 = vsub.s32 0, %v467
        %v469 = vsel %vm463, %v468, %v467
        %vm470 = vcmp.lt.s32.totalorder %v418, 0
        %v471 = vsub.s32 0, %v418
        %v472 = vsel %vm470, %v471, %v418
        %v473 = vshrl.u32 %v472, 4
        %v474 = vand.u32 %v472, 15
        %v475 = vsub.s32 0, %v474
        %v476 = vsel %vm470, %v475, %v474
        %vm477 = vcmp.lt.s32.totalorder %v419, 0
        %v478 = vsub.s32 0, %v419
        %v479 = vsel %vm477, %v478, %v419
        %v480 = vshrl.u32 %v479, 4
        %v481 = vand.u32 %v479, 15
        %v482 = vsub.s32 0, %v481
        %v483 = vsel %vm477, %v482, %v481
        %vm484 = vcmp.lt.s32.totalorder %v420, 0
        %v485 = vsub.s32 0, %v420
        %v486 = vsel %vm484, %v485, %v420
        %v487 = vshrl.u32 %v486, 4
        %v488 = vand.u32 %v486, 15
        %v489 = vsub.s32 0, %v488
        %v490 = vsel %vm484, %v489, %v488
        %vm491 = vcmp.lt.s32.totalorder %v421, 0
        %v492 = vsub.s32 0, %v421
        %v493 = vsel %vm491, %v492, %v421
        %v494 = vshrl.u32 %v493, 4
        %v495 = vand.u32 %v493, 15
        %v496 = vsub.s32 0, %v495
        %v497 = vsel %vm491, %v496, %v495
        %vm498 = vcmp.lt.s32.totalorder %v422, 0
        %v499 = vsub.s32 0, %v422
        %v500 = vsel %vm498, %v499, %v422
        %v501 = vshrl.u32 %v500, 4
        %v502 = vand.u32 %v500, 15
        %v503 = vsub.s32 0, %v502
        %v504 = vsel %vm498, %v503, %v502
        %vm505 = vcmp.lt.s32.totalorder %v423, 0
        %v506 = vsub.s32 0, %v423
        %v507 = vsel %vm505, %v506, %v423
        %v508 = vshrl.u32 %v507, 4
        %v509 = vand.u32 %v507, 15
        %v510 = vsub.s32 0, %v509
        %v511 = vsel %vm505, %v510, %v509
        %vm512 = vcmp.lt.s32.totalorder %v424, 0
        %v513 = vsub.s32 0, %v424
        %v514 = vsel %vm512, %v513, %v424
        %v515 = vshrl.u32 %v514, 4
        %v516 = vand.u32 %v514, 15
        %v517 = vsub.s32 0, %v516
        %v518 = vsel %vm512, %v517, %v516
        %vm519 = vcmp.lt.s32.totalorder %v425, 0
        %v520 = vsub.s32 0, %v425
        %v521 = vsel %vm519, %v520, %v425
        %v522 = vshrl.u32 %v521, 4
        %v523 = vand.u32 %v521, 15
        %v524 = vsub.s32 0, %v523
        %v525 = vsel %vm519, %v524, %v523
        %vm526 = vcmp.lt.s32.totalorder %v426, 0
        %v527 = vsub.s32 0, %v426
        %v528 = vsel %vm526, %v527, %v426
        %v529 = vshrl.u32 %v528, 4
        %v530 = vand.u32 %v528, 15
        %v531 = vsub.s32 0, %v530
        %v532 = vsel %vm526, %v531, %v530
        %vm533 = vcmp.lt.s32.totalorder %v427, 0
        %v534 = vsub.s32 0, %v427
        %v535 = vsel %vm533, %v534, %v427
        %v536 = vshrl.u32 %v535, 4
        %v537 = vand.u32 %v535, 15
        %v538 = vsub.s32 0, %v537
        %v539 = vsel %vm533, %v538, %v537
        %vm540 = vcmp.ne.s32.totalorder %v434, 0
        %vm541 = vcmp.ne.s32.totalorder %v441, 0
        %vm542 = vcmp.ne.s32.totalorder %v448, 0
        %vm543 = vcmp.ne.s32.totalorder %v455, 0
        %vm544 = vcmp.ne.s32.totalorder %v462, 0
        %vm545 = vcmp.ne.s32.totalorder %v469, 0
        %vm546 = vcmp.ne.s32.totalorder %v476, 0
        %vm547 = vcmp.ne.s32.totalorder %v483, 0
        %vm548 = vcmp.ne.s32.totalorder %v490, 0
        %vm549 = vcmp.ne.s32.totalorder %v497, 0
        %vm550 = vcmp.ne.s32.totalorder %v504, 0
        %vm551 = vcmp.ne.s32.totalorder %v511, 0
        %vm552 = vcmp.ne.s32.totalorder %v518, 0
        %vm553 = vcmp.ne.s32.totalorder %v525, 0
        %vm554 = vcmp.ne.s32.totalorder %v532, 0
        %vm555 = vcmp.ne.s32.totalorder %v539, 0
        %vm556 = vcmp.lt.s32.totalorder %v434, 0
        %vm557 = vcmp.lt.s32.totalorder %v441, 0
        %vm558 = vcmp.lt.s32.totalorder %v448, 0
        %vm559 = vcmp.lt.s32.totalorder %v455, 0
        %vm560 = vcmp.lt.s32.totalorder %v462, 0
        %vm561 = vcmp.lt.s32.totalorder %v469, 0
        %vm562 = vcmp.lt.s32.totalorder %v476, 0
        %vm563 = vcmp.lt.s32.totalorder %v483, 0
        %vm564 = vcmp.lt.s32.totalorder %v490, 0
        %vm565 = vcmp.lt.s32.totalorder %v497, 0
        %vm566 = vcmp.lt.s32.totalorder %v504, 0
        %vm567 = vcmp.lt.s32.totalorder %v511, 0
        %vm568 = vcmp.lt.s32.totalorder %v518, 0
        %vm569 = vcmp.lt.s32.totalorder %v525, 0
        %vm570 = vcmp.lt.s32.totalorder %v532, 0
        %vm571 = vcmp.lt.s32.totalorder %v539, 0
        %vm572 = vmand %vm556, %vm540
        %vm573 = vmand %vm557, %vm541
        %vm574 = vmand %vm558, %vm542
        %vm575 = vmand %vm559, %vm543
        %vm576 = vmand %vm560, %vm544
        %vm577 = vmand %vm561, %vm545
        %vm578 = vmand %vm562, %vm546
        %vm579 = vmand %vm563, %vm547
        %vm580 = vmand %vm564, %vm548
        %vm581 = vmand %vm565, %vm549
        %vm582 = vmand %vm566, %vm550
        %vm583 = vmand %vm567, %vm551
        %vm584 = vmand %vm568, %vm552
        %vm585 = vmand %vm569, %vm553
        %vm586 = vmand %vm570, %vm554
        %vm587 = vmand %vm571, %vm555
        %v588 = vadd.s32 %v434, 16
        %v589 = vadd.s32 %v441, 16
        %v590 = vadd.s32 %v448, 16
        %v591 = vadd.s32 %v455, 16
        %v592 = vadd.s32 %v462, 16
        %v593 = vadd.s32 %v469, 16
        %v594 = vadd.s32 %v476, 16
        %v595 = vadd.s32 %v483, 16
        %v596 = vadd.s32 %v490, 16
        %v597 = vadd.s32 %v497, 16
        %v598 = vadd.s32 %v504, 16
        %v599 = vadd.s32 %v511, 16
        %v600 = vadd.s32 %v518, 16
        %v601 = vadd.s32 %v525, 16
        %v602 = vadd.s32 %v532, 16
        %v603 = vadd.s32 %v539, 16
        %v604 = vsel %vm572, %v588, %v434
        %v605 = vsel %vm573, %v589, %v441
        %v606 = vsel %vm574, %v590, %v448
        %v607 = vsel %vm575, %v591, %v455
        %v608 = vsel %vm576, %v592, %v462
        %v609 = vsel %vm577, %v593, %v469
        %v610 = vsel %vm578, %v594, %v476
        %v611 = vsel %vm579, %v595, %v483
        %v612 = vsel %vm580, %v596, %v490
        %v613 = vsel %vm581, %v597, %v497
        %v614 = vsel %vm582, %v598, %v504
        %v615 = vsel %vm583, %v599, %v511
        %v616 = vsel %vm584, %v600, %v518
        %v617 = vsel %vm585, %v601, %v525
        %v618 = vsel %vm586, %v602, %v532
        %v619 = vsel %vm587, %v603, %v539
        %v620 = vld [vmem:[%s358] sm:$0xff]
        %v621 = vld [vmem:[%s358 + $0x8] sm:$0xff]
        %v622 = vld [vmem:[%s358 + $0x10] sm:$0xff]
        %v623 = vld [vmem:[%s358 + $0x18] sm:$0xff]
        %v624 = vld [vmem:[%s358 + $0x20] sm:$0xff]
        %v625 = vld [vmem:[%s358 + $0x28] sm:$0xff]
        %v626 = vld [vmem:[%s358 + $0x30] sm:$0xff]
        %v627 = vld [vmem:[%s358 + $0x38] sm:$0xff]
        %v628 = vld [vmem:[%s358 + $0x40] sm:$0xff]
        %v629 = vld [vmem:[%s358 + $0x48] sm:$0xff]
        %v630 = vld [vmem:[%s358 + $0x50] sm:$0xff]
        %v631 = vld [vmem:[%s358 + $0x58] sm:$0xff]
        %v632 = vld [vmem:[%s358 + $0x60] sm:$0xff]
        %v633 = vld [vmem:[%s358 + $0x68] sm:$0xff]
        %v634 = vld [vmem:[%s358 + $0x70] sm:$0xff]
        %v635 = vld [vmem:[%s358 + $0x78] sm:$0xff]
        %636 = vst [vmem:[#allocation3] sm:$0xff] %v620
        %637 = vst [vmem:[#allocation3 + $0x20] sm:$0xff] %v621
        %638 = vst [vmem:[#allocation3 + $0x40] sm:$0xff] %v622
        %639 = vst [vmem:[#allocation3 + $0x60] sm:$0xff] %v623
        %640 = vst [vmem:[#allocation3 + $0x80] sm:$0xff] %v624
        %641 = vst [vmem:[#allocation3 + $0xa0] sm:$0xff] %v625
        %642 = vst [vmem:[#allocation3 + $0xc0] sm:$0xff] %v626
        %643 = vst [vmem:[#allocation3 + $0xe0] sm:$0xff] %v627
        %644 = vst [vmem:[#allocation3 + $0x100] sm:$0xff] %v628
        %645 = vst [vmem:[#allocation3 + $0x120] sm:$0xff] %v629
        %646 = vst [vmem:[#allocation3 + $0x140] sm:$0xff] %v630
        %647 = vst [vmem:[#allocation3 + $0x160] sm:$0xff] %v631
        %648 = vst [vmem:[#allocation3 + $0x180] sm:$0xff] %v632
        %649 = vst [vmem:[#allocation3 + $0x1a0] sm:$0xff] %v633
        %650 = vst [vmem:[#allocation3 + $0x1c0] sm:$0xff] %v634
        %651 = vst [vmem:[#allocation3 + $0x1e0] sm:$0xff] %v635
        %vm652 = vcmp.eq.s32.totalorder %v604, 0
        %vm653 = vcmp.eq.s32.totalorder %v605, 0
        %vm654 = vcmp.eq.s32.totalorder %v606, 0
        %vm655 = vcmp.eq.s32.totalorder %v607, 0
        %vm656 = vcmp.eq.s32.totalorder %v608, 0
        %vm657 = vcmp.eq.s32.totalorder %v609, 0
        %vm658 = vcmp.eq.s32.totalorder %v610, 0
        %vm659 = vcmp.eq.s32.totalorder %v611, 0
        %vm660 = vcmp.eq.s32.totalorder %v612, 0
        %vm661 = vcmp.eq.s32.totalorder %v613, 0
        %vm662 = vcmp.eq.s32.totalorder %v614, 0
        %vm663 = vcmp.eq.s32.totalorder %v615, 0
        %vm664 = vcmp.eq.s32.totalorder %v616, 0
        %vm665 = vcmp.eq.s32.totalorder %v617, 0
        %vm666 = vcmp.eq.s32.totalorder %v618, 0
        %vm667 = vcmp.eq.s32.totalorder %v619, 0
        %v668 = vrot.slane %v620, 7
        %v669 = vrot.slane %v621, 7
        %v670 = vrot.slane %v622, 7
        %v671 = vrot.slane %v623, 7
        %v672 = vrot.slane %v624, 7
        %v673 = vrot.slane %v625, 7
        %v674 = vrot.slane %v626, 7
        %v675 = vrot.slane %v627, 7
        %v676 = vrot.slane %v628, 7
        %v677 = vrot.slane %v629, 7
        %v678 = vrot.slane %v630, 7
        %v679 = vrot.slane %v631, 7
        %v680 = vrot.slane %v632, 7
        %v681 = vrot.slane %v633, 7
        %v682 = vrot.slane %v634, 7
        %v683 = vrot.slane %v635, 7
        %vm684 = vcmp.lt.s32.totalorder %v412, 1
        %v685 = vsel %vm684, %v682, %v683
        %v686 = vsel %vm684, %v681, %v682
        %v687 = vsel %vm684, %v680, %v681
        %v688 = vsel %vm684, %v679, %v680
        %v689 = vsel %vm684, %v678, %v679
        %v690 = vsel %vm684, %v677, %v678
        %v691 = vsel %vm684, %v676, %v677
        %v692 = vsel %vm684, %v675, %v676
        %v693 = vsel %vm684, %v674, %v675
        %v694 = vsel %vm684, %v673, %v674
        %v695 = vsel %vm684, %v672, %v673
        %v696 = vsel %vm684, %v671, %v672
        %v697 = vsel %vm684, %v670, %v671
        %v698 = vsel %vm684, %v669, %v670
        %v699 = vsel %vm684, %v668, %v669
        %v700 = vsel %vm684, %v683, %v668
        %v701 = vsel %vm652, 1, 0
        %v702 = vsel %vm653, 1, 0
        %v703 = vsel %vm654, 1, 0
        %v704 = vsel %vm655, 1, 0
        %v705 = vsel %vm656, 1, 0
        %v706 = vsel %vm657, 1, 0
        %v707 = vsel %vm658, 1, 0
        %v708 = vsel %vm659, 1, 0
        %v709 = vsel %vm660, 1, 0
        %v710 = vsel %vm661, 1, 0
        %v711 = vsel %vm662, 1, 0
        %v712 = vsel %vm663, 1, 0
        %v713 = vsel %vm664, 1, 0
        %v714 = vsel %vm665, 1, 0
        %v715 = vsel %vm666, 1, 0
        %v716 = vsel %vm667, 1, 0
        %vm717 = vcmp.eq.s32.totalorder %v701, 1
        %vm718 = vcmp.eq.s32.totalorder %v702, 1
        %vm719 = vcmp.eq.s32.totalorder %v703, 1
        %vm720 = vcmp.eq.s32.totalorder %v704, 1
        %vm721 = vcmp.eq.s32.totalorder %v705, 1
        %vm722 = vcmp.eq.s32.totalorder %v706, 1
        %vm723 = vcmp.eq.s32.totalorder %v707, 1
        %vm724 = vcmp.eq.s32.totalorder %v708, 1
        %vm725 = vcmp.eq.s32.totalorder %v709, 1
        %vm726 = vcmp.eq.s32.totalorder %v710, 1
        %vm727 = vcmp.eq.s32.totalorder %v711, 1
        %vm728 = vcmp.eq.s32.totalorder %v712, 1
        %vm729 = vcmp.eq.s32.totalorder %v713, 1
        %vm730 = vcmp.eq.s32.totalorder %v714, 1
        %vm731 = vcmp.eq.s32.totalorder %v715, 1
        %vm732 = vcmp.eq.s32.totalorder %v716, 1
        %v733 = vsel %vm717, 0.0, %v700
        %v734 = vsel %vm718, 0.0, %v699
        %v735 = vsel %vm719, 0.0, %v698
        %v736 = vsel %vm720, 0.0, %v697
        %v737 = vsel %vm721, 0.0, %v696
        %v738 = vsel %vm722, 0.0, %v695
        %v739 = vsel %vm723, 0.0, %v694
        %v740 = vsel %vm724, 0.0, %v693
        %v741 = vsel %vm725, 0.0, %v692
        %v742 = vsel %vm726, 0.0, %v691
        %v743 = vsel %vm727, 0.0, %v690
        %v744 = vsel %vm728, 0.0, %v689
        %v745 = vsel %vm729, 0.0, %v688
        %v746 = vsel %vm730, 0.0, %v687
        %v747 = vsel %vm731, 0.0, %v686
        %v748 = vsel %vm732, 0.0, %v685
        %vm749 = vcmp.eq.s32.totalorder %v604, 15
        %vm750 = vcmp.eq.s32.totalorder %v605, 15
        %vm751 = vcmp.eq.s32.totalorder %v606, 15
        %vm752 = vcmp.eq.s32.totalorder %v607, 15
        %vm753 = vcmp.eq.s32.totalorder %v608, 15
        %vm754 = vcmp.eq.s32.totalorder %v609, 15
        %vm755 = vcmp.eq.s32.totalorder %v610, 15
        %vm756 = vcmp.eq.s32.totalorder %v611, 15
        %vm757 = vcmp.eq.s32.totalorder %v612, 15
        %vm758 = vcmp.eq.s32.totalorder %v613, 15
        %vm759 = vcmp.eq.s32.totalorder %v614, 15
        %vm760 = vcmp.eq.s32.totalorder %v615, 15
        %vm761 = vcmp.eq.s32.totalorder %v616, 15
        %vm762 = vcmp.eq.s32.totalorder %v617, 15
        %vm763 = vcmp.eq.s32.totalorder %v618, 15
        %vm764 = vcmp.eq.s32.totalorder %v619, 15
        %v765 = vrot.slane %v620, 1
        %v766 = vrot.slane %v621, 1
        %v767 = vrot.slane %v622, 1
        %v768 = vrot.slane %v623, 1
        %v769 = vrot.slane %v624, 1
        %v770 = vrot.slane %v625, 1
        %v771 = vrot.slane %v626, 1
        %v772 = vrot.slane %v627, 1
        %v773 = vrot.slane %v628, 1
        %v774 = vrot.slane %v629, 1
        %v775 = vrot.slane %v630, 1
        %v776 = vrot.slane %v631, 1
        %v777 = vrot.slane %v632, 1
        %v778 = vrot.slane %v633, 1
        %v779 = vrot.slane %v634, 1
        %v780 = vrot.slane %v635, 1
        %vm781 = vcmp.lt.s32.totalorder %v412, 7
        %v782 = vsel %vm781, %v779, %v780
        %v783 = vsel %vm781, %v778, %v779
        %v784 = vsel %vm781, %v777, %v778
        %v785 = vsel %vm781, %v776, %v777
        %v786 = vsel %vm781, %v775, %v776
        %v787 = vsel %vm781, %v774, %v775
        %v788 = vsel %vm781, %v773, %v774
        %v789 = vsel %vm781, %v772, %v773
        %v790 = vsel %vm781, %v771, %v772
        %v791 = vsel %vm781, %v770, %v771
        %v792 = vsel %vm781, %v769, %v770
        %v793 = vsel %vm781, %v768, %v769
        %v794 = vsel %vm781, %v767, %v768
        %v795 = vsel %vm781, %v766, %v767
        %v796 = vsel %vm781, %v765, %v766
        %v797 = vsel %vm781, %v780, %v765
        %v798 = vsel %vm749, 1, 0
        %v799 = vsel %vm750, 1, 0
        %v800 = vsel %vm751, 1, 0
        %v801 = vsel %vm752, 1, 0
        %v802 = vsel %vm753, 1, 0
        %v803 = vsel %vm754, 1, 0
        %v804 = vsel %vm755, 1, 0
        %v805 = vsel %vm756, 1, 0
        %v806 = vsel %vm757, 1, 0
        %v807 = vsel %vm758, 1, 0
        %v808 = vsel %vm759, 1, 0
        %v809 = vsel %vm760, 1, 0
        %v810 = vsel %vm761, 1, 0
        %v811 = vsel %vm762, 1, 0
        %v812 = vsel %vm763, 1, 0
        %v813 = vsel %vm764, 1, 0
        %vm814 = vcmp.eq.s32.totalorder %v798, 1
        %vm815 = vcmp.eq.s32.totalorder %v799, 1
        %vm816 = vcmp.eq.s32.totalorder %v800, 1
        %vm817 = vcmp.eq.s32.totalorder %v801, 1
        %vm818 = vcmp.eq.s32.totalorder %v802, 1
        %vm819 = vcmp.eq.s32.totalorder %v803, 1
        %vm820 = vcmp.eq.s32.totalorder %v804, 1
        %vm821 = vcmp.eq.s32.totalorder %v805, 1
        %vm822 = vcmp.eq.s32.totalorder %v806, 1
        %vm823 = vcmp.eq.s32.totalorder %v807, 1
        %vm824 = vcmp.eq.s32.totalorder %v808, 1
        %vm825 = vcmp.eq.s32.totalorder %v809, 1
        %vm826 = vcmp.eq.s32.totalorder %v810, 1
        %vm827 = vcmp.eq.s32.totalorder %v811, 1
        %vm828 = vcmp.eq.s32.totalorder %v812, 1
        %vm829 = vcmp.eq.s32.totalorder %v813, 1
        %v830 = vsel %vm814, 0.0, %v796
        %v831 = vsel %vm815, 0.0, %v795
        %v832 = vsel %vm816, 0.0, %v794
        %v833 = vsel %vm817, 0.0, %v793
        %v834 = vsel %vm818, 0.0, %v792
        %v835 = vsel %vm819, 0.0, %v791
        %v836 = vsel %vm820, 0.0, %v790
        %v837 = vsel %vm821, 0.0, %v789
        %v838 = vsel %vm822, 0.0, %v788
        %v839 = vsel %vm823, 0.0, %v787
        %v840 = vsel %vm824, 0.0, %v786
        %v841 = vsel %vm825, 0.0, %v785
        %v842 = vsel %vm826, 0.0, %v784
        %v843 = vsel %vm827, 0.0, %v783
        %v844 = vsel %vm828, 0.0, %v782
        %v845 = vsel %vm829, 0.0, %v797
        %846 = vst [vmem:[#allocation2] sm:$0xff] %v733
        %847 = vst [vmem:[#allocation2 + $0x8] sm:$0xff] %v620
        %848 = vst [vmem:[#allocation2 + $0x10] sm:$0xff] %v830
        %849 = vst [vmem:[#allocation2 + $0x48] sm:$0xff] %v734
        %850 = vst [vmem:[#allocation2 + $0x50] sm:$0xff] %v621
        %851 = vst [vmem:[#allocation2 + $0x58] sm:$0xff] %v831
        %852 = vst [vmem:[#allocation2 + $0x90] sm:$0xff] %v735
        %853 = vst [vmem:[#allocation2 + $0x98] sm:$0xff] %v622
        %854 = vst [vmem:[#allocation2 + $0xa0] sm:$0xff] %v832
        %855 = vst [vmem:[#allocation2 + $0xd8] sm:$0xff] %v736
        %856 = vst [vmem:[#allocation2 + $0xe0] sm:$0xff] %v623
        %857 = vst [vmem:[#allocation2 + $0xe8] sm:$0xff] %v833
        %858 = vst [vmem:[#allocation2 + $0x120] sm:$0xff] %v737
        %859 = vst [vmem:[#allocation2 + $0x128] sm:$0xff] %v624
        %860 = vst [vmem:[#allocation2 + $0x130] sm:$0xff] %v834
        %861 = vst [vmem:[#allocation2 + $0x168] sm:$0xff] %v738
        %862 = vst [vmem:[#allocation2 + $0x170] sm:$0xff] %v625
        %863 = vst [vmem:[#allocation2 + $0x178] sm:$0xff] %v835
        %864 = vst [vmem:[#allocation2 + $0x1b0] sm:$0xff] %v739
        %865 = vst [vmem:[#allocation2 + $0x1b8] sm:$0xff] %v626
        %866 = vst [vmem:[#allocation2 + $0x1c0] sm:$0xff] %v836
        %867 = vst [vmem:[#allocation2 + $0x1f8] sm:$0xff] %v740
        %868 = vst [vmem:[#allocation2 + $0x200] sm:$0xff] %v627
        %869 = vst [vmem:[#allocation2 + $0x208] sm:$0xff] %v837
        %870 = vst [vmem:[#allocation2 + $0x240] sm:$0xff] %v741
        %871 = vst [vmem:[#allocation2 + $0x248] sm:$0xff] %v628
        %872 = vst [vmem:[#allocation2 + $0x250] sm:$0xff] %v838
        %873 = vst [vmem:[#allocation2 + $0x288] sm:$0xff] %v742
        %874 = vst [vmem:[#allocation2 + $0x290] sm:$0xff] %v629
        %875 = vst [vmem:[#allocation2 + $0x298] sm:$0xff] %v839
        %876 = vst [vmem:[#allocation2 + $0x2d0] sm:$0xff] %v743
        %877 = vst [vmem:[#allocation2 + $0x2d8] sm:$0xff] %v630
        %878 = vst [vmem:[#allocation2 + $0x2e0] sm:$0xff] %v840
        %879 = vst [vmem:[#allocation2 + $0x318] sm:$0xff] %v744
        %880 = vst [vmem:[#allocation2 + $0x320] sm:$0xff] %v631
        %881 = vst [vmem:[#allocation2 + $0x328] sm:$0xff] %v841
        %882 = vst [vmem:[#allocation2 + $0x360] sm:$0xff] %v745
        %883 = vst [vmem:[#allocation2 + $0x368] sm:$0xff] %v632
        %884 = vst [vmem:[#allocation2 + $0x370] sm:$0xff] %v842
        %885 = vst [vmem:[#allocation2 + $0x3a8] sm:$0xff] %v746
        %886 = vst [vmem:[#allocation2 + $0x3b0] sm:$0xff] %v633
        %887 = vst [vmem:[#allocation2 + $0x3b8] sm:$0xff] %v843
        %888 = vst [vmem:[#allocation2 + $0x3f0] sm:$0xff] %v747
        %889 = vst [vmem:[#allocation2 + $0x3f8] sm:$0xff] %v634
        %890 = vst [vmem:[#allocation2 + $0x400] sm:$0xff] %v844
        %891 = vst [vmem:[#allocation2 + $0x438] sm:$0xff] %v748
        %892 = vst [vmem:[#allocation2 + $0x440] sm:$0xff] %v635
        %893 = vst [vmem:[#allocation2 + $0x448] sm:$0xff] %v845
        %v894 = vld [vmem:[#allocation2] sm:$0xff]
        %v895 = vld [vmem:[#allocation2 + $0x8] sm:$0xff]
        %v896 = vld [vmem:[#allocation2 + $0x10] sm:$0xff]
        %v897 = vld [vmem:[#allocation2 + $0x48] sm:$0xff]
        %v898 = vld [vmem:[#allocation2 + $0x50] sm:$0xff]
        %v899 = vld [vmem:[#allocation2 + $0x58] sm:$0xff]
        %v900 = vld [vmem:[#allocation2 + $0x90] sm:$0xff]
        %v901 = vld [vmem:[#allocation2 + $0x98] sm:$0xff]
        %v902 = vld [vmem:[#allocation2 + $0xa0] sm:$0xff]
        %v903 = vld [vmem:[#allocation2 + $0xd8] sm:$0xff]
        %v904 = vld [vmem:[#allocation2 + $0xe0] sm:$0xff]
        %v905 = vld [vmem:[#allocation2 + $0xe8] sm:$0xff]
        %v906 = vld [vmem:[#allocation2 + $0x120] sm:$0xff]
        %v907 = vld [vmem:[#allocation2 + $0x128] sm:$0xff]
        %v908 = vld [vmem:[#allocation2 + $0x130] sm:$0xff]
        %v909 = vld [vmem:[#allocation2 + $0x168] sm:$0xff]
        %v910 = vld [vmem:[#allocation2 + $0x170] sm:$0xff]
        %v911 = vld [vmem:[#allocation2 + $0x178] sm:$0xff]
        %v912 = vld [vmem:[#allocation2 + $0x1b0] sm:$0xff]
        %v913 = vld [vmem:[#allocation2 + $0x1b8] sm:$0xff]
        %v914 = vld [vmem:[#allocation2 + $0x1c0] sm:$0xff]
        %v915 = vld [vmem:[#allocation2 + $0x1f8] sm:$0xff]
        %v916 = vld [vmem:[#allocation2 + $0x200] sm:$0xff]
        %v917 = vld [vmem:[#allocation2 + $0x208] sm:$0xff]
        %v918 = vld [vmem:[#allocation2 + $0x240] sm:$0xff]
        %v919 = vld [vmem:[#allocation2 + $0x248] sm:$0xff]
        %v920 = vld [vmem:[#allocation2 + $0x250] sm:$0xff]
        %v921 = vld [vmem:[#allocation2 + $0x288] sm:$0xff]
        %v922 = vld [vmem:[#allocation2 + $0x290] sm:$0xff]
        %v923 = vld [vmem:[#allocation2 + $0x298] sm:$0xff]
        %v924 = vld [vmem:[#allocation2 + $0x2d0] sm:$0xff]
        %v925 = vld [vmem:[#allocation2 + $0x2d8] sm:$0xff]
        %v926 = vld [vmem:[#allocation2 + $0x2e0] sm:$0xff]
        %v927 = vld [vmem:[#allocation2 + $0x318] sm:$0xff]
        %v928 = vld [vmem:[#allocation2 + $0x320] sm:$0xff]
        %v929 = vld [vmem:[#allocation2 + $0x328] sm:$0xff]
        %v930 = vld [vmem:[#allocation2 + $0x360] sm:$0xff]
        %v931 = vld [vmem:[#allocation2 + $0x368] sm:$0xff]
        %v932 = vld [vmem:[#allocation2 + $0x370] sm:$0xff]
        %v933 = vld [vmem:[#allocation2 + $0x3a8] sm:$0xff]
        %v934 = vld [vmem:[#allocation2 + $0x3b0] sm:$0xff]
        %v935 = vld [vmem:[#allocation2 + $0x3b8] sm:$0xff]
        %v936 = vld [vmem:[#allocation2 + $0x3f0] sm:$0xff]
        %v937 = vld [vmem:[#allocation2 + $0x3f8] sm:$0xff]
        %v938 = vld [vmem:[#allocation2 + $0x400] sm:$0xff]
        %v939 = vld [vmem:[#allocation2 + $0x438] sm:$0xff]
        %v940 = vld [vmem:[#allocation2 + $0x440] sm:$0xff]
        %v941 = vld [vmem:[#allocation2 + $0x448] sm:$0xff]
        %v942 = vld [vmem:[#allocation7] sm:$0xff]
        %v943 = vld [vmem:[#allocation7 + $0x8] sm:$0xff]
        %v944 = vld [vmem:[#allocation7 + $0x10] sm:$0xff]
        %v945 = vld [vmem:[#allocation7 + $0x18] sm:$0xff]
        %v946 = vld [vmem:[#allocation7 + $0x20] sm:$0xff]
        %v947 = vld [vmem:[#allocation7 + $0x28] sm:$0xff]
        %v948 = vld [vmem:[#allocation7 + $0x30] sm:$0xff]
        %v949 = vld [vmem:[#allocation7 + $0x38] sm:$0xff]
        %v950 = vld [vmem:[#allocation7 + $0x40] sm:$0xff]
        %v951 = vld [vmem:[#allocation7 + $0x48] sm:$0xff]
        %v952 = vld [vmem:[#allocation7 + $0x50] sm:$0xff]
        %v953 = vld [vmem:[#allocation7 + $0x58] sm:$0xff]
        %v954 = vld [vmem:[#allocation7 + $0x60] sm:$0xff]
        %v955 = vld [vmem:[#allocation7 + $0x68] sm:$0xff]
        %v956 = vld [vmem:[#allocation7 + $0x70] sm:$0xff]
        %v957 = vld [vmem:[#allocation7 + $0x78] sm:$0xff]
        %v958 = vld [vmem:[#allocation7 + $0x80] sm:$0xff]
        %v959 = vld [vmem:[#allocation7 + $0x88] sm:$0xff]
        %v960 = vld [vmem:[#allocation7 + $0x90] sm:$0xff]
        %v961 = vld [vmem:[#allocation7 + $0x98] sm:$0xff]
        %v962 = vld [vmem:[#allocation7 + $0xa0] sm:$0xff]
        %v963 = vld [vmem:[#allocation7 + $0xa8] sm:$0xff]
        %v964 = vld [vmem:[#allocation7 + $0xb0] sm:$0xff]
        %v965 = vld [vmem:[#allocation7 + $0xb8] sm:$0xff]
        %v966 = vld [vmem:[#allocation7 + $0xc0] sm:$0xff]
        %v967 = vld [vmem:[#allocation7 + $0xc8] sm:$0xff]
        %v968 = vld [vmem:[#allocation7 + $0xd0] sm:$0xff]
        %v969 = vld [vmem:[#allocation7 + $0xd8] sm:$0xff]
        %v970 = vld [vmem:[#allocation7 + $0xe0] sm:$0xff]
        %v971 = vld [vmem:[#allocation7 + $0xe8] sm:$0xff]
        %v972 = vld [vmem:[#allocation7 + $0xf0] sm:$0xff]
        %v973 = vld [vmem:[#allocation7 + $0xf8] sm:$0xff]
        %v974 = vld [vmem:[#allocation7 + $0x100] sm:$0xff]
        %v975 = vld [vmem:[#allocation7 + $0x108] sm:$0xff]
        %v976 = vld [vmem:[#allocation7 + $0x110] sm:$0xff]
        %v977 = vld [vmem:[#allocation7 + $0x118] sm:$0xff]
        %v978 = vld [vmem:[#allocation7 + $0x120] sm:$0xff]
        %v979 = vld [vmem:[#allocation7 + $0x128] sm:$0xff]
        %v980 = vld [vmem:[#allocation7 + $0x130] sm:$0xff]
        %v981 = vld [vmem:[#allocation7 + $0x138] sm:$0xff]
        %v982 = vld [vmem:[#allocation7 + $0x140] sm:$0xff]
        %v983 = vld [vmem:[#allocation7 + $0x148] sm:$0xff]
        %v984 = vld [vmem:[#allocation7 + $0x150] sm:$0xff]
        %v985 = vld [vmem:[#allocation7 + $0x158] sm:$0xff]
        %v986 = vld [vmem:[#allocation7 + $0x160] sm:$0xff]
        %v987 = vld [vmem:[#allocation7 + $0x168] sm:$0xff]
        %v988 = vld [vmem:[#allocation7 + $0x170] sm:$0xff]
        %v989 = vld [vmem:[#allocation7 + $0x178] sm:$0xff]
        %v990 = vld [vmem:[%s4] sm:$0x1]
        %v992 = vlaneseq
        %v993 = vshrl.u32 %v992, 7
        %v994 = vsub.s32 0, %v993
        %v995 = vrot.slane %v990, %v994
        %997 = vmatprep.subr.mxu0 0.0
        %998 = vmatpush1.msra.mxu0 %v942
        %999 = vmatprep.subr.mxu0 0.0
        %1000 = vmatpush1.msra.mxu0 %v943
        %1001 = vmatprep.subr.mxu0 0.0
        %1002 = vmatpush1.msra.mxu0 %v944
        %1003 = vmatprep.subr.mxu0 0.0
        %1004 = vmatpush1.msra.mxu0 %v945
        %1005 = vmatprep.subr.mxu0 0.0
        %1006 = vmatpush1.msra.mxu0 %v946
        %1007 = vmatprep.subr.mxu0 0.0
        %1008 = vmatpush1.msra.mxu0 %v947
        %1009 = vmatprep.subr.mxu0 0.0
        %1010 = vmatpush1.msra.mxu0 %v948
        %1011 = vmatprep.subr.mxu0 0.0
        %1012 = vmatpush1.msra.mxu0 %v949
        %1013 = vmatprep.subr.mxu0 0.0
        %1014 = vmatpush1.msra.mxu0 %v950
        %1015 = vmatprep.subr.mxu0 0.0
        %1016 = vmatpush1.msra.mxu0 %v951
        %1017 = vmatprep.subr.mxu0 0.0
        %1018 = vmatpush1.msra.mxu0 %v952
        %1019 = vmatprep.subr.mxu0 0.0
        %1020 = vmatpush1.msra.mxu0 %v953
        %1021 = vmatprep.subr.mxu0 0.0
        %1022 = vmatpush1.msra.mxu0 %v954
        %1023 = vmatprep.subr.mxu0 0.0
        %1024 = vmatpush1.msra.mxu0 %v955
        %1025 = vmatprep.subr.mxu0 0.0
        %1026 = vmatpush1.msra.mxu0 %v956
        %1027 = vmatprep.subr.mxu0 0.0
        %1028 = vmatpush1.msra.mxu0 %v957
        %1029 = vmatprep.subr.mxu0 0.0
        %1030 = vmatpush1.msra.mxu0 %v958
        %1031 = vmatprep.subr.mxu0 0.0
        %1032 = vmatpush1.msra.mxu0 %v959
        %1033 = vmatprep.subr.mxu0 0.0
        %1034 = vmatpush1.msra.mxu0 %v960
        %1035 = vmatprep.subr.mxu0 0.0
        %1036 = vmatpush1.msra.mxu0 %v961
        %1037 = vmatprep.subr.mxu0 0.0
        %1038 = vmatpush1.msra.mxu0 %v962
        %1039 = vmatprep.subr.mxu0 0.0
        %1040 = vmatpush1.msra.mxu0 %v963
        %1041 = vmatprep.subr.mxu0 0.0
        %1042 = vmatpush1.msra.mxu0 %v964
        %1043 = vmatprep.subr.mxu0 0.0
        %1044 = vmatpush1.msra.mxu0 %v965
        %1045 = vmatprep.subr.mxu0 0.0
        %1046 = vmatpush1.msra.mxu0 %v966
        %1047 = vmatprep.subr.mxu0 0.0
        %1048 = vmatpush1.msra.mxu0 %v967
        %1049 = vmatprep.subr.mxu0 0.0
        %1050 = vmatpush1.msra.mxu0 %v968
        %1051 = vmatprep.subr.mxu0 0.0
        %1052 = vmatpush1.msra.mxu0 %v969
        %1053 = vmatprep.subr.mxu0 0.0
        %1054 = vmatpush1.msra.mxu0 %v970
        %1055 = vmatprep.subr.mxu0 0.0
        %1056 = vmatpush1.msra.mxu0 %v971
        %1057 = vmatprep.subr.mxu0 0.0
        %1058 = vmatpush1.msra.mxu0 %v972
        %1059 = vmatprep.subr.mxu0 0.0
        %1060 = vmatpush1.msra.mxu0 %v973
        %1061 = vmatprep.mubr.f32.mxu0 %v895
        %1062 = vmatmul.mubr.f32.gmra.mrb[0].mxu0 %v894
        %v1063 = vpop.f32.mrb[0].mxu0
        %v1064 = vadd.f32 %v995, %v1063
        %v1065 = vpop.f32.mrb[0].mxu0
        %1066 = vmatprep.mubr.f32.mxu0 %v898
        %1067 = vmatmul.mubr.f32.gmra.mrb[0].mxu0 %v897
        %v1068 = vpop.f32.mrb[0].mxu0
        %v1069 = vadd.f32 %v995, %v1068
        %v1070 = vpop.f32.mrb[0].mxu0
        %1071 = vmatprep.mubr.f32.mxu0 %v901
        %1072 = vmatmul.mubr.f32.gmra.mrb[0].mxu0 %v900
        %v1073 = vpop.f32.mrb[0].mxu0
        %v1074 = vadd.f32 %v995, %v1073
        %v1075 = vpop.f32.mrb[0].mxu0
        %1076 = vmatprep.mubr.f32.mxu0 %v904
        %1077 = vmatmul.mubr.f32.gmra.mrb[0].mxu0 %v903
        %v1078 = vpop.f32.mrb[0].mxu0
        %v1079 = vadd.f32 %v995, %v1078
        %v1080 = vpop.f32.mrb[0].mxu0
        %1081 = vmatprep.mubr.f32.mxu0 %v907
        %1082 = vmatmul.mubr.f32.gmra.mrb[0].mxu0 %v906
        %v1083 = vpop.f32.mrb[0].mxu0
        %v1084 = vadd.f32 %v995, %v1083
        %v1085 = vpop.f32.mrb[0].mxu0
        %1086 = vmatprep.mubr.f32.mxu0 %v910
        %1087 = vmatmul.mubr.f32.gmra.mrb[0].mxu0 %v909
        %v1088 = vpop.f32.mrb[0].mxu0
        %v1089 = vadd.f32 %v995, %v1088
        %v1090 = vpop.f32.mrb[0].mxu0
        %1091 = vmatprep.mubr.f32.mxu0 %v913
        %1092 = vmatmul.mubr.f32.gmra.mrb[0].mxu0 %v912
        %v1093 = vpop.f32.mrb[0].mxu0
        %v1094 = vadd.f32 %v995, %v1093
        %v1095 = vpop.f32.mrb[0].mxu0
        %1096 = vmatprep.mubr.f32.mxu0 %v916
        %1097 = vmatmul.mubr.f32.gmra.mrb[0].mxu0 %v915
        %v1098 = vpop.f32.mrb[0].mxu0
        %v1099 = vadd.f32 %v995, %v1098
        %v1100 = vpop.f32.mrb[0].mxu0
        %1101 = vmatprep.mubr.f32.mxu0 %v919
        %1102 = vmatmul.mubr.f32.gmra.mrb[0].mxu0 %v918
        %v1103 = vpop.f32.mrb[0].mxu0
        %v1104 = vadd.f32 %v995, %v1103
        %v1105 = vpop.f32.mrb[0].mxu0
        %1106 = vmatprep.mubr.f32.mxu0 %v922
        %1107 = vmatmul.mubr.f32.gmra.mrb[0].mxu0 %v921
        %v1108 = vpop.f32.mrb[0].mxu0
        %v1109 = vadd.f32 %v995, %v1108
        %v1110 = vpop.f32.mrb[0].mxu0
        %1111 = vmatprep.mubr.f32.mxu0 %v925
        %1112 = vmatmul.mubr.f32.gmra.mrb[0].mxu0 %v924
        %v1113 = vpop.f32.mrb[0].mxu0
        %v1114 = vadd.f32 %v995, %v1113
        %v1115 = vpop.f32.mrb[0].mxu0
        %1116 = vmatprep.mubr.f32.mxu0 %v928
        %1117 = vmatmul.mubr.f32.gmra.mrb[0].mxu0 %v927
        %v1118 = vpop.f32.mrb[0].mxu0
        %v1119 = vadd.f32 %v995, %v1118
        %v1120 = vpop.f32.mrb[0].mxu0
        %1121 = vmatprep.mubr.f32.mxu0 %v931
        %1122 = vmatmul.mubr.f32.gmra.mrb[0].mxu0 %v930
        %v1123 = vpop.f32.mrb[0].mxu0
        %v1124 = vadd.f32 %v995, %v1123
        %v1125 = vpop.f32.mrb[0].mxu0
        %1126 = vmatprep.mubr.f32.mxu0 %v934
        %1127 = vmatmul.mubr.f32.gmra.mrb[0].mxu0 %v933
        %v1128 = vpop.f32.mrb[0].mxu0
        %v1129 = vadd.f32 %v995, %v1128
        %v1130 = vpop.f32.mrb[0].mxu0
        %1131 = vmatprep.mubr.f32.mxu0 %v937
        %1132 = vmatmul.mubr.f32.gmra.mrb[0].mxu0 %v936
        %v1133 = vpop.f32.mrb[0].mxu0
        %v1134 = vadd.f32 %v995, %v1133
        %v1135 = vpop.f32.mrb[0].mxu0
        %1136 = vmatprep.mubr.f32.mxu0 %v940
        %1137 = vmatmul.mubr.f32.gmra.mrb[0].mxu0 %v939
        %v1138 = vpop.f32.mrb[0].mxu0
        %v1139 = vadd.f32 %v995, %v1138
        %v1140 = vpop.f32.mrb[0].mxu0
        %1141 = vdwg.mxu0
        %1142 = vmatprep.subr.mxu0 0.0
        %1143 = vmatpush1.msra.mxu0 %v974
        %1144 = vmatprep.subr.mxu0 0.0
        %1145 = vmatpush1.msra.mxu0 %v975
        %1146 = vmatprep.subr.mxu0 0.0
        %1147 = vmatpush1.msra.mxu0 %v976
        %1148 = vmatprep.subr.mxu0 0.0
        %1149 = vmatpush1.msra.mxu0 %v977
        %1150 = vmatprep.subr.mxu0 0.0
        %1151 = vmatpush1.msra.mxu0 %v978
        %1152 = vmatprep.subr.mxu0 0.0
        %1153 = vmatpush1.msra.mxu0 %v979
        %1154 = vmatprep.subr.mxu0 0.0
        %1155 = vmatpush1.msra.mxu0 %v980
        %1156 = vmatprep.subr.mxu0 0.0
        %1157 = vmatpush1.msra.mxu0 %v981
        %1158 = vmatprep.subr.mxu0 0.0
        %1159 = vmatpush1.msra.mxu0 %v982
        %1160 = vmatprep.subr.mxu0 0.0
        %1161 = vmatpush1.msra.mxu0 %v983
        %1162 = vmatprep.subr.mxu0 0.0
        %1163 = vmatpush1.msra.mxu0 %v984
        %1164 = vmatprep.subr.mxu0 0.0
        %1165 = vmatpush1.msra.mxu0 %v985
        %1166 = vmatprep.subr.mxu0 0.0
        %1167 = vmatpush1.msra.mxu0 %v986
        %1168 = vmatprep.subr.mxu0 0.0
        %1169 = vmatpush1.msra.mxu0 %v987
        %1170 = vmatprep.subr.mxu0 0.0
        %1171 = vmatpush1.msra.mxu0 %v988
        %1172 = vmatprep.subr.mxu0 0.0
        %1173 = vmatpush1.msra.mxu0 %v989
        %1174 = vmatprep.subr.mxu0 0.0
        %1175 = vmatpush1.msra.mxu0 0.0
        %1176 = vmatprep.subr.mxu0 0.0
        %1177 = vmatpush1.msra.mxu0 0.0
        %1178 = vmatprep.subr.mxu0 0.0
        %1179 = vmatpush1.msra.mxu0 0.0
        %1180 = vmatprep.subr.mxu0 0.0
        %1181 = vmatpush1.msra.mxu0 0.0
        %1182 = vmatprep.subr.mxu0 0.0
        %1183 = vmatpush1.msra.mxu0 0.0
        %1184 = vmatprep.subr.mxu0 0.0
        %1185 = vmatpush1.msra.mxu0 0.0
        %1186 = vmatprep.subr.mxu0 0.0
        %1187 = vmatpush1.msra.mxu0 0.0
        %1188 = vmatprep.subr.mxu0 0.0
        %1189 = vmatpush1.msra.mxu0 0.0
        %1190 = vmatprep.subr.mxu0 0.0
        %1191 = vmatpush1.msra.mxu0 0.0
        %1192 = vmatprep.subr.mxu0 0.0
        %1193 = vmatpush1.msra.mxu0 0.0
        %1194 = vmatprep.subr.mxu0 0.0
        %1195 = vmatpush1.msra.mxu0 0.0
        %1196 = vmatprep.subr.mxu0 0.0
        %1197 = vmatpush1.msra.mxu0 0.0
        %1198 = vmatprep.subr.mxu0 0.0
        %1199 = vmatpush1.msra.mxu0 0.0
        %1200 = vmatprep.subr.mxu0 0.0
        %1201 = vmatpush1.msra.mxu0 0.0
        %1202 = vmatprep.subr.mxu0 0.0
        %1203 = vmatpush1.msra.mxu0 0.0
        %1204 = vmatprep.subr.mxu0 0.0
        %1205 = vmatpush1.msra.mxu0 0.0
        %1206 = vmatprep.mubr.f32.mxu0 0.0
        %1207 = vmatmul.mubr.f32.gmra.mrb[0].mxu0 %v896
        %v1208 = vpop.f32.mrb[0].mxu0
        %v1209 = vadd.f32 %v1064, %v1208
        %v1210 = vpop.f32.mrb[0].mxu0
        %1211 = vmatprep.mubr.f32.mxu0 0.0
        %1212 = vmatmul.mubr.f32.gmra.mrb[0].mxu0 %v899
        %v1213 = vpop.f32.mrb[0].mxu0
        %v1214 = vadd.f32 %v1069, %v1213
        %v1215 = vpop.f32.mrb[0].mxu0
        %1216 = vmatprep.mubr.f32.mxu0 0.0
        %1217 = vmatmul.mubr.f32.gmra.mrb[0].mxu0 %v902
        %v1218 = vpop.f32.mrb[0].mxu0
        %v1219 = vadd.f32 %v1074, %v1218
        %v1220 = vpop.f32.mrb[0].mxu0
        %1221 = vmatprep.mubr.f32.mxu0 0.0
        %1222 = vmatmul.mubr.f32.gmra.mrb[0].mxu0 %v905
        %v1223 = vpop.f32.mrb[0].mxu0
        %v1224 = vadd.f32 %v1079, %v1223
        %v1225 = vpop.f32.mrb[0].mxu0
        %1226 = vmatprep.mubr.f32.mxu0 0.0
        %1227 = vmatmul.mubr.f32.gmra.mrb[0].mxu0 %v908
        %v1228 = vpop.f32.mrb[0].mxu0
        %v1229 = vadd.f32 %v1084, %v1228
        %v1230 = vpop.f32.mrb[0].mxu0
        %1231 = vmatprep.mubr.f32.mxu0 0.0
        %1232 = vmatmul.mubr.f32.gmra.mrb[0].mxu0 %v911
        %v1233 = vpop.f32.mrb[0].mxu0
        %v1234 = vadd.f32 %v1089, %v1233
        %v1235 = vpop.f32.mrb[0].mxu0
        %1236 = vmatprep.mubr.f32.mxu0 0.0
        %1237 = vmatmul.mubr.f32.gmra.mrb[0].mxu0 %v914
        %v1238 = vpop.f32.mrb[0].mxu0
        %v1239 = vadd.f32 %v1094, %v1238
        %v1240 = vpop.f32.mrb[0].mxu0
        %1241 = vmatprep.mubr.f32.mxu0 0.0
        %1242 = vmatmul.mubr.f32.gmra.mrb[0].mxu0 %v917
        %v1243 = vpop.f32.mrb[0].mxu0
        %v1244 = vadd.f32 %v1099, %v1243
        %v1245 = vpop.f32.mrb[0].mxu0
        %1246 = vmatprep.mubr.f32.mxu0 0.0
        %1247 = vmatmul.mubr.f32.gmra.mrb[0].mxu0 %v920
        %v1248 = vpop.f32.mrb[0].mxu0
        %v1249 = vadd.f32 %v1104, %v1248
        %v1250 = vpop.f32.mrb[0].mxu0
        %1251 = vmatprep.mubr.f32.mxu0 0.0
        %1252 = vmatmul.mubr.f32.gmra.mrb[0].mxu0 %v923
        %v1253 = vpop.f32.mrb[0].mxu0
        %v1254 = vadd.f32 %v1109, %v1253
        %v1255 = vpop.f32.mrb[0].mxu0
        %1256 = vmatprep.mubr.f32.mxu0 0.0
        %1257 = vmatmul.mubr.f32.gmra.mrb[0].mxu0 %v926
        %v1258 = vpop.f32.mrb[0].mxu0
        %v1259 = vadd.f32 %v1114, %v1258
        %v1260 = vpop.f32.mrb[0].mxu0
        %1261 = vmatprep.mubr.f32.mxu0 0.0
        %1262 = vmatmul.mubr.f32.gmra.mrb[0].mxu0 %v929
        %v1263 = vpop.f32.mrb[0].mxu0
        %v1264 = vadd.f32 %v1119, %v1263
        %v1265 = vpop.f32.mrb[0].mxu0
        %1266 = vmatprep.mubr.f32.mxu0 0.0
        %1267 = vmatmul.mubr.f32.gmra.mrb[0].mxu0 %v932
        %v1268 = vpop.f32.mrb[0].mxu0
        %v1269 = vadd.f32 %v1124, %v1268
        %v1270 = vpop.f32.mrb[0].mxu0
        %1271 = vmatprep.mubr.f32.mxu0 0.0
        %1272 = vmatmul.mubr.f32.gmra.mrb[0].mxu0 %v935
        %v1273 = vpop.f32.mrb[0].mxu0
        %v1274 = vadd.f32 %v1129, %v1273
        %v1275 = vpop.f32.mrb[0].mxu0
        %1276 = vmatprep.mubr.f32.mxu0 0.0
        %1277 = vmatmul.mubr.f32.gmra.mrb[0].mxu0 %v938
        %v1278 = vpop.f32.mrb[0].mxu0
        %v1279 = vadd.f32 %v1134, %v1278
        %v1280 = vpop.f32.mrb[0].mxu0
        %1281 = vmatprep.mubr.f32.mxu0 0.0
        %1282 = vmatmul.mubr.f32.gmra.mrb[0].mxu0 %v941
        %v1283 = vpop.f32.mrb[0].mxu0
        %v1284 = vadd.f32 %v1139, %v1283
        %v1285 = vpop.f32.mrb[0].mxu0
        %1286 = vdwg.mxu0
        %v1287 = vmax.f32 %v1209, 0.0
        %v1288 = vmax.f32 %v1214, 0.0
        %v1289 = vmax.f32 %v1219, 0.0
        %v1290 = vmax.f32 %v1224, 0.0
        %v1291 = vmax.f32 %v1229, 0.0
        %v1292 = vmax.f32 %v1234, 0.0
        %v1293 = vmax.f32 %v1239, 0.0
        %v1294 = vmax.f32 %v1244, 0.0
        %v1295 = vmax.f32 %v1249, 0.0
        %v1296 = vmax.f32 %v1254, 0.0
        %v1297 = vmax.f32 %v1259, 0.0
        %v1298 = vmax.f32 %v1264, 0.0
        %v1299 = vmax.f32 %v1269, 0.0
        %v1300 = vmax.f32 %v1274, 0.0
        %v1301 = vmax.f32 %v1279, 0.0
        %v1302 = vmax.f32 %v1284, 0.0
        %1303 = vst [vmem:[#allocation3 + $0x8] sm:$0xff] %v1287
        %1304 = vst [vmem:[#allocation3 + $0x28] sm:$0xff] %v1288
        %1305 = vst [vmem:[#allocation3 + $0x48] sm:$0xff] %v1289
        %1306 = vst [vmem:[#allocation3 + $0x68] sm:$0xff] %v1290
        %1307 = vst [vmem:[#allocation3 + $0x88] sm:$0xff] %v1291
        %1308 = vst [vmem:[#allocation3 + $0xa8] sm:$0xff] %v1292
        %1309 = vst [vmem:[#allocation3 + $0xc8] sm:$0xff] %v1293
        %1310 = vst [vmem:[#allocation3 + $0xe8] sm:$0xff] %v1294
        %1311 = vst [vmem:[#allocation3 + $0x108] sm:$0xff] %v1295
        %1312 = vst [vmem:[#allocation3 + $0x128] sm:$0xff] %v1296
        %1313 = vst [vmem:[#allocation3 + $0x148] sm:$0xff] %v1297
        %1314 = vst [vmem:[#allocation3 + $0x168] sm:$0xff] %v1298
        %1315 = vst [vmem:[#allocation3 + $0x188] sm:$0xff] %v1299
        %1316 = vst [vmem:[#allocation3 + $0x1a8] sm:$0xff] %v1300
        %1317 = vst [vmem:[#allocation3 + $0x1c8] sm:$0xff] %v1301
        %1318 = vst [vmem:[#allocation3 + $0x1e8] sm:$0xff] %v1302
        %v1319 = vrot.slane %v1287, 7
        %v1320 = vrot.slane %v1288, 7
        %v1321 = vrot.slane %v1289, 7
        %v1322 = vrot.slane %v1290, 7
        %v1323 = vrot.slane %v1291, 7
        %v1324 = vrot.slane %v1292, 7
        %v1325 = vrot.slane %v1293, 7
        %v1326 = vrot.slane %v1294, 7
        %v1327 = vrot.slane %v1295, 7
        %v1328 = vrot.slane %v1296, 7
        %v1329 = vrot.slane %v1297, 7
        %v1330 = vrot.slane %v1298, 7
        %v1331 = vrot.slane %v1299, 7
        %v1332 = vrot.slane %v1300, 7
        %v1333 = vrot.slane %v1301, 7
        %v1334 = vrot.slane %v1302, 7
        %v1335 = vsel %vm684, %v1333, %v1334
        %v1336 = vsel %vm684, %v1332, %v1333
        %v1337 = vsel %vm684, %v1331, %v1332
        %v1338 = vsel %vm684, %v1330, %v1331
        %v1339 = vsel %vm684, %v1329, %v1330
        %v1340 = vsel %vm684, %v1328, %v1329
        %v1341 = vsel %vm684, %v1327, %v1328
        %v1342 = vsel %vm684, %v1326, %v1327
        %v1343 = vsel %vm684, %v1325, %v1326
        %v1344 = vsel %vm684, %v1324, %v1325
        %v1345 = vsel %vm684, %v1323, %v1324
        %v1346 = vsel %vm684, %v1322, %v1323
        %v1347 = vsel %vm684, %v1321, %v1322
        %v1348 = vsel %vm684, %v1320, %v1321
        %v1349 = vsel %vm684, %v1319, %v1320
        %v1350 = vsel %vm684, %v1334, %v1319
        %v1351 = vsel %vm717, 0.0, %v1350
        %v1352 = vsel %vm718, 0.0, %v1349
        %v1353 = vsel %vm719, 0.0, %v1348
        %v1354 = vsel %vm720, 0.0, %v1347
        %v1355 = vsel %vm721, 0.0, %v1346
        %v1356 = vsel %vm722, 0.0, %v1345
        %v1357 = vsel %vm723, 0.0, %v1344
        %v1358 = vsel %vm724, 0.0, %v1343
        %v1359 = vsel %vm725, 0.0, %v1342
        %v1360 = vsel %vm726, 0.0, %v1341
        %v1361 = vsel %vm727, 0.0, %v1340
        %v1362 = vsel %vm728, 0.0, %v1339
        %v1363 = vsel %vm729, 0.0, %v1338
        %v1364 = vsel %vm730, 0.0, %v1337
        %v1365 = vsel %vm731, 0.0, %v1336
        %v1366 = vsel %vm732, 0.0, %v1335
        %v1367 = vrot.slane %v1287, 1
        %v1368 = vrot.slane %v1288, 1
        %v1369 = vrot.slane %v1289, 1
        %v1370 = vrot.slane %v1290, 1
        %v1371 = vrot.slane %v1291, 1
        %v1372 = vrot.slane %v1292, 1
        %v1373 = vrot.slane %v1293, 1
        %v1374 = vrot.slane %v1294, 1
        %v1375 = vrot.slane %v1295, 1
        %v1376 = vrot.slane %v1296, 1
        %v1377 = vrot.slane %v1297, 1
        %v1378 = vrot.slane %v1298, 1
        %v1379 = vrot.slane %v1299, 1
        %v1380 = vrot.slane %v1300, 1
        %v1381 = vrot.slane %v1301, 1
        %v1382 = vrot.slane %v1302, 1
        %v1383 = vsel %vm781, %v1381, %v1382
        %v1384 = vsel %vm781, %v1380, %v1381
        %v1385 = vsel %vm781, %v1379, %v1380
        %v1386 = vsel %vm781, %v1378, %v1379
        %v1387 = vsel %vm781, %v1377, %v1378
        %v1388 = vsel %vm781, %v1376, %v1377
        %v1389 = vsel %vm781, %v1375, %v1376
        %v1390 = vsel %vm781, %v1374, %v1375
        %v1391 = vsel %vm781, %v1373, %v1374
        %v1392 = vsel %vm781, %v1372, %v1373
        %v1393 = vsel %vm781, %v1371, %v1372
        %v1394 = vsel %vm781, %v1370, %v1371
        %v1395 = vsel %vm781, %v1369, %v1370
        %v1396 = vsel %vm781, %v1368, %v1369
        %v1397 = vsel %vm781, %v1367, %v1368
        %v1398 = vsel %vm781, %v1382, %v1367
        %v1399 = vsel %vm814, 0.0, %v1397
        %v1400 = vsel %vm815, 0.0, %v1396
        %v1401 = vsel %vm816, 0.0, %v1395
        %v1402 = vsel %vm817, 0.0, %v1394
        %v1403 = vsel %vm818, 0.0, %v1393
        %v1404 = vsel %vm819, 0.0, %v1392
        %v1405 = vsel %vm820, 0.0, %v1391
        %v1406 = vsel %vm821, 0.0, %v1390
        %v1407 = vsel %vm822, 0.0, %v1389
        %v1408 = vsel %vm823, 0.0, %v1388
        %v1409 = vsel %vm824, 0.0, %v1387
        %v1410 = vsel %vm825, 0.0, %v1386
        %v1411 = vsel %vm826, 0.0, %v1385
        %v1412 = vsel %vm827, 0.0, %v1384
        %v1413 = vsel %vm828, 0.0, %v1383
        %v1414 = vsel %vm829, 0.0, %v1398
        %1415 = vst [vmem:[#allocation2 + $0x18] sm:$0xff] %v1351
        %1416 = vst [vmem:[#allocation2 + $0x20] sm:$0xff] %v1287
        %1417 = vst [vmem:[#allocation2 + $0x28] sm:$0xff] %v1399
        %1418 = vst [vmem:[#allocation2 + $0x60] sm:$0xff] %v1352
        %1419 = vst [vmem:[#allocation2 + $0x68] sm:$0xff] %v1288
        %1420 = vst [vmem:[#allocation2 + $0x70] sm:$0xff] %v1400
        %1421 = vst [vmem:[#allocation2 + $0xa8] sm:$0xff] %v1353
        %1422 = vst [vmem:[#allocation2 + $0xb0] sm:$0xff] %v1289
        %1423 = vst [vmem:[#allocation2 + $0xb8] sm:$0xff] %v1401
        %1424 = vst [vmem:[#allocation2 + $0xf0] sm:$0xff] %v1354
        %1425 = vst [vmem:[#allocation2 + $0xf8] sm:$0xff] %v1290
        %1426 = vst [vmem:[#allocation2 + $0x100] sm:$0xff] %v1402
        %1427 = vst [vmem:[#allocation2 + $0x138] sm:$0xff] %v1355
        %1428 = vst [vmem:[#allocation2 + $0x140] sm:$0xff] %v1291
        %1429 = vst [vmem:[#allocation2 + $0x148] sm:$0xff] %v1403
        %1430 = vst [vmem:[#allocation2 + $0x180] sm:$0xff] %v1356
        %1431 = vst [vmem:[#allocation2 + $0x188] sm:$0xff] %v1292
        %1432 = vst [vmem:[#allocation2 + $0x190] sm:$0xff] %v1404
        %1433 = vst [vmem:[#allocation2 + $0x1c8] sm:$0xff] %v1357
        %1434 = vst [vmem:[#allocation2 + $0x1d0] sm:$0xff] %v1293
        %1435 = vst [vmem:[#allocation2 + $0x1d8] sm:$0xff] %v1405
        %1436 = vst [vmem:[#allocation2 + $0x210] sm:$0xff] %v1358
        %1437 = vst [vmem:[#allocation2 + $0x218] sm:$0xff] %v1294
        %1438 = vst [vmem:[#allocation2 + $0x220] sm:$0xff] %v1406
        %1439 = vst [vmem:[#allocation2 + $0x258] sm:$0xff] %v1359
        %1440 = vst [vmem:[#allocation2 + $0x260] sm:$0xff] %v1295
        %1441 = vst [vmem:[#allocation2 + $0x268] sm:$0xff] %v1407
        %1442 = vst [vmem:[#allocation2 + $0x2a0] sm:$0xff] %v1360
        %1443 = vst [vmem:[#allocation2 + $0x2a8] sm:$0xff] %v1296
        %1444 = vst [vmem:[#allocation2 + $0x2b0] sm:$0xff] %v1408
        %1445 = vst [vmem:[#allocation2 + $0x2e8] sm:$0xff] %v1361
        %1446 = vst [vmem:[#allocation2 + $0x2f0] sm:$0xff] %v1297
        %1447 = vst [vmem:[#allocation2 + $0x2f8] sm:$0xff] %v1409
        %1448 = vst [vmem:[#allocation2 + $0x330] sm:$0xff] %v1362
        %1449 = vst [vmem:[#allocation2 + $0x338] sm:$0xff] %v1298
        %1450 = vst [vmem:[#allocation2 + $0x340] sm:$0xff] %v1410
        %1451 = vst [vmem:[#allocation2 + $0x378] sm:$0xff] %v1363
        %1452 = vst [vmem:[#allocation2 + $0x380] sm:$0xff] %v1299
        %1453 = vst [vmem:[#allocation2 + $0x388] sm:$0xff] %v1411
        %1454 = vst [vmem:[#allocation2 + $0x3c0] sm:$0xff] %v1364
        %1455 = vst [vmem:[#allocation2 + $0x3c8] sm:$0xff] %v1300
        %1456 = vst [vmem:[#allocation2 + $0x3d0] sm:$0xff] %v1412
        %1457 = vst [vmem:[#allocation2 + $0x408] sm:$0xff] %v1365
        %1458 = vst [vmem:[#allocation2 + $0x410] sm:$0xff] %v1301
        %1459 = vst [vmem:[#allocation2 + $0x418] sm:$0xff] %v1413
        %1460 = vst [vmem:[#allocation2 + $0x450] sm:$0xff] %v1366
        %1461 = vst [vmem:[#allocation2 + $0x458] sm:$0xff] %v1302
        %1462 = vst [vmem:[#allocation2 + $0x460] sm:$0xff] %v1414
        %v1463 = vld [vmem:[#allocation2] sm:$0xff]
        %v1464 = vld [vmem:[#allocation2 + $0x8] sm:$0xff]
        %v1465 = vld [vmem:[#allocation2 + $0x10] sm:$0xff]
        %v1466 = vld [vmem:[#allocation2 + $0x18] sm:$0xff]
        %v1467 = vld [vmem:[#allocation2 + $0x20] sm:$0xff]
        %v1468 = vld [vmem:[#allocation2 + $0x28] sm:$0xff]
        %v1469 = vld [vmem:[#allocation2 + $0x48] sm:$0xff]
        %v1470 = vld [vmem:[#allocation2 + $0x50] sm:$0xff]
        %v1471 = vld [vmem:[#allocation2 + $0x58] sm:$0xff]
        %v1472 = vld [vmem:[#allocation2 + $0x60] sm:$0xff]
        %v1473 = vld [vmem:[#allocation2 + $0x68] sm:$0xff]
        %v1474 = vld [vmem:[#allocation2 + $0x70] sm:$0xff]
        %v1475 = vld [vmem:[#allocation2 + $0x90] sm:$0xff]
        %v1476 = vld [vmem:[#allocation2 + $0x98] sm:$0xff]
        %v1477 = vld [vmem:[#allocation2 + $0xa0] sm:$0xff]
        %v1478 = vld [vmem:[#allocation2 + $0xa8] sm:$0xff]
        %v1479 = vld [vmem:[#allocation2 + $0xb0] sm:$0xff]
        %v1480 = vld [vmem:[#allocation2 + $0xb8] sm:$0xff]
        %v1481 = vld [vmem:[#allocation2 + $0xd8] sm:$0xff]
        %v1482 = vld [vmem:[#allocation2 + $0xe0] sm:$0xff]
        %v1483 = vld [vmem:[#allocation2 + $0xe8] sm:$0xff]
        %v1484 = vld [vmem:[#allocation2 + $0xf0] sm:$0xff]
        %v1485 = vld [vmem:[#allocation2 + $0xf8] sm:$0xff]
        %v1486 = vld [vmem:[#allocation2 + $0x100] sm:$0xff]
        %v1487 = vld [vmem:[#allocation2 + $0x120] sm:$0xff]
        %v1488 = vld [vmem:[#allocation2 + $0x128] sm:$0xff]
        %v1489 = vld [vmem:[#allocation2 + $0x130] sm:$0xff]
        %v1490 = vld [vmem:[#allocation2 + $0x138] sm:$0xff]
        %v1491 = vld [vmem:[#allocation2 + $0x140] sm:$0xff]
        %v1492 = vld [vmem:[#allocation2 + $0x148] sm:$0xff]
        %v1493 = vld [vmem:[#allocation2 + $0x168] sm:$0xff]
        %v1494 = vld [vmem:[#allocation2 + $0x170] sm:$0xff]
        %v1495 = vld [vmem:[#allocation2 + $0x178] sm:$0xff]
        %v1496 = vld [vmem:[#allocation2 + $0x180] sm:$0xff]
        %v1497 = vld [vmem:[#allocation2 + $0x188] sm:$0xff]
        %v1498 = vld [vmem:[#allocation2 + $0x190] sm:$0xff]
        %v1499 = vld [vmem:[#allocation2 + $0x1b0] sm:$0xff]
        %v1500 = vld [vmem:[#allocation2 + $0x1b8] sm:$0xff]
        %v1501 = vld [vmem:[#allocation2 + $0x1c0] sm:$0xff]
        %v1502 = vld [vmem:[#allocation2 + $0x1c8] sm:$0xff]
        %v1503 = vld [vmem:[#allocation2 + $0x1d0] sm:$0xff]
        %v1504 = vld [vmem:[#allocation2 + $0x1d8] sm:$0xff]
        %v1505 = vld [vmem:[#allocation2 + $0x1f8] sm:$0xff]
        %v1506 = vld [vmem:[#allocation2 + $0x200] sm:$0xff]
        %v1507 = vld [vmem:[#allocation2 + $0x208] sm:$0xff]
        %v1508 = vld [vmem:[#allocation2 + $0x210] sm:$0xff]
        %v1509 = vld [vmem:[#allocation2 + $0x218] sm:$0xff]
        %v1510 = vld [vmem:[#allocation2 + $0x220] sm:$0xff]
        %v1511 = vld [vmem:[#allocation2 + $0x240] sm:$0xff]
        %v1512 = vld [vmem:[#allocation2 + $0x248] sm:$0xff]
        %v1513 = vld [vmem:[#allocation2 + $0x250] sm:$0xff]
        %v1514 = vld [vmem:[#allocation2 + $0x258] sm:$0xff]
        %v1515 = vld [vmem:[#allocation2 + $0x260] sm:$0xff]
        %v1516 = vld [vmem:[#allocation2 + $0x268] sm:$0xff]
        %v1517 = vld [vmem:[#allocation2 + $0x288] sm:$0xff]
        %v1518 = vld [vmem:[#allocation2 + $0x290] sm:$0xff]
        %v1519 = vld [vmem:[#allocation2 + $0x298] sm:$0xff]
        %v1520 = vld [vmem:[#allocation2 + $0x2a0] sm:$0xff]
        %v1521 = vld [vmem:[#allocation2 + $0x2a8] sm:$0xff]
        %v1522 = vld [vmem:[#allocation2 + $0x2b0] sm:$0xff]
        %v1523 = vld [vmem:[#allocation2 + $0x2d0] sm:$0xff]
        %v1524 = vld [vmem:[#allocation2 + $0x2d8] sm:$0xff]
        %v1525 = vld [vmem:[#allocation2 + $0x2e0] sm:$0xff]
        %v1526 = vld [vmem:[#allocation2 + $0x2e8] sm:$0xff]
        %v1527 = vld [vmem:[#allocation2 + $0x2f0] sm:$0xff]
        %v1528 = vld [vmem:[#allocation2 + $0x2f8] sm:$0xff]
        %v1529 = vld [vmem:[#allocation2 + $0x318] sm:$0xff]
        %v1530 = vld [vmem:[#allocation2 + $0x320] sm:$0xff]
        %v1531 = vld [vmem:[#allocation2 + $0x328] sm:$0xff]
        %v1532 = vld [vmem:[#allocation2 + $0x330] sm:$0xff]
        %v1533 = vld [vmem:[#allocation2 + $0x338] sm:$0xff]
        %v1534 = vld [vmem:[#allocation2 + $0x340] sm:$0xff]
        %v1535 = vld [vmem:[#allocation2 + $0x360] sm:$0xff]
        %v1536 = vld [vmem:[#allocation2 + $0x368] sm:$0xff]
        %v1537 = vld [vmem:[#allocation2 + $0x370] sm:$0xff]
        %v1538 = vld [vmem:[#allocation2 + $0x378] sm:$0xff]
        %v1539 = vld [vmem:[#allocation2 + $0x380] sm:$0xff]
        %v1540 = vld [vmem:[#allocation2 + $0x388] sm:$0xff]
        %v1541 = vld [vmem:[#allocation2 + $0x3a8] sm:$0xff]
        %v1542 = vld [vmem:[#allocation2 + $0x3b0] sm:$0xff]
        %v1543 = vld [vmem:[#allocation2 + $0x3b8] sm:$0xff]
        %v1544 = vld [vmem:[#allocation2 + $0x3c0] sm:$0xff]
        %v1545 = vld [vmem:[#allocation2 + $0x3c8] sm:$0xff]
        %v1546 = vld [vmem:[#allocation2 + $0x3d0] sm:$0xff]
        %v1547 = vld [vmem:[#allocation2 + $0x3f0] sm:$0xff]
        %v1548 = vld [vmem:[#allocation2 + $0x3f8] sm:$0xff]
        %v1549 = vld [vmem:[#allocation2 + $0x400] sm:$0xff]
        %v1550 = vld [vmem:[#allocation2 + $0x408] sm:$0xff]
        %v1551 = vld [vmem:[#allocation2 + $0x410] sm:$0xff]
        %v1552 = vld [vmem:[#allocation2 + $0x418] sm:$0xff]
        %v1553 = vld [vmem:[#allocation2 + $0x438] sm:$0xff]
        %v1554 = vld [vmem:[#allocation2 + $0x440] sm:$0xff]
        %v1555 = vld [vmem:[#allocation2 + $0x448] sm:$0xff]
        %v1556 = vld [vmem:[#allocation2 + $0x450] sm:$0xff]
        %v1557 = vld [vmem:[#allocation2 + $0x458] sm:$0xff]
        %v1558 = vld [vmem:[#allocation2 + $0x460] sm:$0xff]
        %v1559 = vld [vmem:[#allocation9] sm:$0xff]
        %v1560 = vld [vmem:[#allocation9 + $0x8] sm:$0xff]
        %v1561 = vld [vmem:[#allocation9 + $0x10] sm:$0xff]
        %v1562 = vld [vmem:[#allocation9 + $0x18] sm:$0xff]
        %v1563 = vld [vmem:[#allocation9 + $0x20] sm:$0xff]
        %v1564 = vld [vmem:[#allocation9 + $0x28] sm:$0xff]
        %v1565 = vld [vmem:[#allocation9 + $0x30] sm:$0xff]
        %v1566 = vld [vmem:[#allocation9 + $0x38] sm:$0xff]
        %v1567 = vld [vmem:[#allocation9 + $0x40] sm:$0xff]
        %v1568 = vld [vmem:[#allocation9 + $0x48] sm:$0xff]
        %v1569 = vld [vmem:[#allocation9 + $0x50] sm:$0xff]
        %v1570 = vld [vmem:[#allocation9 + $0x58] sm:$0xff]
        %v1571 = vld [vmem:[#allocation9 + $0x60] sm:$0xff]
        %v1572 = vld [vmem:[#allocation9 + $0x68] sm:$0xff]
        %v1573 = vld [vmem:[#allocation9 + $0x70] sm:$0xff]
        %v1574 = vld [vmem:[#allocation9 + $0x78] sm:$0xff]
        %v1575 = vld [vmem:[#allocation9 + $0x80] sm:$0xff]
        %v1576 = vld [vmem:[#allocation9 + $0x88] sm:$0xff]
        %v1577 = vld [vmem:[#allocation9 + $0x90] sm:$0xff]
        %v1578 = vld [vmem:[#allocation9 + $0x98] sm:$0xff]
        %v1579 = vld [vmem:[#allocation9 + $0xa0] sm:$0xff]
        %v1580 = vld [vmem:[#allocation9 + $0xa8] sm:$0xff]
        %v1581 = vld [vmem:[#allocation9 + $0xb0] sm:$0xff]
        %v1582 = vld [vmem:[#allocation9 + $0xb8] sm:$0xff]
        %v1583 = vld [vmem:[#allocation9 + $0xc0] sm:$0xff]
        %v1584 = vld [vmem:[#allocation9 + $0xc8] sm:$0xff]
        %v1585 = vld [vmem:[#allocation9 + $0xd0] sm:$0xff]
        %v1586 = vld [vmem:[#allocation9 + $0xd8] sm:$0xff]
        %v1587 = vld [vmem:[#allocation9 + $0xe0] sm:$0xff]
        %v1588 = vld [vmem:[#allocation9 + $0xe8] sm:$0xff]
        %v1589 = vld [vmem:[#allocation9 + $0xf0] sm:$0xff]
        %v1590 = vld [vmem:[#allocation9 + $0xf8] sm:$0xff]
        %v1591 = vld [vmem:[#allocation9 + $0x100] sm:$0xff]
        %v1592 = vld [vmem:[#allocation9 + $0x108] sm:$0xff]
        %v1593 = vld [vmem:[#allocation9 + $0x110] sm:$0xff]
        %v1594 = vld [vmem:[#allocation9 + $0x118] sm:$0xff]
        %v1595 = vld [vmem:[#allocation9 + $0x120] sm:$0xff]
        %v1596 = vld [vmem:[#allocation9 + $0x128] sm:$0xff]
        %v1597 = vld [vmem:[#allocation9 + $0x130] sm:$0xff]
        %v1598 = vld [vmem:[#allocation9 + $0x138] sm:$0xff]
        %v1599 = vld [vmem:[#allocation9 + $0x140] sm:$0xff]
        %v1600 = vld [vmem:[#allocation9 + $0x148] sm:$0xff]
        %v1601 = vld [vmem:[#allocation9 + $0x150] sm:$0xff]
        %v1602 = vld [vmem:[#allocation9 + $0x158] sm:$0xff]
        %v1603 = vld [vmem:[#allocation9 + $0x160] sm:$0xff]
        %v1604 = vld [vmem:[#allocation9 + $0x168] sm:$0xff]
        %v1605 = vld [vmem:[#allocation9 + $0x170] sm:$0xff]
        %v1606 = vld [vmem:[#allocation9 + $0x178] sm:$0xff]
        %v1607 = vld [vmem:[#allocation9 + $0x180] sm:$0xff]
        %v1608 = vld [vmem:[#allocation9 + $0x188] sm:$0xff]
        %v1609 = vld [vmem:[#allocation9 + $0x190] sm:$0xff]
        %v1610 = vld [vmem:[#allocation9 + $0x198] sm:$0xff]
        %v1611 = vld [vmem:[#allocation9 + $0x1a0] sm:$0xff]
        %v1612 = vld [vmem:[#allocation9 + $0x1a8] sm:$0xff]
        %v1613 = vld [vmem:[#allocation9 + $0x1b0] sm:$0xff]
        %v1614 = vld [vmem:[#allocation9 + $0x1b8] sm:$0xff]
        %v1615 = vld [vmem:[#allocation9 + $0x1c0] sm:$0xff]
        %v1616 = vld [vmem:[#allocation9 + $0x1c8] sm:$0xff]
        %v1617 = vld [vmem:[#allocation9 + $0x1d0] sm:$0xff]
        %v1618 = vld [vmem:[#allocation9 + $0x1d8] sm:$0xff]
        %v1619 = vld [vmem:[#allocation9 + $0x1e0] sm:$0xff]
        %v1620 = vld [vmem:[#allocation9 + $0x1e8] sm:$0xff]
        %v1621 = vld [vmem:[#allocation9 + $0x1f0] sm:$0xff]
        %v1622 = vld [vmem:[#allocation9 + $0x1f8] sm:$0xff]
        %v1623 = vld [vmem:[#allocation9 + $0x200] sm:$0xff]
        %v1624 = vld [vmem:[#allocation9 + $0x208] sm:$0xff]
        %v1625 = vld [vmem:[#allocation9 + $0x210] sm:$0xff]
        %v1626 = vld [vmem:[#allocation9 + $0x218] sm:$0xff]
        %v1627 = vld [vmem:[#allocation9 + $0x220] sm:$0xff]
        %v1628 = vld [vmem:[#allocation9 + $0x228] sm:$0xff]
        %v1629 = vld [vmem:[#allocation9 + $0x230] sm:$0xff]
        %v1630 = vld [vmem:[#allocation9 + $0x238] sm:$0xff]
        %v1631 = vld [vmem:[#allocation9 + $0x240] sm:$0xff]
        %v1632 = vld [vmem:[#allocation9 + $0x248] sm:$0xff]
        %v1633 = vld [vmem:[#allocation9 + $0x250] sm:$0xff]
        %v1634 = vld [vmem:[#allocation9 + $0x258] sm:$0xff]
        %v1635 = vld [vmem:[#allocation9 + $0x260] sm:$0xff]
        %v1636 = vld [vmem:[#allocation9 + $0x268] sm:$0xff]
        %v1637 = vld [vmem:[#allocation9 + $0x270] sm:$0xff]
        %v1638 = vld [vmem:[#allocation9 + $0x278] sm:$0xff]
        %v1639 = vld [vmem:[#allocation9 + $0x280] sm:$0xff]
        %v1640 = vld [vmem:[#allocation9 + $0x288] sm:$0xff]
        %v1641 = vld [vmem:[#allocation9 + $0x290] sm:$0xff]
        %v1642 = vld [vmem:[#allocation9 + $0x298] sm:$0xff]
        %v1643 = vld [vmem:[#allocation9 + $0x2a0] sm:$0xff]
        %v1644 = vld [vmem:[#allocation9 + $0x2a8] sm:$0xff]
        %v1645 = vld [vmem:[#allocation9 + $0x2b0] sm:$0xff]
        %v1646 = vld [vmem:[#allocation9 + $0x2b8] sm:$0xff]
        %v1647 = vld [vmem:[#allocation9 + $0x2c0] sm:$0xff]
        %v1648 = vld [vmem:[#allocation9 + $0x2c8] sm:$0xff]
        %v1649 = vld [vmem:[#allocation9 + $0x2d0] sm:$0xff]
        %v1650 = vld [vmem:[#allocation9 + $0x2d8] sm:$0xff]
        %v1651 = vld [vmem:[#allocation9 + $0x2e0] sm:$0xff]
        %v1652 = vld [vmem:[#allocation9 + $0x2e8] sm:$0xff]
        %v1653 = vld [vmem:[#allocation9 + $0x2f0] sm:$0xff]
        %v1654 = vld [vmem:[#allocation9 + $0x2f8] sm:$0xff]
        %v1655 = vld [vmem:[%s5] sm:$0x1]
        %v1657 = vlaneseq
        %v1658 = vshrl.u32 %v1657, 7
        %v1659 = vsub.s32 0, %v1658
        %v1660 = vrot.slane %v1655, %v1659
        %1662 = vmatprep.subr.mxu0 0.0
        %1663 = vmatpush1.msra.mxu0 %v1559
        %1664 = vmatprep.subr.mxu0 0.0
        %1665 = vmatpush1.msra.mxu0 %v1560
        %1666 = vmatprep.subr.mxu0 0.0
        %1667 = vmatpush1.msra.mxu0 %v1561
        %1668 = vmatprep.subr.mxu0 0.0
        %1669 = vmatpush1.msra.mxu0 %v1562
        %1670 = vmatprep.subr.mxu0 0.0
        %1671 = vmatpush1.msra.mxu0 %v1563
        %1672 = vmatprep.subr.mxu0 0.0
        %1673 = vmatpush1.msra.mxu0 %v1564
        %1674 = vmatprep.subr.mxu0 0.0
        %1675 = vmatpush1.msra.mxu0 %v1565
        %1676 = vmatprep.subr.mxu0 0.0
        %1677 = vmatpush1.msra.mxu0 %v1566
        %1678 = vmatprep.subr.mxu0 0.0
        %1679 = vmatpush1.msra.mxu0 %v1567
        %1680 = vmatprep.subr.mxu0 0.0
        %1681 = vmatpush1.msra.mxu0 %v1568
        %1682 = vmatprep.subr.mxu0 0.0
        %1683 = vmatpush1.msra.mxu0 %v1569
        %1684 = vmatprep.subr.mxu0 0.0
        %1685 = vmatpush1.msra.mxu0 %v1570
        %1686 = vmatprep.subr.mxu0 0.0
        %1687 = vmatpush1.msra.mxu0 %v1571
        %1688 = vmatprep.subr.mxu0 0.0
        %1689 = vmatpush1.msra.mxu0 %v1572
        %1690 = vmatprep.subr.mxu0 0.0
        %1691 = vmatpush1.msra.mxu0 %v1573
        %1692 = vmatprep.subr.mxu0 0.0
        %1693 = vmatpush1.msra.mxu0 %v1574
        %1694 = vmatprep.subr.mxu0 0.0
        %1695 = vmatpush1.msra.mxu0 %v1575
        %1696 = vmatprep.subr.mxu0 0.0
        %1697 = vmatpush1.msra.mxu0 %v1576
        %1698 = vmatprep.subr.mxu0 0.0
        %1699 = vmatpush1.msra.mxu0 %v1577
        %1700 = vmatprep.subr.mxu0 0.0
        %1701 = vmatpush1.msra.mxu0 %v1578
        %1702 = vmatprep.subr.mxu0 0.0
        %1703 = vmatpush1.msra.mxu0 %v1579
        %1704 = vmatprep.subr.mxu0 0.0
        %1705 = vmatpush1.msra.mxu0 %v1580
        %1706 = vmatprep.subr.mxu0 0.0
        %1707 = vmatpush1.msra.mxu0 %v1581
        %1708 = vmatprep.subr.mxu0 0.0
        %1709 = vmatpush1.msra.mxu0 %v1582
        %1710 = vmatprep.subr.mxu0 0.0
        %1711 = vmatpush1.msra.mxu0 %v1583
        %1712 = vmatprep.subr.mxu0 0.0
        %1713 = vmatpush1.msra.mxu0 %v1584
        %1714 = vmatprep.subr.mxu0 0.0
        %1715 = vmatpush1.msra.mxu0 %v1585
        %1716 = vmatprep.subr.mxu0 0.0
        %1717 = vmatpush1.msra.mxu0 %v1586
        %1718 = vmatprep.subr.mxu0 0.0
        %1719 = vmatpush1.msra.mxu0 %v1587
        %1720 = vmatprep.subr.mxu0 0.0
        %1721 = vmatpush1.msra.mxu0 %v1588
        %1722 = vmatprep.subr.mxu0 0.0
        %1723 = vmatpush1.msra.mxu0 %v1589
        %1724 = vmatprep.subr.mxu0 0.0
        %1725 = vmatpush1.msra.mxu0 %v1590
        %1726 = vmatprep.mubr.f32.mxu0 %v1464
        %1727 = vmatmul.mubr.f32.gmra.mrb[0].mxu0 %v1463
        %v1728 = vpop.f32.mrb[0].mxu0
        %v1729 = vadd.f32 %v1660, %v1728
        %v1730 = vpop.f32.mrb[0].mxu0
        %1731 = vmatprep.mubr.f32.mxu0 %v1470
        %1732 = vmatmul.mubr.f32.gmra.mrb[0].mxu0 %v1469
        %v1733 = vpop.f32.mrb[0].mxu0
        %v1734 = vadd.f32 %v1660, %v1733
        %v1735 = vpop.f32.mrb[0].mxu0
        %1736 = vmatprep.mubr.f32.mxu0 %v1476
        %1737 = vmatmul.mubr.f32.gmra.mrb[0].mxu0 %v1475
        %v1738 = vpop.f32.mrb[0].mxu0
        %v1739 = vadd.f32 %v1660, %v1738
        %v1740 = vpop.f32.mrb[0].mxu0
        %1741 = vmatprep.mubr.f32.mxu0 %v1482
        %1742 = vmatmul.mubr.f32.gmra.mrb[0].mxu0 %v1481
        %v1743 = vpop.f32.mrb[0].mxu0
        %v1744 = vadd.f32 %v1660, %v1743
        %v1745 = vpop.f32.mrb[0].mxu0
        %1746 = vmatprep.mubr.f32.mxu0 %v1488
        %1747 = vmatmul.mubr.f32.gmra.mrb[0].mxu0 %v1487
        %v1748 = vpop.f32.mrb[0].mxu0
        %v1749 = vadd.f32 %v1660, %v1748
        %v1750 = vpop.f32.mrb[0].mxu0
        %1751 = vmatprep.mubr.f32.mxu0 %v1494
        %1752 = vmatmul.mubr.f32.gmra.mrb[0].mxu0 %v1493
        %v1753 = vpop.f32.mrb[0].mxu0
        %v1754 = vadd.f32 %v1660, %v1753
        %v1755 = vpop.f32.mrb[0].mxu0
        %1756 = vmatprep.mubr.f32.mxu0 %v1500
        %1757 = vmatmul.mubr.f32.gmra.mrb[0].mxu0 %v1499
        %v1758 = vpop.f32.mrb[0].mxu0
        %v1759 = vadd.f32 %v1660, %v1758
        %v1760 = vpop.f32.mrb[0].mxu0
        %1761 = vmatprep.mubr.f32.mxu0 %v1506
        %1762 = vmatmul.mubr.f32.gmra.mrb[0].mxu0 %v1505
        %v1763 = vpop.f32.mrb[0].mxu0
        %v1764 = vadd.f32 %v1660, %v1763
        %v1765 = vpop.f32.mrb[0].mxu0
        %1766 = vmatprep.mubr.f32.mxu0 %v1512
        %1767 = vmatmul.mubr.f32.gmra.mrb[0].mxu0 %v1511
        %v1768 = vpop.f32.mrb[0].mxu0
        %v1769 = vadd.f32 %v1660, %v1768
        %v1770 = vpop.f32.mrb[0].mxu0
        %1771 = vmatprep.mubr.f32.mxu0 %v1518
        %1772 = vmatmul.mubr.f32.gmra.mrb[0].mxu0 %v1517
        %v1773 = vpop.f32.mrb[0].mxu0
        %v1774 = vadd.f32 %v1660, %v1773
        %v1775 = vpop.f32.mrb[0].mxu0
        %1776 = vmatprep.mubr.f32.mxu0 %v1524
        %1777 = vmatmul.mubr.f32.gmra.mrb[0].mxu0 %v1523
        %v1778 = vpop.f32.mrb[0].mxu0
        %v1779 = vadd.f32 %v1660, %v1778
        %v1780 = vpop.f32.mrb[0].mxu0
        %1781 = vmatprep.mubr.f32.mxu0 %v1530
        %1782 = vmatmul.mubr.f32.gmra.mrb[0].mxu0 %v1529
        %v1783 = vpop.f32.mrb[0].mxu0
        %v1784 = vadd.f32 %v1660, %v1783
        %v1785 = vpop.f32.mrb[0].mxu0
        %1786 = vmatprep.mubr.f32.mxu0 %v1536
        %1787 = vmatmul.mubr.f32.gmra.mrb[0].mxu0 %v1535
        %v1788 = vpop.f32.mrb[0].mxu0
        %v1789 = vadd.f32 %v1660, %v1788
        %v1790 = vpop.f32.mrb[0].mxu0
        %1791 = vmatprep.mubr.f32.mxu0 %v1542
        %1792 = vmatmul.mubr.f32.gmra.mrb[0].mxu0 %v1541
        %v1793 = vpop.f32.mrb[0].mxu0
        %v1794 = vadd.f32 %v1660, %v1793
        %v1795 = vpop.f32.mrb[0].mxu0
        %1796 = vmatprep.mubr.f32.mxu0 %v1548
        %1797 = vmatmul.mubr.f32.gmra.mrb[0].mxu0 %v1547
        %v1798 = vpop.f32.mrb[0].mxu0
        %v1799 = vadd.f32 %v1660, %v1798
        %v1800 = vpop.f32.mrb[0].mxu0
        %1801 = vmatprep.mubr.f32.mxu0 %v1554
        %1802 = vmatmul.mubr.f32.gmra.mrb[0].mxu0 %v1553
        %v1803 = vpop.f32.mrb[0].mxu0
        %v1804 = vadd.f32 %v1660, %v1803
        %v1805 = vpop.f32.mrb[0].mxu0
        %1806 = vdwg.mxu0
        %1807 = vmatprep.subr.mxu0 0.0
        %1808 = vmatpush1.msra.mxu0 %v1591
        %1809 = vmatprep.subr.mxu0 0.0
        %1810 = vmatpush1.msra.mxu0 %v1592
        %1811 = vmatprep.subr.mxu0 0.0
        %1812 = vmatpush1.msra.mxu0 %v1593
        %1813 = vmatprep.subr.mxu0 0.0
        %1814 = vmatpush1.msra.mxu0 %v1594
        %1815 = vmatprep.subr.mxu0 0.0
        %1816 = vmatpush1.msra.mxu0 %v1595
        %1817 = vmatprep.subr.mxu0 0.0
        %1818 = vmatpush1.msra.mxu0 %v1596
        %1819 = vmatprep.subr.mxu0 0.0
        %1820 = vmatpush1.msra.mxu0 %v1597
        %1821 = vmatprep.subr.mxu0 0.0
        %1822 = vmatpush1.msra.mxu0 %v1598
        %1823 = vmatprep.subr.mxu0 0.0
        %1824 = vmatpush1.msra.mxu0 %v1599
        %1825 = vmatprep.subr.mxu0 0.0
        %1826 = vmatpush1.msra.mxu0 %v1600
        %1827 = vmatprep.subr.mxu0 0.0
        %1828 = vmatpush1.msra.mxu0 %v1601
        %1829 = vmatprep.subr.mxu0 0.0
        %1830 = vmatpush1.msra.mxu0 %v1602
        %1831 = vmatprep.subr.mxu0 0.0
        %1832 = vmatpush1.msra.mxu0 %v1603
        %1833 = vmatprep.subr.mxu0 0.0
        %1834 = vmatpush1.msra.mxu0 %v1604
        %1835 = vmatprep.subr.mxu0 0.0
        %1836 = vmatpush1.msra.mxu0 %v1605
        %1837 = vmatprep.subr.mxu0 0.0
        %1838 = vmatpush1.msra.mxu0 %v1606
        %1839 = vmatprep.subr.mxu0 0.0
        %1840 = vmatpush1.msra.mxu0 %v1607
        %1841 = vmatprep.subr.mxu0 0.0
        %1842 = vmatpush1.msra.mxu0 %v1608
        %1843 = vmatprep.subr.mxu0 0.0
        %1844 = vmatpush1.msra.mxu0 %v1609
        %1845 = vmatprep.subr.mxu0 0.0
        %1846 = vmatpush1.msra.mxu0 %v1610
        %1847 = vmatprep.subr.mxu0 0.0
        %1848 = vmatpush1.msra.mxu0 %v1611
        %1849 = vmatprep.subr.mxu0 0.0
        %1850 = vmatpush1.msra.mxu0 %v1612
        %1851 = vmatprep.subr.mxu0 0.0
        %1852 = vmatpush1.msra.mxu0 %v1613
        %1853 = vmatprep.subr.mxu0 0.0
        %1854 = vmatpush1.msra.mxu0 %v1614
        %1855 = vmatprep.subr.mxu0 0.0
        %1856 = vmatpush1.msra.mxu0 %v1615
        %1857 = vmatprep.subr.mxu0 0.0
        %1858 = vmatpush1.msra.mxu0 %v1616
        %1859 = vmatprep.subr.mxu0 0.0
        %1860 = vmatpush1.msra.mxu0 %v1617
        %1861 = vmatprep.subr.mxu0 0.0
        %1862 = vmatpush1.msra.mxu0 %v1618
        %1863 = vmatprep.subr.mxu0 0.0
        %1864 = vmatpush1.msra.mxu0 %v1619
        %1865 = vmatprep.subr.mxu0 0.0
        %1866 = vmatpush1.msra.mxu0 %v1620
        %1867 = vmatprep.subr.mxu0 0.0
        %1868 = vmatpush1.msra.mxu0 %v1621
        %1869 = vmatprep.subr.mxu0 0.0
        %1870 = vmatpush1.msra.mxu0 %v1622
        %1871 = vmatprep.mubr.f32.mxu0 %v1466
        %1872 = vmatmul.mubr.f32.gmra.mrb[0].mxu0 %v1465
        %v1873 = vpop.f32.mrb[0].mxu0
        %v1874 = vadd.f32 %v1729, %v1873
        %v1875 = vpop.f32.mrb[0].mxu0
        %1876 = vmatprep.mubr.f32.mxu0 %v1472
        %1877 = vmatmul.mubr.f32.gmra.mrb[0].mxu0 %v1471
        %v1878 = vpop.f32.mrb[0].mxu0
        %v1879 = vadd.f32 %v1734, %v1878
        %v1880 = vpop.f32.mrb[0].mxu0
        %1881 = vmatprep.mubr.f32.mxu0 %v1478
        %1882 = vmatmul.mubr.f32.gmra.mrb[0].mxu0 %v1477
        %v1883 = vpop.f32.mrb[0].mxu0
        %v1884 = vadd.f32 %v1739, %v1883
        %v1885 = vpop.f32.mrb[0].mxu0
        %1886 = vmatprep.mubr.f32.mxu0 %v1484
        %1887 = vmatmul.mubr.f32.gmra.mrb[0].mxu0 %v1483
        %v1888 = vpop.f32.mrb[0].mxu0
        %v1889 = vadd.f32 %v1744, %v1888
        %v1890 = vpop.f32.mrb[0].mxu0
        %1891 = vmatprep.mubr.f32.mxu0 %v1490
        %1892 = vmatmul.mubr.f32.gmra.mrb[0].mxu0 %v1489
        %v1893 = vpop.f32.mrb[0].mxu0
        %v1894 = vadd.f32 %v1749, %v1893
        %v1895 = vpop.f32.mrb[0].mxu0
        %1896 = vmatprep.mubr.f32.mxu0 %v1496
        %1897 = vmatmul.mubr.f32.gmra.mrb[0].mxu0 %v1495
        %v1898 = vpop.f32.mrb[0].mxu0
        %v1899 = vadd.f32 %v1754, %v1898
        %v1900 = vpop.f32.mrb[0].mxu0
        %1901 = vmatprep.mubr.f32.mxu0 %v1502
        %1902 = vmatmul.mubr.f32.gmra.mrb[0].mxu0 %v1501
        %v1903 = vpop.f32.mrb[0].mxu0
        %v1904 = vadd.f32 %v1759, %v1903
        %v1905 = vpop.f32.mrb[0].mxu0
        %1906 = vmatprep.mubr.f32.mxu0 %v1508
        %1907 = vmatmul.mubr.f32.gmra.mrb[0].mxu0 %v1507
        %v1908 = vpop.f32.mrb[0].mxu0
        %v1909 = vadd.f32 %v1764, %v1908
        %v1910 = vpop.f32.mrb[0].mxu0
        %1911 = vmatprep.mubr.f32.mxu0 %v1514
        %1912 = vmatmul.mubr.f32.gmra.mrb[0].mxu0 %v1513
        %v1913 = vpop.f32.mrb[0].mxu0
        %v1914 = vadd.f32 %v1769, %v1913
        %v1915 = vpop.f32.mrb[0].mxu0
        %1916 = vmatprep.mubr.f32.mxu0 %v1520
        %1917 = vmatmul.mubr.f32.gmra.mrb[0].mxu0 %v1519
        %v1918 = vpop.f32.mrb[0].mxu0
        %v1919 = vadd.f32 %v1774, %v1918
        %v1920 = vpop.f32.mrb[0].mxu0
        %1921 = vmatprep.mubr.f32.mxu0 %v1526
        %1922 = vmatmul.mubr.f32.gmra.mrb[0].mxu0 %v1525
        %v1923 = vpop.f32.mrb[0].mxu0
        %v1924 = vadd.f32 %v1779, %v1923
        %v1925 = vpop.f32.mrb[0].mxu0
        %1926 = vmatprep.mubr.f32.mxu0 %v1532
        %1927 = vmatmul.mubr.f32.gmra.mrb[0].mxu0 %v1531
        %v1928 = vpop.f32.mrb[0].mxu0
        %v1929 = vadd.f32 %v1784, %v1928
        %v1930 = vpop.f32.mrb[0].mxu0
        %1931 = vmatprep.mubr.f32.mxu0 %v1538
        %1932 = vmatmul.mubr.f32.gmra.mrb[0].mxu0 %v1537
        %v1933 = vpop.f32.mrb[0].mxu0
        %v1934 = vadd.f32 %v1789, %v1933
        %v1935 = vpop.f32.mrb[0].mxu0
        %1936 = vmatprep.mubr.f32.mxu0 %v1544
        %1937 = vmatmul.mubr.f32.gmra.mrb[0].mxu0 %v1543
        %v1938 = vpop.f32.mrb[0].mxu0
        %v1939 = vadd.f32 %v1794, %v1938
        %v1940 = vpop.f32.mrb[0].mxu0
        %1941 = vmatprep.mubr.f32.mxu0 %v1550
        %1942 = vmatmul.mubr.f32.gmra.mrb[0].mxu0 %v1549
        %v1943 = vpop.f32.mrb[0].mxu0
        %v1944 = vadd.f32 %v1799, %v1943
        %v1945 = vpop.f32.mrb[0].mxu0
        %1946 = vmatprep.mubr.f32.mxu0 %v1556
        %1947 = vmatmul.mubr.f32.gmra.mrb[0].mxu0 %v1555
        %v1948 = vpop.f32.mrb[0].mxu0
        %v1949 = vadd.f32 %v1804, %v1948
        %v1950 = vpop.f32.mrb[0].mxu0
        %1951 = vdwg.mxu0
        %1952 = vmatprep.subr.mxu0 0.0
        %1953 = vmatpush1.msra.mxu0 %v1623
        %1954 = vmatprep.subr.mxu0 0.0
        %1955 = vmatpush1.msra.mxu0 %v1624
        %1956 = vmatprep.subr.mxu0 0.0
        %1957 = vmatpush1.msra.mxu0 %v1625
        %1958 = vmatprep.subr.mxu0 0.0
        %1959 = vmatpush1.msra.mxu0 %v1626
        %1960 = vmatprep.subr.mxu0 0.0
        %1961 = vmatpush1.msra.mxu0 %v1627
        %1962 = vmatprep.subr.mxu0 0.0
        %1963 = vmatpush1.msra.mxu0 %v1628
        %1964 = vmatprep.subr.mxu0 0.0
        %1965 = vmatpush1.msra.mxu0 %v1629
        %1966 = vmatprep.subr.mxu0 0.0
        %1967 = vmatpush1.msra.mxu0 %v1630
        %1968 = vmatprep.subr.mxu0 0.0
        %1969 = vmatpush1.msra.mxu0 %v1631
        %1970 = vmatprep.subr.mxu0 0.0
        %1971 = vmatpush1.msra.mxu0 %v1632
        %1972 = vmatprep.subr.mxu0 0.0
        %1973 = vmatpush1.msra.mxu0 %v1633
        %1974 = vmatprep.subr.mxu0 0.0
        %1975 = vmatpush1.msra.mxu0 %v1634
        %1976 = vmatprep.subr.mxu0 0.0
        %1977 = vmatpush1.msra.mxu0 %v1635
        %1978 = vmatprep.subr.mxu0 0.0
        %1979 = vmatpush1.msra.mxu0 %v1636
        %1980 = vmatprep.subr.mxu0 0.0
        %1981 = vmatpush1.msra.mxu0 %v1637
        %1982 = vmatprep.subr.mxu0 0.0
        %1983 = vmatpush1.msra.mxu0 %v1638
        %1984 = vmatprep.subr.mxu0 0.0
        %1985 = vmatpush1.msra.mxu0 %v1639
        %1986 = vmatprep.subr.mxu0 0.0
        %1987 = vmatpush1.msra.mxu0 %v1640
        %1988 = vmatprep.subr.mxu0 0.0
        %1989 = vmatpush1.msra.mxu0 %v1641
        %1990 = vmatprep.subr.mxu0 0.0
        %1991 = vmatpush1.msra.mxu0 %v1642
        %1992 = vmatprep.subr.mxu0 0.0
        %1993 = vmatpush1.msra.mxu0 %v1643
        %1994 = vmatprep.subr.mxu0 0.0
        %1995 = vmatpush1.msra.mxu0 %v1644
        %1996 = vmatprep.subr.mxu0 0.0
        %1997 = vmatpush1.msra.mxu0 %v1645
        %1998 = vmatprep.subr.mxu0 0.0
        %1999 = vmatpush1.msra.mxu0 %v1646
        %2000 = vmatprep.subr.mxu0 0.0
        %2001 = vmatpush1.msra.mxu0 %v1647
        %2002 = vmatprep.subr.mxu0 0.0
        %2003 = vmatpush1.msra.mxu0 %v1648
        %2004 = vmatprep.subr.mxu0 0.0
        %2005 = vmatpush1.msra.mxu0 %v1649
        %2006 = vmatprep.subr.mxu0 0.0
        %2007 = vmatpush1.msra.mxu0 %v1650
        %2008 = vmatprep.subr.mxu0 0.0
        %2009 = vmatpush1.msra.mxu0 %v1651
        %2010 = vmatprep.subr.mxu0 0.0
        %2011 = vmatpush1.msra.mxu0 %v1652
        %2012 = vmatprep.subr.mxu0 0.0
        %2013 = vmatpush1.msra.mxu0 %v1653
        %2014 = vmatprep.subr.mxu0 0.0
        %2015 = vmatpush1.msra.mxu0 %v1654
        %2016 = vmatprep.mubr.f32.mxu0 %v1468
        %2017 = vmatmul.mubr.f32.gmra.mrb[0].mxu0 %v1467
        %v2018 = vpop.f32.mrb[0].mxu0
        %v2019 = vadd.f32 %v1874, %v2018
        %v2020 = vpop.f32.mrb[0].mxu0
        %2021 = vmatprep.mubr.f32.mxu0 %v1474
        %2022 = vmatmul.mubr.f32.gmra.mrb[0].mxu0 %v1473
        %v2023 = vpop.f32.mrb[0].mxu0
        %v2024 = vadd.f32 %v1879, %v2023
        %v2025 = vpop.f32.mrb[0].mxu0
        %2026 = vmatprep.mubr.f32.mxu0 %v1480
        %2027 = vmatmul.mubr.f32.gmra.mrb[0].mxu0 %v1479
        %v2028 = vpop.f32.mrb[0].mxu0
        %v2029 = vadd.f32 %v1884, %v2028
        %v2030 = vpop.f32.mrb[0].mxu0
        %2031 = vmatprep.mubr.f32.mxu0 %v1486
        %2032 = vmatmul.mubr.f32.gmra.mrb[0].mxu0 %v1485
        %v2033 = vpop.f32.mrb[0].mxu0
        %v2034 = vadd.f32 %v1889, %v2033
        %v2035 = vpop.f32.mrb[0].mxu0
        %2036 = vmatprep.mubr.f32.mxu0 %v1492
        %2037 = vmatmul.mubr.f32.gmra.mrb[0].mxu0 %v1491
        %v2038 = vpop.f32.mrb[0].mxu0
        %v2039 = vadd.f32 %v1894, %v2038
        %v2040 = vpop.f32.mrb[0].mxu0
        %2041 = vmatprep.mubr.f32.mxu0 %v1498
        %2042 = vmatmul.mubr.f32.gmra.mrb[0].mxu0 %v1497
        %v2043 = vpop.f32.mrb[0].mxu0
        %v2044 = vadd.f32 %v1899, %v2043
        %v2045 = vpop.f32.mrb[0].mxu0
        %2046 = vmatprep.mubr.f32.mxu0 %v1504
        %2047 = vmatmul.mubr.f32.gmra.mrb[0].mxu0 %v1503
        %v2048 = vpop.f32.mrb[0].mxu0
        %v2049 = vadd.f32 %v1904, %v2048
        %v2050 = vpop.f32.mrb[0].mxu0
        %2051 = vmatprep.mubr.f32.mxu0 %v1510
        %2052 = vmatmul.mubr.f32.gmra.mrb[0].mxu0 %v1509
        %v2053 = vpop.f32.mrb[0].mxu0
        %v2054 = vadd.f32 %v1909, %v2053
        %v2055 = vpop.f32.mrb[0].mxu0
        %2056 = vmatprep.mubr.f32.mxu0 %v1516
        %2057 = vmatmul.mubr.f32.gmra.mrb[0].mxu0 %v1515
        %v2058 = vpop.f32.mrb[0].mxu0
        %v2059 = vadd.f32 %v1914, %v2058
        %v2060 = vpop.f32.mrb[0].mxu0
        %2061 = vmatprep.mubr.f32.mxu0 %v1522
        %2062 = vmatmul.mubr.f32.gmra.mrb[0].mxu0 %v1521
        %v2063 = vpop.f32.mrb[0].mxu0
        %v2064 = vadd.f32 %v1919, %v2063
        %v2065 = vpop.f32.mrb[0].mxu0
        %2066 = vmatprep.mubr.f32.mxu0 %v1528
        %2067 = vmatmul.mubr.f32.gmra.mrb[0].mxu0 %v1527
        %v2068 = vpop.f32.mrb[0].mxu0
        %v2069 = vadd.f32 %v1924, %v2068
        %v2070 = vpop.f32.mrb[0].mxu0
        %2071 = vmatprep.mubr.f32.mxu0 %v1534
        %2072 = vmatmul.mubr.f32.gmra.mrb[0].mxu0 %v1533
        %v2073 = vpop.f32.mrb[0].mxu0
        %v2074 = vadd.f32 %v1929, %v2073
        %v2075 = vpop.f32.mrb[0].mxu0
        %2076 = vmatprep.mubr.f32.mxu0 %v1540
        %2077 = vmatmul.mubr.f32.gmra.mrb[0].mxu0 %v1539
        %v2078 = vpop.f32.mrb[0].mxu0
        %v2079 = vadd.f32 %v1934, %v2078
        %v2080 = vpop.f32.mrb[0].mxu0
        %2081 = vmatprep.mubr.f32.mxu0 %v1546
        %2082 = vmatmul.mubr.f32.gmra.mrb[0].mxu0 %v1545
        %v2083 = vpop.f32.mrb[0].mxu0
        %v2084 = vadd.f32 %v1939, %v2083
        %v2085 = vpop.f32.mrb[0].mxu0
        %2086 = vmatprep.mubr.f32.mxu0 %v1552
        %2087 = vmatmul.mubr.f32.gmra.mrb[0].mxu0 %v1551
        %v2088 = vpop.f32.mrb[0].mxu0
        %v2089 = vadd.f32 %v1944, %v2088
        %v2090 = vpop.f32.mrb[0].mxu0
        %2091 = vmatprep.mubr.f32.mxu0 %v1558
        %2092 = vmatmul.mubr.f32.gmra.mrb[0].mxu0 %v1557
        %v2093 = vpop.f32.mrb[0].mxu0
        %v2094 = vadd.f32 %v1949, %v2093
        %v2095 = vpop.f32.mrb[0].mxu0
        %2096 = vdwg.mxu0
        %v2097 = vmax.f32 %v2019, 0.0
        %v2098 = vmax.f32 %v2024, 0.0
        %v2099 = vmax.f32 %v2029, 0.0
        %v2100 = vmax.f32 %v2034, 0.0
        %v2101 = vmax.f32 %v2039, 0.0
        %v2102 = vmax.f32 %v2044, 0.0
        %v2103 = vmax.f32 %v2049, 0.0
        %v2104 = vmax.f32 %v2054, 0.0
        %v2105 = vmax.f32 %v2059, 0.0
        %v2106 = vmax.f32 %v2064, 0.0
        %v2107 = vmax.f32 %v2069, 0.0
        %v2108 = vmax.f32 %v2074, 0.0
        %v2109 = vmax.f32 %v2079, 0.0
        %v2110 = vmax.f32 %v2084, 0.0
        %v2111 = vmax.f32 %v2089, 0.0
        %v2112 = vmax.f32 %v2094, 0.0
        %2113 = vst [vmem:[#allocation3 + $0x10] sm:$0xff] %v2097
        %2114 = vst [vmem:[#allocation3 + $0x30] sm:$0xff] %v2098
        %2115 = vst [vmem:[#allocation3 + $0x50] sm:$0xff] %v2099
        %2116 = vst [vmem:[#allocation3 + $0x70] sm:$0xff] %v2100
        %2117 = vst [vmem:[#allocation3 + $0x90] sm:$0xff] %v2101
        %2118 = vst [vmem:[#allocation3 + $0xb0] sm:$0xff] %v2102
        %2119 = vst [vmem:[#allocation3 + $0xd0] sm:$0xff] %v2103
        %2120 = vst [vmem:[#allocation3 + $0xf0] sm:$0xff] %v2104
        %2121 = vst [vmem:[#allocation3 + $0x110] sm:$0xff] %v2105
        %2122 = vst [vmem:[#allocation3 + $0x130] sm:$0xff] %v2106
        %2123 = vst [vmem:[#allocation3 + $0x150] sm:$0xff] %v2107
        %2124 = vst [vmem:[#allocation3 + $0x170] sm:$0xff] %v2108
        %2125 = vst [vmem:[#allocation3 + $0x190] sm:$0xff] %v2109
        %2126 = vst [vmem:[#allocation3 + $0x1b0] sm:$0xff] %v2110
        %2127 = vst [vmem:[#allocation3 + $0x1d0] sm:$0xff] %v2111
        %2128 = vst [vmem:[#allocation3 + $0x1f0] sm:$0xff] %v2112
        %v2129 = vrot.slane %v2097, 7
        %v2130 = vrot.slane %v2098, 7
        %v2131 = vrot.slane %v2099, 7
        %v2132 = vrot.slane %v2100, 7
        %v2133 = vrot.slane %v2101, 7
        %v2134 = vrot.slane %v2102, 7
        %v2135 = vrot.slane %v2103, 7
        %v2136 = vrot.slane %v2104, 7
        %v2137 = vrot.slane %v2105, 7
        %v2138 = vrot.slane %v2106, 7
        %v2139 = vrot.slane %v2107, 7
        %v2140 = vrot.slane %v2108, 7
        %v2141 = vrot.slane %v2109, 7
        %v2142 = vrot.slane %v2110, 7
        %v2143 = vrot.slane %v2111, 7
        %v2144 = vrot.slane %v2112, 7
        %v2145 = vsel %vm684, %v2143, %v2144
        %v2146 = vsel %vm684, %v2142, %v2143
        %v2147 = vsel %vm684, %v2141, %v2142
        %v2148 = vsel %vm684, %v2140, %v2141
        %v2149 = vsel %vm684, %v2139, %v2140
        %v2150 = vsel %vm684, %v2138, %v2139
        %v2151 = vsel %vm684, %v2137, %v2138
        %v2152 = vsel %vm684, %v2136, %v2137
        %v2153 = vsel %vm684, %v2135, %v2136
        %v2154 = vsel %vm684, %v2134, %v2135
        %v2155 = vsel %vm684, %v2133, %v2134
        %v2156 = vsel %vm684, %v2132, %v2133
        %v2157 = vsel %vm684, %v2131, %v2132
        %v2158 = vsel %vm684, %v2130, %v2131
        %v2159 = vsel %vm684, %v2129, %v2130
        %v2160 = vsel %vm684, %v2144, %v2129
        %v2161 = vsel %vm717, 0.0, %v2160
        %v2162 = vsel %vm718, 0.0, %v2159
        %v2163 = vsel %vm719, 0.0, %v2158
        %v2164 = vsel %vm720, 0.0, %v2157
        %v2165 = vsel %vm721, 0.0, %v2156
        %v2166 = vsel %vm722, 0.0, %v2155
        %v2167 = vsel %vm723, 0.0, %v2154
        %v2168 = vsel %vm724, 0.0, %v2153
        %v2169 = vsel %vm725, 0.0, %v2152
        %v2170 = vsel %vm726, 0.0, %v2151
        %v2171 = vsel %vm727, 0.0, %v2150
        %v2172 = vsel %vm728, 0.0, %v2149
        %v2173 = vsel %vm729, 0.0, %v2148
        %v2174 = vsel %vm730, 0.0, %v2147
        %v2175 = vsel %vm731, 0.0, %v2146
        %v2176 = vsel %vm732, 0.0, %v2145
        %v2177 = vrot.slane %v2097, 1
        %v2178 = vrot.slane %v2098, 1
        %v2179 = vrot.slane %v2099, 1
        %v2180 = vrot.slane %v2100, 1
        %v2181 = vrot.slane %v2101, 1
        %v2182 = vrot.slane %v2102, 1
        %v2183 = vrot.slane %v2103, 1
        %v2184 = vrot.slane %v2104, 1
        %v2185 = vrot.slane %v2105, 1
        %v2186 = vrot.slane %v2106, 1
        %v2187 = vrot.slane %v2107, 1
        %v2188 = vrot.slane %v2108, 1
        %v2189 = vrot.slane %v2109, 1
        %v2190 = vrot.slane %v2110, 1
        %v2191 = vrot.slane %v2111, 1
        %v2192 = vrot.slane %v2112, 1
        %v2193 = vsel %vm781, %v2191, %v2192
        %v2194 = vsel %vm781, %v2190, %v2191
        %v2195 = vsel %vm781, %v2189, %v2190
        %v2196 = vsel %vm781, %v2188, %v2189
        %v2197 = vsel %vm781, %v2187, %v2188
        %v2198 = vsel %vm781, %v2186, %v2187
        %v2199 = vsel %vm781, %v2185, %v2186
        %v2200 = vsel %vm781, %v2184, %v2185
        %v2201 = vsel %vm781, %v2183, %v2184
        %v2202 = vsel %vm781, %v2182, %v2183
        %v2203 = vsel %vm781, %v2181, %v2182
        %v2204 = vsel %vm781, %v2180, %v2181
        %v2205 = vsel %vm781, %v2179, %v2180
        %v2206 = vsel %vm781, %v2178, %v2179
        %v2207 = vsel %vm781, %v2177, %v2178
        %v2208 = vsel %vm781, %v2192, %v2177
        %v2209 = vsel %vm814, 0.0, %v2207
        %v2210 = vsel %vm815, 0.0, %v2206
        %v2211 = vsel %vm816, 0.0, %v2205
        %v2212 = vsel %vm817, 0.0, %v2204
        %v2213 = vsel %vm818, 0.0, %v2203
        %v2214 = vsel %vm819, 0.0, %v2202
        %v2215 = vsel %vm820, 0.0, %v2201
        %v2216 = vsel %vm821, 0.0, %v2200
        %v2217 = vsel %vm822, 0.0, %v2199
        %v2218 = vsel %vm823, 0.0, %v2198
        %v2219 = vsel %vm824, 0.0, %v2197
        %v2220 = vsel %vm825, 0.0, %v2196
        %v2221 = vsel %vm826, 0.0, %v2195
        %v2222 = vsel %vm827, 0.0, %v2194
        %v2223 = vsel %vm828, 0.0, %v2193
        %v2224 = vsel %vm829, 0.0, %v2208
        %2225 = vst [vmem:[#allocation2 + $0x30] sm:$0xff] %v2161
        %2226 = vst [vmem:[#allocation2 + $0x38] sm:$0xff] %v2097
        %2227 = vst [vmem:[#allocation2 + $0x40] sm:$0xff] %v2209
        %2228 = vst [vmem:[#allocation2 + $0x78] sm:$0xff] %v2162
        %2229 = vst [vmem:[#allocation2 + $0x80] sm:$0xff] %v2098
        %2230 = vst [vmem:[#allocation2 + $0x88] sm:$0xff] %v2210
        %2231 = vst [vmem:[#allocation2 + $0xc0] sm:$0xff] %v2163
        %2232 = vst [vmem:[#allocation2 + $0xc8] sm:$0xff] %v2099
        %2233 = vst [vmem:[#allocation2 + $0xd0] sm:$0xff] %v2211
        %2234 = vst [vmem:[#allocation2 + $0x108] sm:$0xff] %v2164
        %2235 = vst [vmem:[#allocation2 + $0x110] sm:$0xff] %v2100
        %2236 = vst [vmem:[#allocation2 + $0x118] sm:$0xff] %v2212
        %2237 = vst [vmem:[#allocation2 + $0x150] sm:$0xff] %v2165
        %2238 = vst [vmem:[#allocation2 + $0x158] sm:$0xff] %v2101
        %2239 = vst [vmem:[#allocation2 + $0x160] sm:$0xff] %v2213
        %2240 = vst [vmem:[#allocation2 + $0x198] sm:$0xff] %v2166
        %2241 = vst [vmem:[#allocation2 + $0x1a0] sm:$0xff] %v2102
        %2242 = vst [vmem:[#allocation2 + $0x1a8] sm:$0xff] %v2214
        %2243 = vst [vmem:[#allocation2 + $0x1e0] sm:$0xff] %v2167
        %2244 = vst [vmem:[#allocation2 + $0x1e8] sm:$0xff] %v2103
        %2245 = vst [vmem:[#allocation2 + $0x1f0] sm:$0xff] %v2215
        %2246 = vst [vmem:[#allocation2 + $0x228] sm:$0xff] %v2168
        %2247 = vst [vmem:[#allocation2 + $0x230] sm:$0xff] %v2104
        %2248 = vst [vmem:[#allocation2 + $0x238] sm:$0xff] %v2216
        %2249 = vst [vmem:[#allocation2 + $0x270] sm:$0xff] %v2169
        %2250 = vst [vmem:[#allocation2 + $0x278] sm:$0xff] %v2105
        %2251 = vst [vmem:[#allocation2 + $0x280] sm:$0xff] %v2217
        %2252 = vst [vmem:[#allocation2 + $0x2b8] sm:$0xff] %v2170
        %2253 = vst [vmem:[#allocation2 + $0x2c0] sm:$0xff] %v2106
        %2254 = vst [vmem:[#allocation2 + $0x2c8] sm:$0xff] %v2218
        %2255 = vst [vmem:[#allocation2 + $0x300] sm:$0xff] %v2171
        %2256 = vst [vmem:[#allocation2 + $0x308] sm:$0xff] %v2107
        %2257 = vst [vmem:[#allocation2 + $0x310] sm:$0xff] %v2219
        %2258 = vst [vmem:[#allocation2 + $0x348] sm:$0xff] %v2172
        %2259 = vst [vmem:[#allocation2 + $0x350] sm:$0xff] %v2108
        %2260 = vst [vmem:[#allocation2 + $0x358] sm:$0xff] %v2220
        %2261 = vst [vmem:[#allocation2 + $0x390] sm:$0xff] %v2173
        %2262 = vst [vmem:[#allocation2 + $0x398] sm:$0xff] %v2109
        %2263 = vst [vmem:[#allocation2 + $0x3a0] sm:$0xff] %v2221
        %2264 = vst [vmem:[#allocation2 + $0x3d8] sm:$0xff] %v2174
        %2265 = vst [vmem:[#allocation2 + $0x3e0] sm:$0xff] %v2110
        %2266 = vst [vmem:[#allocation2 + $0x3e8] sm:$0xff] %v2222
        %2267 = vst [vmem:[#allocation2 + $0x420] sm:$0xff] %v2175
        %2268 = vst [vmem:[#allocation2 + $0x428] sm:$0xff] %v2111
        %2269 = vst [vmem:[#allocation2 + $0x430] sm:$0xff] %v2223
        %2270 = vst [vmem:[#allocation2 + $0x468] sm:$0xff] %v2176
        %2271 = vst [vmem:[#allocation2 + $0x470] sm:$0xff] %v2112
        %2272 = vst [vmem:[#allocation2 + $0x478] sm:$0xff] %v2224
        %v2273 = vld [vmem:[#allocation2] sm:$0xff]
        %v2274 = vld [vmem:[#allocation2 + $0x8] sm:$0xff]
        %v2275 = vld [vmem:[#allocation2 + $0x10] sm:$0xff]
        %v2276 = vld [vmem:[#allocation2 + $0x18] sm:$0xff]
        %v2277 = vld [vmem:[#allocation2 + $0x20] sm:$0xff]
        %v2278 = vld [vmem:[#allocation2 + $0x28] sm:$0xff]
        %v2279 = vld [vmem:[#allocation2 + $0x30] sm:$0xff]
        %v2280 = vld [vmem:[#allocation2 + $0x38] sm:$0xff]
        %v2281 = vld [vmem:[#allocation2 + $0x40] sm:$0xff]
        %v2282 = vld [vmem:[#allocation2 + $0x48] sm:$0xff]
        %v2283 = vld [vmem:[#allocation2 + $0x50] sm:$0xff]
        %v2284 = vld [vmem:[#allocation2 + $0x58] sm:$0xff]
        %v2285 = vld [vmem:[#allocation2 + $0x60] sm:$0xff]
        %v2286 = vld [vmem:[#allocation2 + $0x68] sm:$0xff]
        %v2287 = vld [vmem:[#allocation2 + $0x70] sm:$0xff]
        %v2288 = vld [vmem:[#allocation2 + $0x78] sm:$0xff]
        %v2289 = vld [vmem:[#allocation2 + $0x80] sm:$0xff]
        %v2290 = vld [vmem:[#allocation2 + $0x88] sm:$0xff]
        %v2291 = vld [vmem:[#allocation2 + $0x90] sm:$0xff]
        %v2292 = vld [vmem:[#allocation2 + $0x98] sm:$0xff]
        %v2293 = vld [vmem:[#allocation2 + $0xa0] sm:$0xff]
        %v2294 = vld [vmem:[#allocation2 + $0xa8] sm:$0xff]
        %v2295 = vld [vmem:[#allocation2 + $0xb0] sm:$0xff]
        %v2296 = vld [vmem:[#allocation2 + $0xb8] sm:$0xff]
        %v2297 = vld [vmem:[#allocation2 + $0xc0] sm:$0xff]
        %v2298 = vld [vmem:[#allocation2 + $0xc8] sm:$0xff]
        %v2299 = vld [vmem:[#allocation2 + $0xd0] sm:$0xff]
        %v2300 = vld [vmem:[#allocation2 + $0xd8] sm:$0xff]
        %v2301 = vld [vmem:[#allocation2 + $0xe0] sm:$0xff]
        %v2302 = vld [vmem:[#allocation2 + $0xe8] sm:$0xff]
        %v2303 = vld [vmem:[#allocation2 + $0xf0] sm:$0xff]
        %v2304 = vld [vmem:[#allocation2 + $0xf8] sm:$0xff]
        %v2305 = vld [vmem:[#allocation2 + $0x100] sm:$0xff]
        %v2306 = vld [vmem:[#allocation2 + $0x108] sm:$0xff]
        %v2307 = vld [vmem:[#allocation2 + $0x110] sm:$0xff]
        %v2308 = vld [vmem:[#allocation2 + $0x118] sm:$0xff]
        %v2309 = vld [vmem:[#allocation2 + $0x120] sm:$0xff]
        %v2310 = vld [vmem:[#allocation2 + $0x128] sm:$0xff]
        %v2311 = vld [vmem:[#allocation2 + $0x130] sm:$0xff]
        %v2312 = vld [vmem:[#allocation2 + $0x138] sm:$0xff]
        %v2313 = vld [vmem:[#allocation2 + $0x140] sm:$0xff]
        %v2314 = vld [vmem:[#allocation2 + $0x148] sm:$0xff]
        %v2315 = vld [vmem:[#allocation2 + $0x150] sm:$0xff]
        %v2316 = vld [vmem:[#allocation2 + $0x158] sm:$0xff]
        %v2317 = vld [vmem:[#allocation2 + $0x160] sm:$0xff]
        %v2318 = vld [vmem:[#allocation2 + $0x168] sm:$0xff]
        %v2319 = vld [vmem:[#allocation2 + $0x170] sm:$0xff]
        %v2320 = vld [vmem:[#allocation2 + $0x178] sm:$0xff]
        %v2321 = vld [vmem:[#allocation2 + $0x180] sm:$0xff]
        %v2322 = vld [vmem:[#allocation2 + $0x188] sm:$0xff]
        %v2323 = vld [vmem:[#allocation2 + $0x190] sm:$0xff]
        %v2324 = vld [vmem:[#allocation2 + $0x198] sm:$0xff]
        %v2325 = vld [vmem:[#allocation2 + $0x1a0] sm:$0xff]
        %v2326 = vld [vmem:[#allocation2 + $0x1a8] sm:$0xff]
        %v2327 = vld [vmem:[#allocation2 + $0x1b0] sm:$0xff]
        %v2328 = vld [vmem:[#allocation2 + $0x1b8] sm:$0xff]
        %v2329 = vld [vmem:[#allocation2 + $0x1c0] sm:$0xff]
        %v2330 = vld [vmem:[#allocation2 + $0x1c8] sm:$0xff]
        %v2331 = vld [vmem:[#allocation2 + $0x1d0] sm:$0xff]
        %v2332 = vld [vmem:[#allocation2 + $0x1d8] sm:$0xff]
        %v2333 = vld [vmem:[#allocation2 + $0x1e0] sm:$0xff]
        %v2334 = vld [vmem:[#allocation2 + $0x1e8] sm:$0xff]
        %v2335 = vld [vmem:[#allocation2 + $0x1f0] sm:$0xff]
        %v2336 = vld [vmem:[#allocation2 + $0x1f8] sm:$0xff]
        %v2337 = vld [vmem:[#allocation2 + $0x200] sm:$0xff]
        %v2338 = vld [vmem:[#allocation2 + $0x208] sm:$0xff]
        %v2339 = vld [vmem:[#allocation2 + $0x210] sm:$0xff]
        %v2340 = vld [vmem:[#allocation2 + $0x218] sm:$0xff]
        %v2341 = vld [vmem:[#allocation2 + $0x220] sm:$0xff]
        %v2342 = vld [vmem:[#allocation2 + $0x228] sm:$0xff]
        %v2343 = vld [vmem:[#allocation2 + $0x230] sm:$0xff]
        %v2344 = vld [vmem:[#allocation2 + $0x238] sm:$0xff]
        %v2345 = vld [vmem:[#allocation2 + $0x240] sm:$0xff]
        %v2346 = vld [vmem:[#allocation2 + $0x248] sm:$0xff]
        %v2347 = vld [vmem:[#allocation2 + $0x250] sm:$0xff]
        %v2348 = vld [vmem:[#allocation2 + $0x258] sm:$0xff]
        %v2349 = vld [vmem:[#allocation2 + $0x260] sm:$0xff]
        %v2350 = vld [vmem:[#allocation2 + $0x268] sm:$0xff]
        %v2351 = vld [vmem:[#allocation2 + $0x270] sm:$0xff]
        %v2352 = vld [vmem:[#allocation2 + $0x278] sm:$0xff]
        %v2353 = vld [vmem:[#allocation2 + $0x280] sm:$0xff]
        %v2354 = vld [vmem:[#allocation2 + $0x288] sm:$0xff]
        %v2355 = vld [vmem:[#allocation2 + $0x290] sm:$0xff]
        %v2356 = vld [vmem:[#allocation2 + $0x298] sm:$0xff]
        %v2357 = vld [vmem:[#allocation2 + $0x2a0] sm:$0xff]
        %v2358 = vld [vmem:[#allocation2 + $0x2a8] sm:$0xff]
        %v2359 = vld [vmem:[#allocation2 + $0x2b0] sm:$0xff]
        %v2360 = vld [vmem:[#allocation2 + $0x2b8] sm:$0xff]
        %v2361 = vld [vmem:[#allocation2 + $0x2c0] sm:$0xff]
        %v2362 = vld [vmem:[#allocation2 + $0x2c8] sm:$0xff]
        %v2363 = vld [vmem:[#allocation2 + $0x2d0] sm:$0xff]
        %v2364 = vld [vmem:[#allocation2 + $0x2d8] sm:$0xff]
        %v2365 = vld [vmem:[#allocation2 + $0x2e0] sm:$0xff]
        %v2366 = vld [vmem:[#allocation2 + $0x2e8] sm:$0xff]
        %v2367 = vld [vmem:[#allocation2 + $0x2f0] sm:$0xff]
        %v2368 = vld [vmem:[#allocation2 + $0x2f8] sm:$0xff]
        %v2369 = vld [vmem:[#allocation2 + $0x300] sm:$0xff]
        %v2370 = vld [vmem:[#allocation2 + $0x308] sm:$0xff]
        %v2371 = vld [vmem:[#allocation2 + $0x310] sm:$0xff]
        %v2372 = vld [vmem:[#allocation2 + $0x318] sm:$0xff]
        %v2373 = vld [vmem:[#allocation2 + $0x320] sm:$0xff]
        %v2374 = vld [vmem:[#allocation2 + $0x328] sm:$0xff]
        %v2375 = vld [vmem:[#allocation2 + $0x330] sm:$0xff]
        %v2376 = vld [vmem:[#allocation2 + $0x338] sm:$0xff]
        %v2377 = vld [vmem:[#allocation2 + $0x340] sm:$0xff]
        %v2378 = vld [vmem:[#allocation2 + $0x348] sm:$0xff]
        %v2379 = vld [vmem:[#allocation2 + $0x350] sm:$0xff]
        %v2380 = vld [vmem:[#allocation2 + $0x358] sm:$0xff]
        %v2381 = vld [vmem:[#allocation2 + $0x360] sm:$0xff]
        %v2382 = vld [vmem:[#allocation2 + $0x368] sm:$0xff]
        %v2383 = vld [vmem:[#allocation2 + $0x370] sm:$0xff]
        %v2384 = vld [vmem:[#allocation2 + $0x378] sm:$0xff]
        %v2385 = vld [vmem:[#allocation2 + $0x380] sm:$0xff]
        %v2386 = vld [vmem:[#allocation2 + $0x388] sm:$0xff]
        %v2387 = vld [vmem:[#allocation2 + $0x390] sm:$0xff]
        %v2388 = vld [vmem:[#allocation2 + $0x398] sm:$0xff]
        %v2389 = vld [vmem:[#allocation2 + $0x3a0] sm:$0xff]
        %v2390 = vld [vmem:[#allocation2 + $0x3a8] sm:$0xff]
        %v2391 = vld [vmem:[#allocation2 + $0x3b0] sm:$0xff]
        %v2392 = vld [vmem:[#allocation2 + $0x3b8] sm:$0xff]
        %v2393 = vld [vmem:[#allocation2 + $0x3c0] sm:$0xff]
        %v2394 = vld [vmem:[#allocation2 + $0x3c8] sm:$0xff]
        %v2395 = vld [vmem:[#allocation2 + $0x3d0] sm:$0xff]
        %v2396 = vld [vmem:[#allocation2 + $0x3d8] sm:$0xff]
        %v2397 = vld [vmem:[#allocation2 + $0x3e0] sm:$0xff]
        %v2398 = vld [vmem:[#allocation2 + $0x3e8] sm:$0xff]
        %v2399 = vld [vmem:[#allocation2 + $0x3f0] sm:$0xff]
        %v2400 = vld [vmem:[#allocation2 + $0x3f8] sm:$0xff]
        %v2401 = vld [vmem:[#allocation2 + $0x400] sm:$0xff]
        %v2402 = vld [vmem:[#allocation2 + $0x408] sm:$0xff]
        %v2403 = vld [vmem:[#allocation2 + $0x410] sm:$0xff]
        %v2404 = vld [vmem:[#allocation2 + $0x418] sm:$0xff]
        %v2405 = vld [vmem:[#allocation2 + $0x420] sm:$0xff]
        %v2406 = vld [vmem:[#allocation2 + $0x428] sm:$0xff]
        %v2407 = vld [vmem:[#allocation2 + $0x430] sm:$0xff]
        %v2408 = vld [vmem:[#allocation2 + $0x438] sm:$0xff]
        %v2409 = vld [vmem:[#allocation2 + $0x440] sm:$0xff]
        %v2410 = vld [vmem:[#allocation2 + $0x448] sm:$0xff]
        %v2411 = vld [vmem:[#allocation2 + $0x450] sm:$0xff]
        %v2412 = vld [vmem:[#allocation2 + $0x458] sm:$0xff]
        %v2413 = vld [vmem:[#allocation2 + $0x460] sm:$0xff]
        %v2414 = vld [vmem:[#allocation2 + $0x468] sm:$0xff]
        %v2415 = vld [vmem:[#allocation2 + $0x470] sm:$0xff]
        %v2416 = vld [vmem:[#allocation2 + $0x478] sm:$0xff]
        %v2417 = vld [vmem:[#allocation10] sm:$0xff]
        %v2418 = vld [vmem:[#allocation10 + $0x8] sm:$0xff]
        %v2419 = vld [vmem:[#allocation10 + $0x10] sm:$0xff]
        %v2420 = vld [vmem:[#allocation10 + $0x18] sm:$0xff]
        %v2421 = vld [vmem:[#allocation10 + $0x20] sm:$0xff]
        %v2422 = vld [vmem:[#allocation10 + $0x28] sm:$0xff]
        %v2423 = vld [vmem:[#allocation10 + $0x30] sm:$0xff]
        %v2424 = vld [vmem:[#allocation10 + $0x38] sm:$0xff]
        %v2425 = vld [vmem:[#allocation10 + $0x40] sm:$0xff]
        %v2426 = vld [vmem:[#allocation10 + $0x48] sm:$0xff]
        %v2427 = vld [vmem:[#allocation10 + $0x50] sm:$0xff]
        %v2428 = vld [vmem:[#allocation10 + $0x58] sm:$0xff]
        %v2429 = vld [vmem:[#allocation10 + $0x60] sm:$0xff]
        %v2430 = vld [vmem:[#allocation10 + $0x68] sm:$0xff]
        %v2431 = vld [vmem:[#allocation10 + $0x70] sm:$0xff]
        %v2432 = vld [vmem:[#allocation10 + $0x78] sm:$0xff]
        %v2433 = vld [vmem:[#allocation10 + $0x80] sm:$0xff]
        %v2434 = vld [vmem:[#allocation10 + $0x88] sm:$0xff]
        %v2435 = vld [vmem:[#allocation10 + $0x90] sm:$0xff]
        %v2436 = vld [vmem:[#allocation10 + $0x98] sm:$0xff]
        %v2437 = vld [vmem:[#allocation10 + $0xa0] sm:$0xff]
        %v2438 = vld [vmem:[#allocation10 + $0xa8] sm:$0xff]
        %v2439 = vld [vmem:[#allocation10 + $0xb0] sm:$0xff]
        %v2440 = vld [vmem:[#allocation10 + $0xb8] sm:$0xff]
        %v2441 = vld [vmem:[#allocation10 + $0xc0] sm:$0xff]
        %v2442 = vld [vmem:[#allocation10 + $0xc8] sm:$0xff]
        %v2443 = vld [vmem:[#allocation10 + $0xd0] sm:$0xff]
        %v2444 = vld [vmem:[#allocation10 + $0xd8] sm:$0xff]
        %v2445 = vld [vmem:[#allocation10 + $0xe0] sm:$0xff]
        %v2446 = vld [vmem:[#allocation10 + $0xe8] sm:$0xff]
        %v2447 = vld [vmem:[#allocation10 + $0xf0] sm:$0xff]
        %v2448 = vld [vmem:[#allocation10 + $0xf8] sm:$0xff]
        %v2449 = vld [vmem:[#allocation10 + $0x100] sm:$0xff]
        %v2450 = vld [vmem:[#allocation10 + $0x108] sm:$0xff]
        %v2451 = vld [vmem:[#allocation10 + $0x110] sm:$0xff]
        %v2452 = vld [vmem:[#allocation10 + $0x118] sm:$0xff]
        %v2453 = vld [vmem:[#allocation10 + $0x120] sm:$0xff]
        %v2454 = vld [vmem:[#allocation10 + $0x128] sm:$0xff]
        %v2455 = vld [vmem:[#allocation10 + $0x130] sm:$0xff]
        %v2456 = vld [vmem:[#allocation10 + $0x138] sm:$0xff]
        %v2457 = vld [vmem:[#allocation10 + $0x140] sm:$0xff]
        %v2458 = vld [vmem:[#allocation10 + $0x148] sm:$0xff]
        %v2459 = vld [vmem:[#allocation10 + $0x150] sm:$0xff]
        %v2460 = vld [vmem:[#allocation10 + $0x158] sm:$0xff]
        %v2461 = vld [vmem:[#allocation10 + $0x160] sm:$0xff]
        %v2462 = vld [vmem:[#allocation10 + $0x168] sm:$0xff]
        %v2463 = vld [vmem:[#allocation10 + $0x170] sm:$0xff]
        %v2464 = vld [vmem:[#allocation10 + $0x178] sm:$0xff]
        %v2465 = vld [vmem:[#allocation10 + $0x180] sm:$0xff]
        %v2466 = vld [vmem:[#allocation10 + $0x188] sm:$0xff]
        %v2467 = vld [vmem:[#allocation10 + $0x190] sm:$0xff]
        %v2468 = vld [vmem:[#allocation10 + $0x198] sm:$0xff]
        %v2469 = vld [vmem:[#allocation10 + $0x1a0] sm:$0xff]
        %v2470 = vld [vmem:[#allocation10 + $0x1a8] sm:$0xff]
        %v2471 = vld [vmem:[#allocation10 + $0x1b0] sm:$0xff]
        %v2472 = vld [vmem:[#allocation10 + $0x1b8] sm:$0xff]
        %v2473 = vld [vmem:[#allocation10 + $0x1c0] sm:$0xff]
        %v2474 = vld [vmem:[#allocation10 + $0x1c8] sm:$0xff]
        %v2475 = vld [vmem:[#allocation10 + $0x1d0] sm:$0xff]
        %v2476 = vld [vmem:[#allocation10 + $0x1d8] sm:$0xff]
        %v2477 = vld [vmem:[#allocation10 + $0x1e0] sm:$0xff]
        %v2478 = vld [vmem:[#allocation10 + $0x1e8] sm:$0xff]
        %v2479 = vld [vmem:[#allocation10 + $0x1f0] sm:$0xff]
        %v2480 = vld [vmem:[#allocation10 + $0x1f8] sm:$0xff]
        %v2481 = vld [vmem:[#allocation10 + $0x200] sm:$0xff]
        %v2482 = vld [vmem:[#allocation10 + $0x208] sm:$0xff]
        %v2483 = vld [vmem:[#allocation10 + $0x210] sm:$0xff]
        %v2484 = vld [vmem:[#allocation10 + $0x218] sm:$0xff]
        %v2485 = vld [vmem:[#allocation10 + $0x220] sm:$0xff]
        %v2486 = vld [vmem:[#allocation10 + $0x228] sm:$0xff]
        %v2487 = vld [vmem:[#allocation10 + $0x230] sm:$0xff]
        %v2488 = vld [vmem:[#allocation10 + $0x238] sm:$0xff]
        %v2489 = vld [vmem:[#allocation10 + $0x240] sm:$0xff]
        %v2490 = vld [vmem:[#allocation10 + $0x248] sm:$0xff]
        %v2491 = vld [vmem:[#allocation10 + $0x250] sm:$0xff]
        %v2492 = vld [vmem:[#allocation10 + $0x258] sm:$0xff]
        %v2493 = vld [vmem:[#allocation10 + $0x260] sm:$0xff]
        %v2494 = vld [vmem:[#allocation10 + $0x268] sm:$0xff]
        %v2495 = vld [vmem:[#allocation10 + $0x270] sm:$0xff]
        %v2496 = vld [vmem:[#allocation10 + $0x278] sm:$0xff]
        %v2497 = vld [vmem:[#allocation10 + $0x280] sm:$0xff]
        %v2498 = vld [vmem:[#allocation10 + $0x288] sm:$0xff]
        %v2499 = vld [vmem:[#allocation10 + $0x290] sm:$0xff]
        %v2500 = vld [vmem:[#allocation10 + $0x298] sm:$0xff]
        %v2501 = vld [vmem:[#allocation10 + $0x2a0] sm:$0xff]
        %v2502 = vld [vmem:[#allocation10 + $0x2a8] sm:$0xff]
        %v2503 = vld [vmem:[#allocation10 + $0x2b0] sm:$0xff]
        %v2504 = vld [vmem:[#allocation10 + $0x2b8] sm:$0xff]
        %v2505 = vld [vmem:[#allocation10 + $0x2c0] sm:$0xff]
        %v2506 = vld [vmem:[#allocation10 + $0x2c8] sm:$0xff]
        %v2507 = vld [vmem:[#allocation10 + $0x2d0] sm:$0xff]
        %v2508 = vld [vmem:[#allocation10 + $0x2d8] sm:$0xff]
        %v2509 = vld [vmem:[#allocation10 + $0x2e0] sm:$0xff]
        %v2510 = vld [vmem:[#allocation10 + $0x2e8] sm:$0xff]
        %v2511 = vld [vmem:[#allocation10 + $0x2f0] sm:$0xff]
        %v2512 = vld [vmem:[#allocation10 + $0x2f8] sm:$0xff]
        %v2513 = vld [vmem:[#allocation10 + $0x300] sm:$0xff]
        %v2514 = vld [vmem:[#allocation10 + $0x308] sm:$0xff]
        %v2515 = vld [vmem:[#allocation10 + $0x310] sm:$0xff]
        %v2516 = vld [vmem:[#allocation10 + $0x318] sm:$0xff]
        %v2517 = vld [vmem:[#allocation10 + $0x320] sm:$0xff]
        %v2518 = vld [vmem:[#allocation10 + $0x328] sm:$0xff]
        %v2519 = vld [vmem:[#allocation10 + $0x330] sm:$0xff]
        %v2520 = vld [vmem:[#allocation10 + $0x338] sm:$0xff]
        %v2521 = vld [vmem:[#allocation10 + $0x340] sm:$0xff]
        %v2522 = vld [vmem:[#allocation10 + $0x348] sm:$0xff]
        %v2523 = vld [vmem:[#allocation10 + $0x350] sm:$0xff]
        %v2524 = vld [vmem:[#allocation10 + $0x358] sm:$0xff]
        %v2525 = vld [vmem:[#allocation10 + $0x360] sm:$0xff]
        %v2526 = vld [vmem:[#allocation10 + $0x368] sm:$0xff]
        %v2527 = vld [vmem:[#allocation10 + $0x370] sm:$0xff]
        %v2528 = vld [vmem:[#allocation10 + $0x378] sm:$0xff]
        %v2529 = vld [vmem:[#allocation10 + $0x380] sm:$0xff]
        %v2530 = vld [vmem:[#allocation10 + $0x388] sm:$0xff]
        %v2531 = vld [vmem:[#allocation10 + $0x390] sm:$0xff]
        %v2532 = vld [vmem:[#allocation10 + $0x398] sm:$0xff]
        %v2533 = vld [vmem:[#allocation10 + $0x3a0] sm:$0xff]
        %v2534 = vld [vmem:[#allocation10 + $0x3a8] sm:$0xff]
        %v2535 = vld [vmem:[#allocation10 + $0x3b0] sm:$0xff]
        %v2536 = vld [vmem:[#allocation10 + $0x3b8] sm:$0xff]
        %v2537 = vld [vmem:[#allocation10 + $0x3c0] sm:$0xff]
        %v2538 = vld [vmem:[#allocation10 + $0x3c8] sm:$0xff]
        %v2539 = vld [vmem:[#allocation10 + $0x3d0] sm:$0xff]
        %v2540 = vld [vmem:[#allocation10 + $0x3d8] sm:$0xff]
        %v2541 = vld [vmem:[#allocation10 + $0x3e0] sm:$0xff]
        %v2542 = vld [vmem:[#allocation10 + $0x3e8] sm:$0xff]
        %v2543 = vld [vmem:[#allocation10 + $0x3f0] sm:$0xff]
        %v2544 = vld [vmem:[#allocation10 + $0x3f8] sm:$0xff]
        %v2545 = vld [vmem:[#allocation10 + $0x400] sm:$0xff]
        %v2546 = vld [vmem:[#allocation10 + $0x408] sm:$0xff]
        %v2547 = vld [vmem:[#allocation10 + $0x410] sm:$0xff]
        %v2548 = vld [vmem:[#allocation10 + $0x418] sm:$0xff]
        %v2549 = vld [vmem:[#allocation10 + $0x420] sm:$0xff]
        %v2550 = vld [vmem:[#allocation10 + $0x428] sm:$0xff]
        %v2551 = vld [vmem:[#allocation10 + $0x430] sm:$0xff]
        %v2552 = vld [vmem:[#allocation10 + $0x438] sm:$0xff]
        %v2553 = vld [vmem:[#allocation10 + $0x440] sm:$0xff]
        %v2554 = vld [vmem:[#allocation10 + $0x448] sm:$0xff]
        %v2555 = vld [vmem:[#allocation10 + $0x450] sm:$0xff]
        %v2556 = vld [vmem:[#allocation10 + $0x458] sm:$0xff]
        %v2557 = vld [vmem:[#allocation10 + $0x460] sm:$0xff]
        %v2558 = vld [vmem:[#allocation10 + $0x468] sm:$0xff]
        %v2559 = vld [vmem:[#allocation10 + $0x470] sm:$0xff]
        %v2560 = vld [vmem:[#allocation10 + $0x478] sm:$0xff]
        %v2561 = vld [vmem:[%s6] sm:$0x1]
        %v2563 = vlaneseq
        %v2564 = vshrl.u32 %v2563, 7
        %v2565 = vsub.s32 0, %v2564
        %v2566 = vrot.slane %v2561, %v2565
        %2568 = vmatprep.subr.mxu0 0.0
        %2569 = vmatpush1.msra.mxu0 %v2417
        %2570 = vmatprep.subr.mxu0 0.0
        %2571 = vmatpush1.msra.mxu0 %v2418
        %2572 = vmatprep.subr.mxu0 0.0
        %2573 = vmatpush1.msra.mxu0 %v2419
        %2574 = vmatprep.subr.mxu0 0.0
        %2575 = vmatpush1.msra.mxu0 %v2420
        %2576 = vmatprep.subr.mxu0 0.0
        %2577 = vmatpush1.msra.mxu0 %v2421
        %2578 = vmatprep.subr.mxu0 0.0
        %2579 = vmatpush1.msra.mxu0 %v2422
        %2580 = vmatprep.subr.mxu0 0.0
        %2581 = vmatpush1.msra.mxu0 %v2423
        %2582 = vmatprep.subr.mxu0 0.0
        %2583 = vmatpush1.msra.mxu0 %v2424
        %2584 = vmatprep.subr.mxu0 0.0
        %2585 = vmatpush1.msra.mxu0 %v2425
        %2586 = vmatprep.subr.mxu0 0.0
        %2587 = vmatpush1.msra.mxu0 %v2426
        %2588 = vmatprep.subr.mxu0 0.0
        %2589 = vmatpush1.msra.mxu0 %v2427
        %2590 = vmatprep.subr.mxu0 0.0
        %2591 = vmatpush1.msra.mxu0 %v2428
        %2592 = vmatprep.subr.mxu0 0.0
        %2593 = vmatpush1.msra.mxu0 %v2429
        %2594 = vmatprep.subr.mxu0 0.0
        %2595 = vmatpush1.msra.mxu0 %v2430
        %2596 = vmatprep.subr.mxu0 0.0
        %2597 = vmatpush1.msra.mxu0 %v2431
        %2598 = vmatprep.subr.mxu0 0.0
        %2599 = vmatpush1.msra.mxu0 %v2432
        %2600 = vmatprep.subr.mxu0 0.0
        %2601 = vmatpush1.msra.mxu0 %v2433
        %2602 = vmatprep.subr.mxu0 0.0
        %2603 = vmatpush1.msra.mxu0 %v2434
        %2604 = vmatprep.subr.mxu0 0.0
        %2605 = vmatpush1.msra.mxu0 %v2435
        %2606 = vmatprep.subr.mxu0 0.0
        %2607 = vmatpush1.msra.mxu0 %v2436
        %2608 = vmatprep.subr.mxu0 0.0
        %2609 = vmatpush1.msra.mxu0 %v2437
        %2610 = vmatprep.subr.mxu0 0.0
        %2611 = vmatpush1.msra.mxu0 %v2438
        %2612 = vmatprep.subr.mxu0 0.0
        %2613 = vmatpush1.msra.mxu0 %v2439
        %2614 = vmatprep.subr.mxu0 0.0
        %2615 = vmatpush1.msra.mxu0 %v2440
        %2616 = vmatprep.subr.mxu0 0.0
        %2617 = vmatpush1.msra.mxu0 %v2441
        %2618 = vmatprep.subr.mxu0 0.0
        %2619 = vmatpush1.msra.mxu0 %v2442
        %2620 = vmatprep.subr.mxu0 0.0
        %2621 = vmatpush1.msra.mxu0 %v2443
        %2622 = vmatprep.subr.mxu0 0.0
        %2623 = vmatpush1.msra.mxu0 %v2444
        %2624 = vmatprep.subr.mxu0 0.0
        %2625 = vmatpush1.msra.mxu0 %v2445
        %2626 = vmatprep.subr.mxu0 0.0
        %2627 = vmatpush1.msra.mxu0 %v2446
        %2628 = vmatprep.subr.mxu0 0.0
        %2629 = vmatpush1.msra.mxu0 %v2447
        %2630 = vmatprep.subr.mxu0 0.0
        %2631 = vmatpush1.msra.mxu0 %v2448
        %2632 = vmatprep.mubr.f32.mxu0 %v2274
        %2633 = vmatmul.mubr.f32.gmra.mrb[0].mxu0 %v2273
        %v2634 = vpop.f32.mrb[0].mxu0
        %v2635 = vadd.f32 %v2566, %v2634
        %v2636 = vpop.f32.mrb[0].mxu0
        %2637 = vmatprep.mubr.f32.mxu0 %v2283
        %2638 = vmatmul.mubr.f32.gmra.mrb[0].mxu0 %v2282
        %v2639 = vpop.f32.mrb[0].mxu0
        %v2640 = vadd.f32 %v2566, %v2639
        %v2641 = vpop.f32.mrb[0].mxu0
        %2642 = vmatprep.mubr.f32.mxu0 %v2292
        %2643 = vmatmul.mubr.f32.gmra.mrb[0].mxu0 %v2291
        %v2644 = vpop.f32.mrb[0].mxu0
        %v2645 = vadd.f32 %v2566, %v2644
        %v2646 = vpop.f32.mrb[0].mxu0
        %2647 = vmatprep.mubr.f32.mxu0 %v2301
        %2648 = vmatmul.mubr.f32.gmra.mrb[0].mxu0 %v2300
        %v2649 = vpop.f32.mrb[0].mxu0
        %v2650 = vadd.f32 %v2566, %v2649
        %v2651 = vpop.f32.mrb[0].mxu0
        %2652 = vmatprep.mubr.f32.mxu0 %v2310
        %2653 = vmatmul.mubr.f32.gmra.mrb[0].mxu0 %v2309
        %v2654 = vpop.f32.mrb[0].mxu0
        %v2655 = vadd.f32 %v2566, %v2654
        %v2656 = vpop.f32.mrb[0].mxu0
        %2657 = vmatprep.mubr.f32.mxu0 %v2319
        %2658 = vmatmul.mubr.f32.gmra.mrb[0].mxu0 %v2318
        %v2659 = vpop.f32.mrb[0].mxu0
        %v2660 = vadd.f32 %v2566, %v2659
        %v2661 = vpop.f32.mrb[0].mxu0
        %2662 = vmatprep.mubr.f32.mxu0 %v2328
        %2663 = vmatmul.mubr.f32.gmra.mrb[0].mxu0 %v2327
        %v2664 = vpop.f32.mrb[0].mxu0
        %v2665 = vadd.f32 %v2566, %v2664
        %v2666 = vpop.f32.mrb[0].mxu0
        %2667 = vmatprep.mubr.f32.mxu0 %v2337
        %2668 = vmatmul.mubr.f32.gmra.mrb[0].mxu0 %v2336
        %v2669 = vpop.f32.mrb[0].mxu0
        %v2670 = vadd.f32 %v2566, %v2669
        %v2671 = vpop.f32.mrb[0].mxu0
        %2672 = vmatprep.mubr.f32.mxu0 %v2346
        %2673 = vmatmul.mubr.f32.gmra.mrb[0].mxu0 %v2345
        %v2674 = vpop.f32.mrb[0].mxu0
        %v2675 = vadd.f32 %v2566, %v2674
        %v2676 = vpop.f32.mrb[0].mxu0
        %2677 = vmatprep.mubr.f32.mxu0 %v2355
        %2678 = vmatmul.mubr.f32.gmra.mrb[0].mxu0 %v2354
        %v2679 = vpop.f32.mrb[0].mxu0
        %v2680 = vadd.f32 %v2566, %v2679
        %v2681 = vpop.f32.mrb[0].mxu0
        %2682 = vmatprep.mubr.f32.mxu0 %v2364
        %2683 = vmatmul.mubr.f32.gmra.mrb[0].mxu0 %v2363
        %v2684 = vpop.f32.mrb[0].mxu0
        %v2685 = vadd.f32 %v2566, %v2684
        %v2686 = vpop.f32.mrb[0].mxu0
        %2687 = vmatprep.mubr.f32.mxu0 %v2373
        %2688 = vmatmul.mubr.f32.gmra.mrb[0].mxu0 %v2372
        %v2689 = vpop.f32.mrb[0].mxu0
        %v2690 = vadd.f32 %v2566, %v2689
        %v2691 = vpop.f32.mrb[0].mxu0
        %2692 = vmatprep.mubr.f32.mxu0 %v2382
        %2693 = vmatmul.mubr.f32.gmra.mrb[0].mxu0 %v2381
        %v2694 = vpop.f32.mrb[0].mxu0
        %v2695 = vadd.f32 %v2566, %v2694
        %v2696 = vpop.f32.mrb[0].mxu0
        %2697 = vmatprep.mubr.f32.mxu0 %v2391
        %2698 = vmatmul.mubr.f32.gmra.mrb[0].mxu0 %v2390
        %v2699 = vpop.f32.mrb[0].mxu0
        %v2700 = vadd.f32 %v2566, %v2699
        %v2701 = vpop.f32.mrb[0].mxu0
        %2702 = vmatprep.mubr.f32.mxu0 %v2400
        %2703 = vmatmul.mubr.f32.gmra.mrb[0].mxu0 %v2399
        %v2704 = vpop.f32.mrb[0].mxu0
        %v2705 = vadd.f32 %v2566, %v2704
        %v2706 = vpop.f32.mrb[0].mxu0
        %2707 = vmatprep.mubr.f32.mxu0 %v2409
        %2708 = vmatmul.mubr.f32.gmra.mrb[0].mxu0 %v2408
        %v2709 = vpop.f32.mrb[0].mxu0
        %v2710 = vadd.f32 %v2566, %v2709
        %v2711 = vpop.f32.mrb[0].mxu0
        %2712 = vdwg.mxu0
        %2713 = vmatprep.subr.mxu0 0.0
        %2714 = vmatpush1.msra.mxu0 %v2449
        %2715 = vmatprep.subr.mxu0 0.0
        %2716 = vmatpush1.msra.mxu0 %v2450
        %2717 = vmatprep.subr.mxu0 0.0
        %2718 = vmatpush1.msra.mxu0 %v2451
        %2719 = vmatprep.subr.mxu0 0.0
        %2720 = vmatpush1.msra.mxu0 %v2452
        %2721 = vmatprep.subr.mxu0 0.0
        %2722 = vmatpush1.msra.mxu0 %v2453
        %2723 = vmatprep.subr.mxu0 0.0
        %2724 = vmatpush1.msra.mxu0 %v2454
        %2725 = vmatprep.subr.mxu0 0.0
        %2726 = vmatpush1.msra.mxu0 %v2455
        %2727 = vmatprep.subr.mxu0 0.0
        %2728 = vmatpush1.msra.mxu0 %v2456
        %2729 = vmatprep.subr.mxu0 0.0
        %2730 = vmatpush1.msra.mxu0 %v2457
        %2731 = vmatprep.subr.mxu0 0.0
        %2732 = vmatpush1.msra.mxu0 %v2458
        %2733 = vmatprep.subr.mxu0 0.0
        %2734 = vmatpush1.msra.mxu0 %v2459
        %2735 = vmatprep.subr.mxu0 0.0
        %2736 = vmatpush1.msra.mxu0 %v2460
        %2737 = vmatprep.subr.mxu0 0.0
        %2738 = vmatpush1.msra.mxu0 %v2461
        %2739 = vmatprep.subr.mxu0 0.0
        %2740 = vmatpush1.msra.mxu0 %v2462
        %2741 = vmatprep.subr.mxu0 0.0
        %2742 = vmatpush1.msra.mxu0 %v2463
        %2743 = vmatprep.subr.mxu0 0.0
        %2744 = vmatpush1.msra.mxu0 %v2464
        %2745 = vmatprep.subr.mxu0 0.0
        %2746 = vmatpush1.msra.mxu0 %v2465
        %2747 = vmatprep.subr.mxu0 0.0
        %2748 = vmatpush1.msra.mxu0 %v2466
        %2749 = vmatprep.subr.mxu0 0.0
        %2750 = vmatpush1.msra.mxu0 %v2467
        %2751 = vmatprep.subr.mxu0 0.0
        %2752 = vmatpush1.msra.mxu0 %v2468
        %2753 = vmatprep.subr.mxu0 0.0
        %2754 = vmatpush1.msra.mxu0 %v2469
        %2755 = vmatprep.subr.mxu0 0.0
        %2756 = vmatpush1.msra.mxu0 %v2470
        %2757 = vmatprep.subr.mxu0 0.0
        %2758 = vmatpush1.msra.mxu0 %v2471
        %2759 = vmatprep.subr.mxu0 0.0
        %2760 = vmatpush1.msra.mxu0 %v2472
        %2761 = vmatprep.subr.mxu0 0.0
        %2762 = vmatpush1.msra.mxu0 %v2473
        %2763 = vmatprep.subr.mxu0 0.0
        %2764 = vmatpush1.msra.mxu0 %v2474
        %2765 = vmatprep.subr.mxu0 0.0
        %2766 = vmatpush1.msra.mxu0 %v2475
        %2767 = vmatprep.subr.mxu0 0.0
        %2768 = vmatpush1.msra.mxu0 %v2476
        %2769 = vmatprep.subr.mxu0 0.0
        %2770 = vmatpush1.msra.mxu0 %v2477
        %2771 = vmatprep.subr.mxu0 0.0
        %2772 = vmatpush1.msra.mxu0 %v2478
        %2773 = vmatprep.subr.mxu0 0.0
        %2774 = vmatpush1.msra.mxu0 %v2479
        %2775 = vmatprep.subr.mxu0 0.0
        %2776 = vmatpush1.msra.mxu0 %v2480
        %2777 = vmatprep.mubr.f32.mxu0 %v2276
        %2778 = vmatmul.mubr.f32.gmra.mrb[0].mxu0 %v2275
        %v2779 = vpop.f32.mrb[0].mxu0
        %v2780 = vadd.f32 %v2635, %v2779
        %v2781 = vpop.f32.mrb[0].mxu0
        %2782 = vmatprep.mubr.f32.mxu0 %v2285
        %2783 = vmatmul.mubr.f32.gmra.mrb[0].mxu0 %v2284
        %v2784 = vpop.f32.mrb[0].mxu0
        %v2785 = vadd.f32 %v2640, %v2784
        %v2786 = vpop.f32.mrb[0].mxu0
        %2787 = vmatprep.mubr.f32.mxu0 %v2294
        %2788 = vmatmul.mubr.f32.gmra.mrb[0].mxu0 %v2293
        %v2789 = vpop.f32.mrb[0].mxu0
        %v2790 = vadd.f32 %v2645, %v2789
        %v2791 = vpop.f32.mrb[0].mxu0
        %2792 = vmatprep.mubr.f32.mxu0 %v2303
        %2793 = vmatmul.mubr.f32.gmra.mrb[0].mxu0 %v2302
        %v2794 = vpop.f32.mrb[0].mxu0
        %v2795 = vadd.f32 %v2650, %v2794
        %v2796 = vpop.f32.mrb[0].mxu0
        %2797 = vmatprep.mubr.f32.mxu0 %v2312
        %2798 = vmatmul.mubr.f32.gmra.mrb[0].mxu0 %v2311
        %v2799 = vpop.f32.mrb[0].mxu0
        %v2800 = vadd.f32 %v2655, %v2799
        %v2801 = vpop.f32.mrb[0].mxu0
        %2802 = vmatprep.mubr.f32.mxu0 %v2321
        %2803 = vmatmul.mubr.f32.gmra.mrb[0].mxu0 %v2320
        %v2804 = vpop.f32.mrb[0].mxu0
        %v2805 = vadd.f32 %v2660, %v2804
        %v2806 = vpop.f32.mrb[0].mxu0
        %2807 = vmatprep.mubr.f32.mxu0 %v2330
        %2808 = vmatmul.mubr.f32.gmra.mrb[0].mxu0 %v2329
        %v2809 = vpop.f32.mrb[0].mxu0
        %v2810 = vadd.f32 %v2665, %v2809
        %v2811 = vpop.f32.mrb[0].mxu0
        %2812 = vmatprep.mubr.f32.mxu0 %v2339
        %2813 = vmatmul.mubr.f32.gmra.mrb[0].mxu0 %v2338
        %v2814 = vpop.f32.mrb[0].mxu0
        %v2815 = vadd.f32 %v2670, %v2814
        %v2816 = vpop.f32.mrb[0].mxu0
        %2817 = vmatprep.mubr.f32.mxu0 %v2348
        %2818 = vmatmul.mubr.f32.gmra.mrb[0].mxu0 %v2347
        %v2819 = vpop.f32.mrb[0].mxu0
        %v2820 = vadd.f32 %v2675, %v2819
        %v2821 = vpop.f32.mrb[0].mxu0
        %2822 = vmatprep.mubr.f32.mxu0 %v2357
        %2823 = vmatmul.mubr.f32.gmra.mrb[0].mxu0 %v2356
        %v2824 = vpop.f32.mrb[0].mxu0
        %v2825 = vadd.f32 %v2680, %v2824
        %v2826 = vpop.f32.mrb[0].mxu0
        %2827 = vmatprep.mubr.f32.mxu0 %v2366
        %2828 = vmatmul.mubr.f32.gmra.mrb[0].mxu0 %v2365
        %v2829 = vpop.f32.mrb[0].mxu0
        %v2830 = vadd.f32 %v2685, %v2829
        %v2831 = vpop.f32.mrb[0].mxu0
        %2832 = vmatprep.mubr.f32.mxu0 %v2375
        %2833 = vmatmul.mubr.f32.gmra.mrb[0].mxu0 %v2374
        %v2834 = vpop.f32.mrb[0].mxu0
        %v2835 = vadd.f32 %v2690, %v2834
        %v2836 = vpop.f32.mrb[0].mxu0
        %2837 = vmatprep.mubr.f32.mxu0 %v2384
        %2838 = vmatmul.mubr.f32.gmra.mrb[0].mxu0 %v2383
        %v2839 = vpop.f32.mrb[0].mxu0
        %v2840 = vadd.f32 %v2695, %v2839
        %v2841 = vpop.f32.mrb[0].mxu0
        %2842 = vmatprep.mubr.f32.mxu0 %v2393
        %2843 = vmatmul.mubr.f32.gmra.mrb[0].mxu0 %v2392
        %v2844 = vpop.f32.mrb[0].mxu0
        %v2845 = vadd.f32 %v2700, %v2844
        %v2846 = vpop.f32.mrb[0].mxu0
        %2847 = vmatprep.mubr.f32.mxu0 %v2402
        %2848 = vmatmul.mubr.f32.gmra.mrb[0].mxu0 %v2401
        %v2849 = vpop.f32.mrb[0].mxu0
        %v2850 = vadd.f32 %v2705, %v2849
        %v2851 = vpop.f32.mrb[0].mxu0
        %2852 = vmatprep.mubr.f32.mxu0 %v2411
        %2853 = vmatmul.mubr.f32.gmra.mrb[0].mxu0 %v2410
        %v2854 = vpop.f32.mrb[0].mxu0
        %v2855 = vadd.f32 %v2710, %v2854
        %v2856 = vpop.f32.mrb[0].mxu0
        %2857 = vdwg.mxu0
        %2858 = vmatprep.subr.mxu0 0.0
        %2859 = vmatpush1.msra.mxu0 %v2481
        %2860 = vmatprep.subr.mxu0 0.0
        %2861 = vmatpush1.msra.mxu0 %v2482
        %2862 = vmatprep.subr.mxu0 0.0
        %2863 = vmatpush1.msra.mxu0 %v2483
        %2864 = vmatprep.subr.mxu0 0.0
        %2865 = vmatpush1.msra.mxu0 %v2484
        %2866 = vmatprep.subr.mxu0 0.0
        %2867 = vmatpush1.msra.mxu0 %v2485
        %2868 = vmatprep.subr.mxu0 0.0
        %2869 = vmatpush1.msra.mxu0 %v2486
        %2870 = vmatprep.subr.mxu0 0.0
        %2871 = vmatpush1.msra.mxu0 %v2487
        %2872 = vmatprep.subr.mxu0 0.0
        %2873 = vmatpush1.msra.mxu0 %v2488
        %2874 = vmatprep.subr.mxu0 0.0
        %2875 = vmatpush1.msra.mxu0 %v2489
        %2876 = vmatprep.subr.mxu0 0.0
        %2877 = vmatpush1.msra.mxu0 %v2490
        %2878 = vmatprep.subr.mxu0 0.0
        %2879 = vmatpush1.msra.mxu0 %v2491
        %2880 = vmatprep.subr.mxu0 0.0
        %2881 = vmatpush1.msra.mxu0 %v2492
        %2882 = vmatprep.subr.mxu0 0.0
        %2883 = vmatpush1.msra.mxu0 %v2493
        %2884 = vmatprep.subr.mxu0 0.0
        %2885 = vmatpush1.msra.mxu0 %v2494
        %2886 = vmatprep.subr.mxu0 0.0
        %2887 = vmatpush1.msra.mxu0 %v2495
        %2888 = vmatprep.subr.mxu0 0.0
        %2889 = vmatpush1.msra.mxu0 %v2496
        %2890 = vmatprep.subr.mxu0 0.0
        %2891 = vmatpush1.msra.mxu0 %v2497
        %2892 = vmatprep.subr.mxu0 0.0
        %2893 = vmatpush1.msra.mxu0 %v2498
        %2894 = vmatprep.subr.mxu0 0.0
        %2895 = vmatpush1.msra.mxu0 %v2499
        %2896 = vmatprep.subr.mxu0 0.0
        %2897 = vmatpush1.msra.mxu0 %v2500
        %2898 = vmatprep.subr.mxu0 0.0
        %2899 = vmatpush1.msra.mxu0 %v2501
        %2900 = vmatprep.subr.mxu0 0.0
        %2901 = vmatpush1.msra.mxu0 %v2502
        %2902 = vmatprep.subr.mxu0 0.0
        %2903 = vmatpush1.msra.mxu0 %v2503
        %2904 = vmatprep.subr.mxu0 0.0
        %2905 = vmatpush1.msra.mxu0 %v2504
        %2906 = vmatprep.subr.mxu0 0.0
        %2907 = vmatpush1.msra.mxu0 %v2505
        %2908 = vmatprep.subr.mxu0 0.0
        %2909 = vmatpush1.msra.mxu0 %v2506
        %2910 = vmatprep.subr.mxu0 0.0
        %2911 = vmatpush1.msra.mxu0 %v2507
        %2912 = vmatprep.subr.mxu0 0.0
        %2913 = vmatpush1.msra.mxu0 %v2508
        %2914 = vmatprep.subr.mxu0 0.0
        %2915 = vmatpush1.msra.mxu0 %v2509
        %2916 = vmatprep.subr.mxu0 0.0
        %2917 = vmatpush1.msra.mxu0 %v2510
        %2918 = vmatprep.subr.mxu0 0.0
        %2919 = vmatpush1.msra.mxu0 %v2511
        %2920 = vmatprep.subr.mxu0 0.0
        %2921 = vmatpush1.msra.mxu0 %v2512
        %2922 = vmatprep.mubr.f32.mxu0 %v2278
        %2923 = vmatmul.mubr.f32.gmra.mrb[0].mxu0 %v2277
        %v2924 = vpop.f32.mrb[0].mxu0
        %v2925 = vadd.f32 %v2780, %v2924
        %v2926 = vpop.f32.mrb[0].mxu0
        %2927 = vmatprep.mubr.f32.mxu0 %v2287
        %2928 = vmatmul.mubr.f32.gmra.mrb[0].mxu0 %v2286
        %v2929 = vpop.f32.mrb[0].mxu0
        %v2930 = vadd.f32 %v2785, %v2929
        %v2931 = vpop.f32.mrb[0].mxu0
        %2932 = vmatprep.mubr.f32.mxu0 %v2296
        %2933 = vmatmul.mubr.f32.gmra.mrb[0].mxu0 %v2295
        %v2934 = vpop.f32.mrb[0].mxu0
        %v2935 = vadd.f32 %v2790, %v2934
        %v2936 = vpop.f32.mrb[0].mxu0
        %2937 = vmatprep.mubr.f32.mxu0 %v2305
        %2938 = vmatmul.mubr.f32.gmra.mrb[0].mxu0 %v2304
        %v2939 = vpop.f32.mrb[0].mxu0
        %v2940 = vadd.f32 %v2795, %v2939
        %v2941 = vpop.f32.mrb[0].mxu0
        %2942 = vmatprep.mubr.f32.mxu0 %v2314
        %2943 = vmatmul.mubr.f32.gmra.mrb[0].mxu0 %v2313
        %v2944 = vpop.f32.mrb[0].mxu0
        %v2945 = vadd.f32 %v2800, %v2944
        %v2946 = vpop.f32.mrb[0].mxu0
        %2947 = vmatprep.mubr.f32.mxu0 %v2323
        %2948 = vmatmul.mubr.f32.gmra.mrb[0].mxu0 %v2322
        %v2949 = vpop.f32.mrb[0].mxu0
        %v2950 = vadd.f32 %v2805, %v2949
        %v2951 = vpop.f32.mrb[0].mxu0
        %2952 = vmatprep.mubr.f32.mxu0 %v2332
        %2953 = vmatmul.mubr.f32.gmra.mrb[0].mxu0 %v2331
        %v2954 = vpop.f32.mrb[0].mxu0
        %v2955 = vadd.f32 %v2810, %v2954
        %v2956 = vpop.f32.mrb[0].mxu0
        %2957 = vmatprep.mubr.f32.mxu0 %v2341
        %2958 = vmatmul.mubr.f32.gmra.mrb[0].mxu0 %v2340
        %v2959 = vpop.f32.mrb[0].mxu0
        %v2960 = vadd.f32 %v2815, %v2959
        %v2961 = vpop.f32.mrb[0].mxu0
        %2962 = vmatprep.mubr.f32.mxu0 %v2350
        %2963 = vmatmul.mubr.f32.gmra.mrb[0].mxu0 %v2349
        %v2964 = vpop.f32.mrb[0].mxu0
        %v2965 = vadd.f32 %v2820, %v2964
        %v2966 = vpop.f32.mrb[0].mxu0
        %2967 = vmatprep.mubr.f32.mxu0 %v2359
        %2968 = vmatmul.mubr.f32.gmra.mrb[0].mxu0 %v2358
        %v2969 = vpop.f32.mrb[0].mxu0
        %v2970 = vadd.f32 %v2825, %v2969
        %v2971 = vpop.f32.mrb[0].mxu0
        %2972 = vmatprep.mubr.f32.mxu0 %v2368
        %2973 = vmatmul.mubr.f32.gmra.mrb[0].mxu0 %v2367
        %v2974 = vpop.f32.mrb[0].mxu0
        %v2975 = vadd.f32 %v2830, %v2974
        %v2976 = vpop.f32.mrb[0].mxu0
        %2977 = vmatprep.mubr.f32.mxu0 %v2377
        %2978 = vmatmul.mubr.f32.gmra.mrb[0].mxu0 %v2376
        %v2979 = vpop.f32.mrb[0].mxu0
        %v2980 = vadd.f32 %v2835, %v2979
        %v2981 = vpop.f32.mrb[0].mxu0
        %2982 = vmatprep.mubr.f32.mxu0 %v2386
        %2983 = vmatmul.mubr.f32.gmra.mrb[0].mxu0 %v2385
        %v2984 = vpop.f32.mrb[0].mxu0
        %v2985 = vadd.f32 %v2840, %v2984
        %v2986 = vpop.f32.mrb[0].mxu0
        %2987 = vmatprep.mubr.f32.mxu0 %v2395
        %2988 = vmatmul.mubr.f32.gmra.mrb[0].mxu0 %v2394
        %v2989 = vpop.f32.mrb[0].mxu0
        %v2990 = vadd.f32 %v2845, %v2989
        %v2991 = vpop.f32.mrb[0].mxu0
        %2992 = vmatprep.mubr.f32.mxu0 %v2404
        %2993 = vmatmul.mubr.f32.gmra.mrb[0].mxu0 %v2403
        %v2994 = vpop.f32.mrb[0].mxu0
        %v2995 = vadd.f32 %v2850, %v2994
        %v2996 = vpop.f32.mrb[0].mxu0
        %2997 = vmatprep.mubr.f32.mxu0 %v2413
        %2998 = vmatmul.mubr.f32.gmra.mrb[0].mxu0 %v2412
        %v2999 = vpop.f32.mrb[0].mxu0
        %v3000 = vadd.f32 %v2855, %v2999
        %v3001 = vpop.f32.mrb[0].mxu0
        %3002 = vdwg.mxu0
        %3003 = vmatprep.subr.mxu0 0.0
        %3004 = vmatpush1.msra.mxu0 %v2513
        %3005 = vmatprep.subr.mxu0 0.0
        %3006 = vmatpush1.msra.mxu0 %v2514
        %3007 = vmatprep.subr.mxu0 0.0
        %3008 = vmatpush1.msra.mxu0 %v2515
        %3009 = vmatprep.subr.mxu0 0.0
        %3010 = vmatpush1.msra.mxu0 %v2516
        %3011 = vmatprep.subr.mxu0 0.0
        %3012 = vmatpush1.msra.mxu0 %v2517
        %3013 = vmatprep.subr.mxu0 0.0
        %3014 = vmatpush1.msra.mxu0 %v2518
        %3015 = vmatprep.subr.mxu0 0.0
        %3016 = vmatpush1.msra.mxu0 %v2519
        %3017 = vmatprep.subr.mxu0 0.0
        %3018 = vmatpush1.msra.mxu0 %v2520
        %3019 = vmatprep.subr.mxu0 0.0
        %3020 = vmatpush1.msra.mxu0 %v2521
        %3021 = vmatprep.subr.mxu0 0.0
        %3022 = vmatpush1.msra.mxu0 %v2522
        %3023 = vmatprep.subr.mxu0 0.0
        %3024 = vmatpush1.msra.mxu0 %v2523
        %3025 = vmatprep.subr.mxu0 0.0
        %3026 = vmatpush1.msra.mxu0 %v2524
        %3027 = vmatprep.subr.mxu0 0.0
        %3028 = vmatpush1.msra.mxu0 %v2525
        %3029 = vmatprep.subr.mxu0 0.0
        %3030 = vmatpush1.msra.mxu0 %v2526
        %3031 = vmatprep.subr.mxu0 0.0
        %3032 = vmatpush1.msra.mxu0 %v2527
        %3033 = vmatprep.subr.mxu0 0.0
        %3034 = vmatpush1.msra.mxu0 %v2528
        %3035 = vmatprep.subr.mxu0 0.0
        %3036 = vmatpush1.msra.mxu0 %v2529
        %3037 = vmatprep.subr.mxu0 0.0
        %3038 = vmatpush1.msra.mxu0 %v2530
        %3039 = vmatprep.subr.mxu0 0.0
        %3040 = vmatpush1.msra.mxu0 %v2531
        %3041 = vmatprep.subr.mxu0 0.0
        %3042 = vmatpush1.msra.mxu0 %v2532
        %3043 = vmatprep.subr.mxu0 0.0
        %3044 = vmatpush1.msra.mxu0 %v2533
        %3045 = vmatprep.subr.mxu0 0.0
        %3046 = vmatpush1.msra.mxu0 %v2534
        %3047 = vmatprep.subr.mxu0 0.0
        %3048 = vmatpush1.msra.mxu0 %v2535
        %3049 = vmatprep.subr.mxu0 0.0
        %3050 = vmatpush1.msra.mxu0 %v2536
        %3051 = vmatprep.subr.mxu0 0.0
        %3052 = vmatpush1.msra.mxu0 %v2537
        %3053 = vmatprep.subr.mxu0 0.0
        %3054 = vmatpush1.msra.mxu0 %v2538
        %3055 = vmatprep.subr.mxu0 0.0
        %3056 = vmatpush1.msra.mxu0 %v2539
        %3057 = vmatprep.subr.mxu0 0.0
        %3058 = vmatpush1.msra.mxu0 %v2540
        %3059 = vmatprep.subr.mxu0 0.0
        %3060 = vmatpush1.msra.mxu0 %v2541
        %3061 = vmatprep.subr.mxu0 0.0
        %3062 = vmatpush1.msra.mxu0 %v2542
        %3063 = vmatprep.subr.mxu0 0.0
        %3064 = vmatpush1.msra.mxu0 %v2543
        %3065 = vmatprep.subr.mxu0 0.0
        %3066 = vmatpush1.msra.mxu0 %v2544
        %3067 = vmatprep.mubr.f32.mxu0 %v2280
        %3068 = vmatmul.mubr.f32.gmra.mrb[0].mxu0 %v2279
        %v3069 = vpop.f32.mrb[0].mxu0
        %v3070 = vadd.f32 %v2925, %v3069
        %v3071 = vpop.f32.mrb[0].mxu0
        %3072 = vmatprep.mubr.f32.mxu0 %v2289
        %3073 = vmatmul.mubr.f32.gmra.mrb[0].mxu0 %v2288
        %v3074 = vpop.f32.mrb[0].mxu0
        %v3075 = vadd.f32 %v2930, %v3074
        %v3076 = vpop.f32.mrb[0].mxu0
        %3077 = vmatprep.mubr.f32.mxu0 %v2298
        %3078 = vmatmul.mubr.f32.gmra.mrb[0].mxu0 %v2297
        %v3079 = vpop.f32.mrb[0].mxu0
        %v3080 = vadd.f32 %v2935, %v3079
        %v3081 = vpop.f32.mrb[0].mxu0
        %3082 = vmatprep.mubr.f32.mxu0 %v2307
        %3083 = vmatmul.mubr.f32.gmra.mrb[0].mxu0 %v2306
        %v3084 = vpop.f32.mrb[0].mxu0
        %v3085 = vadd.f32 %v2940, %v3084
        %v3086 = vpop.f32.mrb[0].mxu0
        %3087 = vmatprep.mubr.f32.mxu0 %v2316
        %3088 = vmatmul.mubr.f32.gmra.mrb[0].mxu0 %v2315
        %v3089 = vpop.f32.mrb[0].mxu0
        %v3090 = vadd.f32 %v2945, %v3089
        %v3091 = vpop.f32.mrb[0].mxu0
        %3092 = vmatprep.mubr.f32.mxu0 %v2325
        %3093 = vmatmul.mubr.f32.gmra.mrb[0].mxu0 %v2324
        %v3094 = vpop.f32.mrb[0].mxu0
        %v3095 = vadd.f32 %v2950, %v3094
        %v3096 = vpop.f32.mrb[0].mxu0
        %3097 = vmatprep.mubr.f32.mxu0 %v2334
        %3098 = vmatmul.mubr.f32.gmra.mrb[0].mxu0 %v2333
        %v3099 = vpop.f32.mrb[0].mxu0
        %v3100 = vadd.f32 %v2955, %v3099
        %v3101 = vpop.f32.mrb[0].mxu0
        %3102 = vmatprep.mubr.f32.mxu0 %v2343
        %3103 = vmatmul.mubr.f32.gmra.mrb[0].mxu0 %v2342
        %v3104 = vpop.f32.mrb[0].mxu0
        %v3105 = vadd.f32 %v2960, %v3104
        %v3106 = vpop.f32.mrb[0].mxu0
        %3107 = vmatprep.mubr.f32.mxu0 %v2352
        %3108 = vmatmul.mubr.f32.gmra.mrb[0].mxu0 %v2351
        %v3109 = vpop.f32.mrb[0].mxu0
        %v3110 = vadd.f32 %v2965, %v3109
        %v3111 = vpop.f32.mrb[0].mxu0
        %3112 = vmatprep.mubr.f32.mxu0 %v2361
        %3113 = vmatmul.mubr.f32.gmra.mrb[0].mxu0 %v2360
        %v3114 = vpop.f32.mrb[0].mxu0
        %v3115 = vadd.f32 %v2970, %v3114
        %v3116 = vpop.f32.mrb[0].mxu0
        %3117 = vmatprep.mubr.f32.mxu0 %v2370
        %3118 = vmatmul.mubr.f32.gmra.mrb[0].mxu0 %v2369
        %v3119 = vpop.f32.mrb[0].mxu0
        %v3120 = vadd.f32 %v2975, %v3119
        %v3121 = vpop.f32.mrb[0].mxu0
        %3122 = vmatprep.mubr.f32.mxu0 %v2379
        %3123 = vmatmul.mubr.f32.gmra.mrb[0].mxu0 %v2378
        %v3124 = vpop.f32.mrb[0].mxu0
        %v3125 = vadd.f32 %v2980, %v3124
        %v3126 = vpop.f32.mrb[0].mxu0
        %3127 = vmatprep.mubr.f32.mxu0 %v2388
        %3128 = vmatmul.mubr.f32.gmra.mrb[0].mxu0 %v2387
        %v3129 = vpop.f32.mrb[0].mxu0
        %v3130 = vadd.f32 %v2985, %v3129
        %v3131 = vpop.f32.mrb[0].mxu0
        %3132 = vmatprep.mubr.f32.mxu0 %v2397
        %3133 = vmatmul.mubr.f32.gmra.mrb[0].mxu0 %v2396
        %v3134 = vpop.f32.mrb[0].mxu0
        %v3135 = vadd.f32 %v2990, %v3134
        %v3136 = vpop.f32.mrb[0].mxu0
        %3137 = vmatprep.mubr.f32.mxu0 %v2406
        %3138 = vmatmul.mubr.f32.gmra.mrb[0].mxu0 %v2405
        %v3139 = vpop.f32.mrb[0].mxu0
        %v3140 = vadd.f32 %v2995, %v3139
        %v3141 = vpop.f32.mrb[0].mxu0
        %3142 = vmatprep.mubr.f32.mxu0 %v2415
        %3143 = vmatmul.mubr.f32.gmra.mrb[0].mxu0 %v2414
        %v3144 = vpop.f32.mrb[0].mxu0
        %v3145 = vadd.f32 %v3000, %v3144
        %v3146 = vpop.f32.mrb[0].mxu0
        %3147 = vdwg.mxu0
        %3148 = vmatprep.subr.mxu0 0.0
        %3149 = vmatpush1.msra.mxu0 %v2545
        %3150 = vmatprep.subr.mxu0 0.0
        %3151 = vmatpush1.msra.mxu0 %v2546
        %3152 = vmatprep.subr.mxu0 0.0
        %3153 = vmatpush1.msra.mxu0 %v2547
        %3154 = vmatprep.subr.mxu0 0.0
        %3155 = vmatpush1.msra.mxu0 %v2548
        %3156 = vmatprep.subr.mxu0 0.0
        %3157 = vmatpush1.msra.mxu0 %v2549
        %3158 = vmatprep.subr.mxu0 0.0
        %3159 = vmatpush1.msra.mxu0 %v2550
        %3160 = vmatprep.subr.mxu0 0.0
        %3161 = vmatpush1.msra.mxu0 %v2551
        %3162 = vmatprep.subr.mxu0 0.0
        %3163 = vmatpush1.msra.mxu0 %v2552
        %3164 = vmatprep.subr.mxu0 0.0
        %3165 = vmatpush1.msra.mxu0 %v2553
        %3166 = vmatprep.subr.mxu0 0.0
        %3167 = vmatpush1.msra.mxu0 %v2554
        %3168 = vmatprep.subr.mxu0 0.0
        %3169 = vmatpush1.msra.mxu0 %v2555
        %3170 = vmatprep.subr.mxu0 0.0
        %3171 = vmatpush1.msra.mxu0 %v2556
        %3172 = vmatprep.subr.mxu0 0.0
        %3173 = vmatpush1.msra.mxu0 %v2557
        %3174 = vmatprep.subr.mxu0 0.0
        %3175 = vmatpush1.msra.mxu0 %v2558
        %3176 = vmatprep.subr.mxu0 0.0
        %3177 = vmatpush1.msra.mxu0 %v2559
        %3178 = vmatprep.subr.mxu0 0.0
        %3179 = vmatpush1.msra.mxu0 %v2560
        %3180 = vmatprep.subr.mxu0 0.0
        %3181 = vmatpush1.msra.mxu0 0.0
        %3182 = vmatprep.subr.mxu0 0.0
        %3183 = vmatpush1.msra.mxu0 0.0
        %3184 = vmatprep.subr.mxu0 0.0
        %3185 = vmatpush1.msra.mxu0 0.0
        %3186 = vmatprep.subr.mxu0 0.0
        %3187 = vmatpush1.msra.mxu0 0.0
        %3188 = vmatprep.subr.mxu0 0.0
        %3189 = vmatpush1.msra.mxu0 0.0
        %3190 = vmatprep.subr.mxu0 0.0
        %3191 = vmatpush1.msra.mxu0 0.0
        %3192 = vmatprep.subr.mxu0 0.0
        %3193 = vmatpush1.msra.mxu0 0.0
        %3194 = vmatprep.subr.mxu0 0.0
        %3195 = vmatpush1.msra.mxu0 0.0
        %3196 = vmatprep.subr.mxu0 0.0
        %3197 = vmatpush1.msra.mxu0 0.0
        %3198 = vmatprep.subr.mxu0 0.0
        %3199 = vmatpush1.msra.mxu0 0.0
        %3200 = vmatprep.subr.mxu0 0.0
        %3201 = vmatpush1.msra.mxu0 0.0
        %3202 = vmatprep.subr.mxu0 0.0
        %3203 = vmatpush1.msra.mxu0 0.0
        %3204 = vmatprep.subr.mxu0 0.0
        %3205 = vmatpush1.msra.mxu0 0.0
        %3206 = vmatprep.subr.mxu0 0.0
        %3207 = vmatpush1.msra.mxu0 0.0
        %3208 = vmatprep.subr.mxu0 0.0
        %3209 = vmatpush1.msra.mxu0 0.0
        %3210 = vmatprep.subr.mxu0 0.0
        %3211 = vmatpush1.msra.mxu0 0.0
        %3212 = vmatprep.mubr.f32.mxu0 0.0
        %3213 = vmatmul.mubr.f32.gmra.mrb[0].mxu0 %v2281
        %v3214 = vpop.f32.mrb[0].mxu0
        %v3215 = vadd.f32 %v3070, %v3214
        %v3216 = vpop.f32.mrb[0].mxu0
        %3217 = vmatprep.mubr.f32.mxu0 0.0
        %3218 = vmatmul.mubr.f32.gmra.mrb[0].mxu0 %v2290
        %v3219 = vpop.f32.mrb[0].mxu0
        %v3220 = vadd.f32 %v3075, %v3219
        %v3221 = vpop.f32.mrb[0].mxu0
        %3222 = vmatprep.mubr.f32.mxu0 0.0
        %3223 = vmatmul.mubr.f32.gmra.mrb[0].mxu0 %v2299
        %v3224 = vpop.f32.mrb[0].mxu0
        %v3225 = vadd.f32 %v3080, %v3224
        %v3226 = vpop.f32.mrb[0].mxu0
        %3227 = vmatprep.mubr.f32.mxu0 0.0
        %3228 = vmatmul.mubr.f32.gmra.mrb[0].mxu0 %v2308
        %v3229 = vpop.f32.mrb[0].mxu0
        %v3230 = vadd.f32 %v3085, %v3229
        %v3231 = vpop.f32.mrb[0].mxu0
        %3232 = vmatprep.mubr.f32.mxu0 0.0
        %3233 = vmatmul.mubr.f32.gmra.mrb[0].mxu0 %v2317
        %v3234 = vpop.f32.mrb[0].mxu0
        %v3235 = vadd.f32 %v3090, %v3234
        %v3236 = vpop.f32.mrb[0].mxu0
        %3237 = vmatprep.mubr.f32.mxu0 0.0
        %3238 = vmatmul.mubr.f32.gmra.mrb[0].mxu0 %v2326
        %v3239 = vpop.f32.mrb[0].mxu0
        %v3240 = vadd.f32 %v3095, %v3239
        %v3241 = vpop.f32.mrb[0].mxu0
        %3242 = vmatprep.mubr.f32.mxu0 0.0
        %3243 = vmatmul.mubr.f32.gmra.mrb[0].mxu0 %v2335
        %v3244 = vpop.f32.mrb[0].mxu0
        %v3245 = vadd.f32 %v3100, %v3244
        %v3246 = vpop.f32.mrb[0].mxu0
        %3247 = vmatprep.mubr.f32.mxu0 0.0
        %3248 = vmatmul.mubr.f32.gmra.mrb[0].mxu0 %v2344
        %v3249 = vpop.f32.mrb[0].mxu0
        %v3250 = vadd.f32 %v3105, %v3249
        %v3251 = vpop.f32.mrb[0].mxu0
        %3252 = vmatprep.mubr.f32.mxu0 0.0
        %3253 = vmatmul.mubr.f32.gmra.mrb[0].mxu0 %v2353
        %v3254 = vpop.f32.mrb[0].mxu0
        %v3255 = vadd.f32 %v3110, %v3254
        %v3256 = vpop.f32.mrb[0].mxu0
        %3257 = vmatprep.mubr.f32.mxu0 0.0
        %3258 = vmatmul.mubr.f32.gmra.mrb[0].mxu0 %v2362
        %v3259 = vpop.f32.mrb[0].mxu0
        %v3260 = vadd.f32 %v3115, %v3259
        %v3261 = vpop.f32.mrb[0].mxu0
        %3262 = vmatprep.mubr.f32.mxu0 0.0
        %3263 = vmatmul.mubr.f32.gmra.mrb[0].mxu0 %v2371
        %v3264 = vpop.f32.mrb[0].mxu0
        %v3265 = vadd.f32 %v3120, %v3264
        %v3266 = vpop.f32.mrb[0].mxu0
        %3267 = vmatprep.mubr.f32.mxu0 0.0
        %3268 = vmatmul.mubr.f32.gmra.mrb[0].mxu0 %v2380
        %v3269 = vpop.f32.mrb[0].mxu0
        %v3270 = vadd.f32 %v3125, %v3269
        %v3271 = vpop.f32.mrb[0].mxu0
        %3272 = vmatprep.mubr.f32.mxu0 0.0
        %3273 = vmatmul.mubr.f32.gmra.mrb[0].mxu0 %v2389
        %v3274 = vpop.f32.mrb[0].mxu0
        %v3275 = vadd.f32 %v3130, %v3274
        %v3276 = vpop.f32.mrb[0].mxu0
        %3277 = vmatprep.mubr.f32.mxu0 0.0
        %3278 = vmatmul.mubr.f32.gmra.mrb[0].mxu0 %v2398
        %v3279 = vpop.f32.mrb[0].mxu0
        %v3280 = vadd.f32 %v3135, %v3279
        %v3281 = vpop.f32.mrb[0].mxu0
        %3282 = vmatprep.mubr.f32.mxu0 0.0
        %3283 = vmatmul.mubr.f32.gmra.mrb[0].mxu0 %v2407
        %v3284 = vpop.f32.mrb[0].mxu0
        %v3285 = vadd.f32 %v3140, %v3284
        %v3286 = vpop.f32.mrb[0].mxu0
        %3287 = vmatprep.mubr.f32.mxu0 0.0
        %3288 = vmatmul.mubr.f32.gmra.mrb[0].mxu0 %v2416
        %v3289 = vpop.f32.mrb[0].mxu0
        %v3290 = vadd.f32 %v3145, %v3289
        %v3291 = vpop.f32.mrb[0].mxu0
        %3292 = vdwg.mxu0
        %v3293 = vmax.f32 %v3215, 0.0
        %v3294 = vmax.f32 %v3220, 0.0
        %v3295 = vmax.f32 %v3225, 0.0
        %v3296 = vmax.f32 %v3230, 0.0
        %v3297 = vmax.f32 %v3235, 0.0
        %v3298 = vmax.f32 %v3240, 0.0
        %v3299 = vmax.f32 %v3245, 0.0
        %v3300 = vmax.f32 %v3250, 0.0
        %v3301 = vmax.f32 %v3255, 0.0
        %v3302 = vmax.f32 %v3260, 0.0
        %v3303 = vmax.f32 %v3265, 0.0
        %v3304 = vmax.f32 %v3270, 0.0
        %v3305 = vmax.f32 %v3275, 0.0
        %v3306 = vmax.f32 %v3280, 0.0
        %v3307 = vmax.f32 %v3285, 0.0
        %v3308 = vmax.f32 %v3290, 0.0
        %3309 = vst [vmem:[#allocation3 + $0x18] sm:$0xff] %v3293
        %3310 = vst [vmem:[#allocation3 + $0x38] sm:$0xff] %v3294
        %3311 = vst [vmem:[#allocation3 + $0x58] sm:$0xff] %v3295
        %3312 = vst [vmem:[#allocation3 + $0x78] sm:$0xff] %v3296
        %3313 = vst [vmem:[#allocation3 + $0x98] sm:$0xff] %v3297
        %3314 = vst [vmem:[#allocation3 + $0xb8] sm:$0xff] %v3298
        %3315 = vst [vmem:[#allocation3 + $0xd8] sm:$0xff] %v3299
        %3316 = vst [vmem:[#allocation3 + $0xf8] sm:$0xff] %v3300
        %3317 = vst [vmem:[#allocation3 + $0x118] sm:$0xff] %v3301
        %3318 = vst [vmem:[#allocation3 + $0x138] sm:$0xff] %v3302
        %3319 = vst [vmem:[#allocation3 + $0x158] sm:$0xff] %v3303
        %3320 = vst [vmem:[#allocation3 + $0x178] sm:$0xff] %v3304
        %3321 = vst [vmem:[#allocation3 + $0x198] sm:$0xff] %v3305
        %3322 = vst [vmem:[#allocation3 + $0x1b8] sm:$0xff] %v3306
        %3323 = vst [vmem:[#allocation3 + $0x1d8] sm:$0xff] %v3307
        %3324 = vst [vmem:[#allocation3 + $0x1f8] sm:$0xff] %v3308
        %v3325 = vld [vmem:[#allocation3] sm:$0xff]
        %v3326 = vld [vmem:[#allocation3 + $0x8] sm:$0xff]
        %v3327 = vld [vmem:[#allocation3 + $0x10] sm:$0xff]
        %v3328 = vld [vmem:[#allocation3 + $0x18] sm:$0xff]
        %v3329 = vld [vmem:[#allocation3 + $0x20] sm:$0xff]
        %v3330 = vld [vmem:[#allocation3 + $0x28] sm:$0xff]
        %v3331 = vld [vmem:[#allocation3 + $0x30] sm:$0xff]
        %v3332 = vld [vmem:[#allocation3 + $0x38] sm:$0xff]
        %v3333 = vld [vmem:[#allocation3 + $0x40] sm:$0xff]
        %v3334 = vld [vmem:[#allocation3 + $0x48] sm:$0xff]
        %v3335 = vld [vmem:[#allocation3 + $0x50] sm:$0xff]
        %v3336 = vld [vmem:[#allocation3 + $0x58] sm:$0xff]
        %v3337 = vld [vmem:[#allocation3 + $0x60] sm:$0xff]
        %v3338 = vld [vmem:[#allocation3 + $0x68] sm:$0xff]
        %v3339 = vld [vmem:[#allocation3 + $0x70] sm:$0xff]
        %v3340 = vld [vmem:[#allocation3 + $0x78] sm:$0xff]
        %v3341 = vld [vmem:[#allocation3 + $0x80] sm:$0xff]
        %v3342 = vld [vmem:[#allocation3 + $0x88] sm:$0xff]
        %v3343 = vld [vmem:[#allocation3 + $0x90] sm:$0xff]
        %v3344 = vld [vmem:[#allocation3 + $0x98] sm:$0xff]
        %v3345 = vld [vmem:[#allocation3 + $0xa0] sm:$0xff]
        %v3346 = vld [vmem:[#allocation3 + $0xa8] sm:$0xff]
        %v3347 = vld [vmem:[#allocation3 + $0xb0] sm:$0xff]
        %v3348 = vld [vmem:[#allocation3 + $0xb8] sm:$0xff]
        %v3349 = vld [vmem:[#allocation3 + $0xc0] sm:$0xff]
        %v3350 = vld [vmem:[#allocation3 + $0xc8] sm:$0xff]
        %v3351 = vld [vmem:[#allocation3 + $0xd0] sm:$0xff]
        %v3352 = vld [vmem:[#allocation3 + $0xd8] sm:$0xff]
        %v3353 = vld [vmem:[#allocation3 + $0xe0] sm:$0xff]
        %v3354 = vld [vmem:[#allocation3 + $0xe8] sm:$0xff]
        %v3355 = vld [vmem:[#allocation3 + $0xf0] sm:$0xff]
        %v3356 = vld [vmem:[#allocation3 + $0xf8] sm:$0xff]
        %v3357 = vld [vmem:[#allocation3 + $0x100] sm:$0xff]
        %v3358 = vld [vmem:[#allocation3 + $0x108] sm:$0xff]
        %v3359 = vld [vmem:[#allocation3 + $0x110] sm:$0xff]
        %v3360 = vld [vmem:[#allocation3 + $0x118] sm:$0xff]
        %v3361 = vld [vmem:[#allocation3 + $0x120] sm:$0xff]
        %v3362 = vld [vmem:[#allocation3 + $0x128] sm:$0xff]
        %v3363 = vld [vmem:[#allocation3 + $0x130] sm:$0xff]
        %v3364 = vld [vmem:[#allocation3 + $0x138] sm:$0xff]
        %v3365 = vld [vmem:[#allocation3 + $0x140] sm:$0xff]
        %v3366 = vld [vmem:[#allocation3 + $0x148] sm:$0xff]
        %v3367 = vld [vmem:[#allocation3 + $0x150] sm:$0xff]
        %v3368 = vld [vmem:[#allocation3 + $0x158] sm:$0xff]
        %v3369 = vld [vmem:[#allocation3 + $0x160] sm:$0xff]
        %v3370 = vld [vmem:[#allocation3 + $0x168] sm:$0xff]
        %v3371 = vld [vmem:[#allocation3 + $0x170] sm:$0xff]
        %v3372 = vld [vmem:[#allocation3 + $0x178] sm:$0xff]
        %v3373 = vld [vmem:[#allocation3 + $0x180] sm:$0xff]
        %v3374 = vld [vmem:[#allocation3 + $0x188] sm:$0xff]
        %v3375 = vld [vmem:[#allocation3 + $0x190] sm:$0xff]
        %v3376 = vld [vmem:[#allocation3 + $0x198] sm:$0xff]
        %v3377 = vld [vmem:[#allocation3 + $0x1a0] sm:$0xff]
        %v3378 = vld [vmem:[#allocation3 + $0x1a8] sm:$0xff]
        %v3379 = vld [vmem:[#allocation3 + $0x1b0] sm:$0xff]
        %v3380 = vld [vmem:[#allocation3 + $0x1b8] sm:$0xff]
        %v3381 = vld [vmem:[#allocation3 + $0x1c0] sm:$0xff]
        %v3382 = vld [vmem:[#allocation3 + $0x1c8] sm:$0xff]
        %v3383 = vld [vmem:[#allocation3 + $0x1d0] sm:$0xff]
        %v3384 = vld [vmem:[#allocation3 + $0x1d8] sm:$0xff]
        %v3385 = vld [vmem:[#allocation3 + $0x1e0] sm:$0xff]
        %v3386 = vld [vmem:[#allocation3 + $0x1e8] sm:$0xff]
        %v3387 = vld [vmem:[#allocation3 + $0x1f0] sm:$0xff]
        %v3388 = vld [vmem:[#allocation3 + $0x1f8] sm:$0xff]
        %v3389 = vld [vmem:[#allocation12] sm:$0xff]
        %v3390 = vld [vmem:[#allocation12 + $0x8] sm:$0xff]
        %v3391 = vld [vmem:[#allocation12 + $0x10] sm:$0xff]
        %v3392 = vld [vmem:[#allocation12 + $0x18] sm:$0xff]
        %v3393 = vld [vmem:[#allocation12 + $0x20] sm:$0xff]
        %v3394 = vld [vmem:[#allocation12 + $0x28] sm:$0xff]
        %v3395 = vld [vmem:[#allocation12 + $0x30] sm:$0xff]
        %v3396 = vld [vmem:[#allocation12 + $0x38] sm:$0xff]
        %v3397 = vld [vmem:[#allocation12 + $0x40] sm:$0xff]
        %v3398 = vld [vmem:[#allocation12 + $0x48] sm:$0xff]
        %v3399 = vld [vmem:[#allocation12 + $0x50] sm:$0xff]
        %v3400 = vld [vmem:[#allocation12 + $0x58] sm:$0xff]
        %v3401 = vld [vmem:[#allocation12 + $0x60] sm:$0xff]
        %v3402 = vld [vmem:[#allocation12 + $0x68] sm:$0xff]
        %v3403 = vld [vmem:[#allocation12 + $0x70] sm:$0xff]
        %v3404 = vld [vmem:[#allocation12 + $0x78] sm:$0xff]
        %v3405 = vld [vmem:[#allocation12 + $0x80] sm:$0xff]
        %v3406 = vld [vmem:[#allocation12 + $0x88] sm:$0xff]
        %v3407 = vld [vmem:[#allocation12 + $0x90] sm:$0xff]
        %v3408 = vld [vmem:[#allocation12 + $0x98] sm:$0xff]
        %v3409 = vld [vmem:[#allocation12 + $0xa0] sm:$0xff]
        %v3410 = vld [vmem:[#allocation12 + $0xa8] sm:$0xff]
        %v3411 = vld [vmem:[#allocation12 + $0xb0] sm:$0xff]
        %v3412 = vld [vmem:[#allocation12 + $0xb8] sm:$0xff]
        %v3413 = vld [vmem:[#allocation12 + $0xc0] sm:$0xff]
        %v3414 = vld [vmem:[#allocation12 + $0xc8] sm:$0xff]
        %v3415 = vld [vmem:[#allocation12 + $0xd0] sm:$0xff]
        %v3416 = vld [vmem:[#allocation12 + $0xd8] sm:$0xff]
        %v3417 = vld [vmem:[#allocation12 + $0xe0] sm:$0xff]
        %v3418 = vld [vmem:[#allocation12 + $0xe8] sm:$0xff]
        %v3419 = vld [vmem:[#allocation12 + $0xf0] sm:$0xff]
        %v3420 = vld [vmem:[#allocation12 + $0xf8] sm:$0xff]
        %v3421 = vld [vmem:[#allocation12 + $0x100] sm:$0xff]
        %v3422 = vld [vmem:[#allocation12 + $0x108] sm:$0xff]
        %v3423 = vld [vmem:[#allocation12 + $0x110] sm:$0xff]
        %v3424 = vld [vmem:[#allocation12 + $0x118] sm:$0xff]
        %v3425 = vld [vmem:[#allocation12 + $0x120] sm:$0xff]
        %v3426 = vld [vmem:[#allocation12 + $0x128] sm:$0xff]
        %v3427 = vld [vmem:[#allocation12 + $0x130] sm:$0xff]
        %v3428 = vld [vmem:[#allocation12 + $0x138] sm:$0xff]
        %v3429 = vld [vmem:[#allocation12 + $0x140] sm:$0xff]
        %v3430 = vld [vmem:[#allocation12 + $0x148] sm:$0xff]
        %v3431 = vld [vmem:[#allocation12 + $0x150] sm:$0xff]
        %v3432 = vld [vmem:[#allocation12 + $0x158] sm:$0xff]
        %v3433 = vld [vmem:[#allocation12 + $0x160] sm:$0xff]
        %v3434 = vld [vmem:[#allocation12 + $0x168] sm:$0xff]
        %v3435 = vld [vmem:[#allocation12 + $0x170] sm:$0xff]
        %v3436 = vld [vmem:[#allocation12 + $0x178] sm:$0xff]
        %v3437 = vld [vmem:[#allocation12 + $0x180] sm:$0xff]
        %v3438 = vld [vmem:[#allocation12 + $0x188] sm:$0xff]
        %v3439 = vld [vmem:[#allocation12 + $0x190] sm:$0xff]
        %v3440 = vld [vmem:[#allocation12 + $0x198] sm:$0xff]
        %v3441 = vld [vmem:[#allocation12 + $0x1a0] sm:$0xff]
        %v3442 = vld [vmem:[#allocation12 + $0x1a8] sm:$0xff]
        %v3443 = vld [vmem:[#allocation12 + $0x1b0] sm:$0xff]
        %v3444 = vld [vmem:[#allocation12 + $0x1b8] sm:$0xff]
        %v3445 = vld [vmem:[#allocation12 + $0x1c0] sm:$0xff]
        %v3446 = vld [vmem:[#allocation12 + $0x1c8] sm:$0xff]
        %v3447 = vld [vmem:[#allocation12 + $0x1d0] sm:$0xff]
        %v3448 = vld [vmem:[#allocation12 + $0x1d8] sm:$0xff]
        %v3449 = vld [vmem:[#allocation12 + $0x1e0] sm:$0xff]
        %v3450 = vld [vmem:[#allocation12 + $0x1e8] sm:$0xff]
        %v3451 = vld [vmem:[#allocation12 + $0x1f0] sm:$0xff]
        %v3452 = vld [vmem:[#allocation12 + $0x1f8] sm:$0xff]
        %v3453 = vld [vmem:[%s8] sm:$0x1]
        %v3455 = vlaneseq
        %v3456 = vshrl.u32 %v3455, 7
        %v3457 = vsub.s32 0, %v3456
        %v3458 = vrot.slane %v3453, %v3457
        %3460 = vmatprep.subr.mxu0 0.0
        %3461 = vmatpush1.msra.mxu0 %v3389
        %3462 = vmatprep.subr.mxu0 0.0
        %3463 = vmatpush1.msra.mxu0 %v3390
        %3464 = vmatprep.subr.mxu0 0.0
        %3465 = vmatpush1.msra.mxu0 %v3391
        %3466 = vmatprep.subr.mxu0 0.0
        %3467 = vmatpush1.msra.mxu0 %v3392
        %3468 = vmatprep.subr.mxu0 0.0
        %3469 = vmatpush1.msra.mxu0 %v3393
        %3470 = vmatprep.subr.mxu0 0.0
        %3471 = vmatpush1.msra.mxu0 %v3394
        %3472 = vmatprep.subr.mxu0 0.0
        %3473 = vmatpush1.msra.mxu0 %v3395
        %3474 = vmatprep.subr.mxu0 0.0
        %3475 = vmatpush1.msra.mxu0 %v3396
        %3476 = vmatprep.subr.mxu0 0.0
        %3477 = vmatpush1.msra.mxu0 %v3397
        %3478 = vmatprep.subr.mxu0 0.0
        %3479 = vmatpush1.msra.mxu0 %v3398
        %3480 = vmatprep.subr.mxu0 0.0
        %3481 = vmatpush1.msra.mxu0 %v3399
        %3482 = vmatprep.subr.mxu0 0.0
        %3483 = vmatpush1.msra.mxu0 %v3400
        %3484 = vmatprep.subr.mxu0 0.0
        %3485 = vmatpush1.msra.mxu0 %v3401
        %3486 = vmatprep.subr.mxu0 0.0
        %3487 = vmatpush1.msra.mxu0 %v3402
        %3488 = vmatprep.subr.mxu0 0.0
        %3489 = vmatpush1.msra.mxu0 %v3403
        %3490 = vmatprep.subr.mxu0 0.0
        %3491 = vmatpush1.msra.mxu0 %v3404
        %3492 = vmatprep.subr.mxu0 0.0
        %3493 = vmatpush1.msra.mxu0 %v3405
        %3494 = vmatprep.subr.mxu0 0.0
        %3495 = vmatpush1.msra.mxu0 %v3406
        %3496 = vmatprep.subr.mxu0 0.0
        %3497 = vmatpush1.msra.mxu0 %v3407
        %3498 = vmatprep.subr.mxu0 0.0
        %3499 = vmatpush1.msra.mxu0 %v3408
        %3500 = vmatprep.subr.mxu0 0.0
        %3501 = vmatpush1.msra.mxu0 %v3409
        %3502 = vmatprep.subr.mxu0 0.0
        %3503 = vmatpush1.msra.mxu0 %v3410
        %3504 = vmatprep.subr.mxu0 0.0
        %3505 = vmatpush1.msra.mxu0 %v3411
        %3506 = vmatprep.subr.mxu0 0.0
        %3507 = vmatpush1.msra.mxu0 %v3412
        %3508 = vmatprep.subr.mxu0 0.0
        %3509 = vmatpush1.msra.mxu0 %v3413
        %3510 = vmatprep.subr.mxu0 0.0
        %3511 = vmatpush1.msra.mxu0 %v3414
        %3512 = vmatprep.subr.mxu0 0.0
        %3513 = vmatpush1.msra.mxu0 %v3415
        %3514 = vmatprep.subr.mxu0 0.0
        %3515 = vmatpush1.msra.mxu0 %v3416
        %3516 = vmatprep.subr.mxu0 0.0
        %3517 = vmatpush1.msra.mxu0 %v3417
        %3518 = vmatprep.subr.mxu0 0.0
        %3519 = vmatpush1.msra.mxu0 %v3418
        %3520 = vmatprep.subr.mxu0 0.0
        %3521 = vmatpush1.msra.mxu0 %v3419
        %3522 = vmatprep.subr.mxu0 0.0
        %3523 = vmatpush1.msra.mxu0 %v3420
        %3524 = vmatprep.mubr.f32.mxu0 %v3326
        %3525 = vmatmul.mubr.f32.gmra.mrb[0].mxu0 %v3325
        %v3526 = vpop.f32.mrb[0].mxu0
        %v3527 = vadd.f32 %v3458, %v3526
        %v3528 = vpop.f32.mrb[0].mxu0
        %3529 = vmatprep.mubr.f32.mxu0 %v3330
        %3530 = vmatmul.mubr.f32.gmra.mrb[0].mxu0 %v3329
        %v3531 = vpop.f32.mrb[0].mxu0
        %v3532 = vadd.f32 %v3458, %v3531
        %v3533 = vpop.f32.mrb[0].mxu0
        %3534 = vmatprep.mubr.f32.mxu0 %v3334
        %3535 = vmatmul.mubr.f32.gmra.mrb[0].mxu0 %v3333
        %v3536 = vpop.f32.mrb[0].mxu0
        %v3537 = vadd.f32 %v3458, %v3536
        %v3538 = vpop.f32.mrb[0].mxu0
        %3539 = vmatprep.mubr.f32.mxu0 %v3338
        %3540 = vmatmul.mubr.f32.gmra.mrb[0].mxu0 %v3337
        %v3541 = vpop.f32.mrb[0].mxu0
        %v3542 = vadd.f32 %v3458, %v3541
        %v3543 = vpop.f32.mrb[0].mxu0
        %3544 = vmatprep.mubr.f32.mxu0 %v3342
        %3545 = vmatmul.mubr.f32.gmra.mrb[0].mxu0 %v3341
        %v3546 = vpop.f32.mrb[0].mxu0
        %v3547 = vadd.f32 %v3458, %v3546
        %v3548 = vpop.f32.mrb[0].mxu0
        %3549 = vmatprep.mubr.f32.mxu0 %v3346
        %3550 = vmatmul.mubr.f32.gmra.mrb[0].mxu0 %v3345
        %v3551 = vpop.f32.mrb[0].mxu0
        %v3552 = vadd.f32 %v3458, %v3551
        %v3553 = vpop.f32.mrb[0].mxu0
        %3554 = vmatprep.mubr.f32.mxu0 %v3350
        %3555 = vmatmul.mubr.f32.gmra.mrb[0].mxu0 %v3349
        %v3556 = vpop.f32.mrb[0].mxu0
        %v3557 = vadd.f32 %v3458, %v3556
        %v3558 = vpop.f32.mrb[0].mxu0
        %3559 = vmatprep.mubr.f32.mxu0 %v3354
        %3560 = vmatmul.mubr.f32.gmra.mrb[0].mxu0 %v3353
        %v3561 = vpop.f32.mrb[0].mxu0
        %v3562 = vadd.f32 %v3458, %v3561
        %v3563 = vpop.f32.mrb[0].mxu0
        %3564 = vmatprep.mubr.f32.mxu0 %v3358
        %3565 = vmatmul.mubr.f32.gmra.mrb[0].mxu0 %v3357
        %v3566 = vpop.f32.mrb[0].mxu0
        %v3567 = vadd.f32 %v3458, %v3566
        %v3568 = vpop.f32.mrb[0].mxu0
        %3569 = vmatprep.mubr.f32.mxu0 %v3362
        %3570 = vmatmul.mubr.f32.gmra.mrb[0].mxu0 %v3361
        %v3571 = vpop.f32.mrb[0].mxu0
        %v3572 = vadd.f32 %v3458, %v3571
        %v3573 = vpop.f32.mrb[0].mxu0
        %3574 = vmatprep.mubr.f32.mxu0 %v3366
        %3575 = vmatmul.mubr.f32.gmra.mrb[0].mxu0 %v3365
        %v3576 = vpop.f32.mrb[0].mxu0
        %v3577 = vadd.f32 %v3458, %v3576
        %v3578 = vpop.f32.mrb[0].mxu0
        %3579 = vmatprep.mubr.f32.mxu0 %v3370
        %3580 = vmatmul.mubr.f32.gmra.mrb[0].mxu0 %v3369
        %v3581 = vpop.f32.mrb[0].mxu0
        %v3582 = vadd.f32 %v3458, %v3581
        %v3583 = vpop.f32.mrb[0].mxu0
        %3584 = vmatprep.mubr.f32.mxu0 %v3374
        %3585 = vmatmul.mubr.f32.gmra.mrb[0].mxu0 %v3373
        %v3586 = vpop.f32.mrb[0].mxu0
        %v3587 = vadd.f32 %v3458, %v3586
        %v3588 = vpop.f32.mrb[0].mxu0
        %3589 = vmatprep.mubr.f32.mxu0 %v3378
        %3590 = vmatmul.mubr.f32.gmra.mrb[0].mxu0 %v3377
        %v3591 = vpop.f32.mrb[0].mxu0
        %v3592 = vadd.f32 %v3458, %v3591
        %v3593 = vpop.f32.mrb[0].mxu0
        %3594 = vmatprep.mubr.f32.mxu0 %v3382
        %3595 = vmatmul.mubr.f32.gmra.mrb[0].mxu0 %v3381
        %v3596 = vpop.f32.mrb[0].mxu0
        %v3597 = vadd.f32 %v3458, %v3596
        %v3598 = vpop.f32.mrb[0].mxu0
        %3599 = vmatprep.mubr.f32.mxu0 %v3386
        %3600 = vmatmul.mubr.f32.gmra.mrb[0].mxu0 %v3385
        %v3601 = vpop.f32.mrb[0].mxu0
        %v3602 = vadd.f32 %v3458, %v3601
        %v3603 = vpop.f32.mrb[0].mxu0
        %3604 = vdwg.mxu0
        %3605 = vmatprep.subr.mxu0 0.0
        %3606 = vmatpush1.msra.mxu0 %v3421
        %3607 = vmatprep.subr.mxu0 0.0
        %3608 = vmatpush1.msra.mxu0 %v3422
        %3609 = vmatprep.subr.mxu0 0.0
        %3610 = vmatpush1.msra.mxu0 %v3423
        %3611 = vmatprep.subr.mxu0 0.0
        %3612 = vmatpush1.msra.mxu0 %v3424
        %3613 = vmatprep.subr.mxu0 0.0
        %3614 = vmatpush1.msra.mxu0 %v3425
        %3615 = vmatprep.subr.mxu0 0.0
        %3616 = vmatpush1.msra.mxu0 %v3426
        %3617 = vmatprep.subr.mxu0 0.0
        %3618 = vmatpush1.msra.mxu0 %v3427
        %3619 = vmatprep.subr.mxu0 0.0
        %3620 = vmatpush1.msra.mxu0 %v3428
        %3621 = vmatprep.subr.mxu0 0.0
        %3622 = vmatpush1.msra.mxu0 %v3429
        %3623 = vmatprep.subr.mxu0 0.0
        %3624 = vmatpush1.msra.mxu0 %v3430
        %3625 = vmatprep.subr.mxu0 0.0
        %3626 = vmatpush1.msra.mxu0 %v3431
        %3627 = vmatprep.subr.mxu0 0.0
        %3628 = vmatpush1.msra.mxu0 %v3432
        %3629 = vmatprep.subr.mxu0 0.0
        %3630 = vmatpush1.msra.mxu0 %v3433
        %3631 = vmatprep.subr.mxu0 0.0
        %3632 = vmatpush1.msra.mxu0 %v3434
        %3633 = vmatprep.subr.mxu0 0.0
        %3634 = vmatpush1.msra.mxu0 %v3435
        %3635 = vmatprep.subr.mxu0 0.0
        %3636 = vmatpush1.msra.mxu0 %v3436
        %3637 = vmatprep.subr.mxu0 0.0
        %3638 = vmatpush1.msra.mxu0 %v3437
        %3639 = vmatprep.subr.mxu0 0.0
        %3640 = vmatpush1.msra.mxu0 %v3438
        %3641 = vmatprep.subr.mxu0 0.0
        %3642 = vmatpush1.msra.mxu0 %v3439
        %3643 = vmatprep.subr.mxu0 0.0
        %3644 = vmatpush1.msra.mxu0 %v3440
        %3645 = vmatprep.subr.mxu0 0.0
        %3646 = vmatpush1.msra.mxu0 %v3441
        %3647 = vmatprep.subr.mxu0 0.0
        %3648 = vmatpush1.msra.mxu0 %v3442
        %3649 = vmatprep.subr.mxu0 0.0
        %3650 = vmatpush1.msra.mxu0 %v3443
        %3651 = vmatprep.subr.mxu0 0.0
        %3652 = vmatpush1.msra.mxu0 %v3444
        %3653 = vmatprep.subr.mxu0 0.0
        %3654 = vmatpush1.msra.mxu0 %v3445
        %3655 = vmatprep.subr.mxu0 0.0
        %3656 = vmatpush1.msra.mxu0 %v3446
        %3657 = vmatprep.subr.mxu0 0.0
        %3658 = vmatpush1.msra.mxu0 %v3447
        %3659 = vmatprep.subr.mxu0 0.0
        %3660 = vmatpush1.msra.mxu0 %v3448
        %3661 = vmatprep.subr.mxu0 0.0
        %3662 = vmatpush1.msra.mxu0 %v3449
        %3663 = vmatprep.subr.mxu0 0.0
        %3664 = vmatpush1.msra.mxu0 %v3450
        %3665 = vmatprep.subr.mxu0 0.0
        %3666 = vmatpush1.msra.mxu0 %v3451
        %3667 = vmatprep.subr.mxu0 0.0
        %3668 = vmatpush1.msra.mxu0 %v3452
        %3669 = vmatprep.mubr.f32.mxu0 %v3328
        %3670 = vmatmul.mubr.f32.gmra.mrb[0].mxu0 %v3327
        %v3671 = vpop.f32.mrb[0].mxu0
        %v3672 = vadd.f32 %v3527, %v3671
        %v3673 = vpop.f32.mrb[0].mxu0
        %3674 = vmatprep.mubr.f32.mxu0 %v3332
        %3675 = vmatmul.mubr.f32.gmra.mrb[0].mxu0 %v3331
        %v3676 = vpop.f32.mrb[0].mxu0
        %v3677 = vadd.f32 %v3532, %v3676
        %v3678 = vpop.f32.mrb[0].mxu0
        %3679 = vmatprep.mubr.f32.mxu0 %v3336
        %3680 = vmatmul.mubr.f32.gmra.mrb[0].mxu0 %v3335
        %v3681 = vpop.f32.mrb[0].mxu0
        %v3682 = vadd.f32 %v3537, %v3681
        %v3683 = vpop.f32.mrb[0].mxu0
        %3684 = vmatprep.mubr.f32.mxu0 %v3340
        %3685 = vmatmul.mubr.f32.gmra.mrb[0].mxu0 %v3339
        %v3686 = vpop.f32.mrb[0].mxu0
        %v3687 = vadd.f32 %v3542, %v3686
        %v3688 = vpop.f32.mrb[0].mxu0
        %3689 = vmatprep.mubr.f32.mxu0 %v3344
        %3690 = vmatmul.mubr.f32.gmra.mrb[0].mxu0 %v3343
        %v3691 = vpop.f32.mrb[0].mxu0
        %v3692 = vadd.f32 %v3547, %v3691
        %v3693 = vpop.f32.mrb[0].mxu0
        %3694 = vmatprep.mubr.f32.mxu0 %v3348
        %3695 = vmatmul.mubr.f32.gmra.mrb[0].mxu0 %v3347
        %v3696 = vpop.f32.mrb[0].mxu0
        %v3697 = vadd.f32 %v3552, %v3696
        %v3698 = vpop.f32.mrb[0].mxu0
        %3699 = vmatprep.mubr.f32.mxu0 %v3352
        %3700 = vmatmul.mubr.f32.gmra.mrb[0].mxu0 %v3351
        %v3701 = vpop.f32.mrb[0].mxu0
        %v3702 = vadd.f32 %v3557, %v3701
        %v3703 = vpop.f32.mrb[0].mxu0
        %3704 = vmatprep.mubr.f32.mxu0 %v3356
        %3705 = vmatmul.mubr.f32.gmra.mrb[0].mxu0 %v3355
        %v3706 = vpop.f32.mrb[0].mxu0
        %v3707 = vadd.f32 %v3562, %v3706
        %v3708 = vpop.f32.mrb[0].mxu0
        %3709 = vmatprep.mubr.f32.mxu0 %v3360
        %3710 = vmatmul.mubr.f32.gmra.mrb[0].mxu0 %v3359
        %v3711 = vpop.f32.mrb[0].mxu0
        %v3712 = vadd.f32 %v3567, %v3711
        %v3713 = vpop.f32.mrb[0].mxu0
        %3714 = vmatprep.mubr.f32.mxu0 %v3364
        %3715 = vmatmul.mubr.f32.gmra.mrb[0].mxu0 %v3363
        %v3716 = vpop.f32.mrb[0].mxu0
        %v3717 = vadd.f32 %v3572, %v3716
        %v3718 = vpop.f32.mrb[0].mxu0
        %3719 = vmatprep.mubr.f32.mxu0 %v3368
        %3720 = vmatmul.mubr.f32.gmra.mrb[0].mxu0 %v3367
        %v3721 = vpop.f32.mrb[0].mxu0
        %v3722 = vadd.f32 %v3577, %v3721
        %v3723 = vpop.f32.mrb[0].mxu0
        %3724 = vmatprep.mubr.f32.mxu0 %v3372
        %3725 = vmatmul.mubr.f32.gmra.mrb[0].mxu0 %v3371
        %v3726 = vpop.f32.mrb[0].mxu0
        %v3727 = vadd.f32 %v3582, %v3726
        %v3728 = vpop.f32.mrb[0].mxu0
        %3729 = vmatprep.mubr.f32.mxu0 %v3376
        %3730 = vmatmul.mubr.f32.gmra.mrb[0].mxu0 %v3375
        %v3731 = vpop.f32.mrb[0].mxu0
        %v3732 = vadd.f32 %v3587, %v3731
        %v3733 = vpop.f32.mrb[0].mxu0
        %3734 = vmatprep.mubr.f32.mxu0 %v3380
        %3735 = vmatmul.mubr.f32.gmra.mrb[0].mxu0 %v3379
        %v3736 = vpop.f32.mrb[0].mxu0
        %v3737 = vadd.f32 %v3592, %v3736
        %v3738 = vpop.f32.mrb[0].mxu0
        %3739 = vmatprep.mubr.f32.mxu0 %v3384
        %3740 = vmatmul.mubr.f32.gmra.mrb[0].mxu0 %v3383
        %v3741 = vpop.f32.mrb[0].mxu0
        %v3742 = vadd.f32 %v3597, %v3741
        %v3743 = vpop.f32.mrb[0].mxu0
        %3744 = vmatprep.mubr.f32.mxu0 %v3388
        %3745 = vmatmul.mubr.f32.gmra.mrb[0].mxu0 %v3387
        %v3746 = vpop.f32.mrb[0].mxu0
        %v3747 = vadd.f32 %v3602, %v3746
        %v3748 = vpop.f32.mrb[0].mxu0
        %3749 = vdwg.mxu0
        %v3750 = vadd.f32 %v3672, %v620
        %v3751 = vadd.f32 %v3677, %v621
        %v3752 = vadd.f32 %v3682, %v622
        %v3753 = vadd.f32 %v3687, %v623
        %v3754 = vadd.f32 %v3692, %v624
        %v3755 = vadd.f32 %v3697, %v625
        %v3756 = vadd.f32 %v3702, %v626
        %v3757 = vadd.f32 %v3707, %v627
        %v3758 = vadd.f32 %v3712, %v628
        %v3759 = vadd.f32 %v3717, %v629
        %v3760 = vadd.f32 %v3722, %v630
        %v3761 = vadd.f32 %v3727, %v631
        %v3762 = vadd.f32 %v3732, %v632
        %v3763 = vadd.f32 %v3737, %v633
        %v3764 = vadd.f32 %v3742, %v634
        %v3765 = vadd.f32 %v3747, %v635
        %3766 = vst [vmem:[%s408] sm:$0xff] %v3750
        %3767 = vst [vmem:[%s408 + $0x8] sm:$0xff] %v3751
        %3768 = vst [vmem:[%s408 + $0x10] sm:$0xff] %v3752
        %3769 = vst [vmem:[%s408 + $0x18] sm:$0xff] %v3753
        %3770 = vst [vmem:[%s408 + $0x20] sm:$0xff] %v3754
        %3771 = vst [vmem:[%s408 + $0x28] sm:$0xff] %v3755
        %3772 = vst [vmem:[%s408 + $0x30] sm:$0xff] %v3756
        %3773 = vst [vmem:[%s408 + $0x38] sm:$0xff] %v3757
        %3774 = vst [vmem:[%s408 + $0x40] sm:$0xff] %v3758
        %3775 = vst [vmem:[%s408 + $0x48] sm:$0xff] %v3759
        %3776 = vst [vmem:[%s408 + $0x50] sm:$0xff] %v3760
        %3777 = vst [vmem:[%s408 + $0x58] sm:$0xff] %v3761
        %3778 = vst [vmem:[%s408 + $0x60] sm:$0xff] %v3762
        %3779 = vst [vmem:[%s408 + $0x68] sm:$0xff] %v3763
        %3780 = vst [vmem:[%s408 + $0x70] sm:$0xff] %v3764
        %3781 = vst [vmem:[%s408 + $0x78] sm:$0xff] %v3765
        %s3782 = sand.u32 %s230, 1
        %s3783 = scalar_lea.sflag [#allocation6], %s3782
        %s3784 = sand.u32 %s230, 1
        %s3785 = smul.addr %s3784, 128
        %s3786 = scalar_lea.vmem [#allocation13], %s3785
        // Predicated region
        $region77: #{tpu_custom_call.1} parent=55 // pred_check
          %p3787 = pneg %p240
        $region78: #{tpu_custom_call.1} parent=55 // pred_check_branch
          %3789 = sbr.rel (%p3787) target = $region80
        $region79: #{tpu_custom_call.1} parent=55 // pred_region
          %s3790 = smul.u32 16, %s28
          %s3792 = ssub.s32 2048, 2048
          %3793 = vsyncadd %s3783, %s3792
          %s3794 = smul.addr %s3790, 128
          %s3795 = scalar_lea.hbm %s9, %s3794
          %s3796 = sshll.u32 %s3786, 4
          %s3797 = int_to_ptr.vmem [resolvable:$true] %s3796
          %3802 = dma.vmem_to_hbm [thread:$0]  %s3797, 2048, %s3795, %s3783, 128, 128, 8
        $region80: #{tpu_custom_call.1} parent=55 // pred_fallthru
          _
      $region56: #{tpu_custom_call.1} parent=5 // pred_fallthru
        _
      %p3803 = scmp.le.s32.totalorder 2, %s23
      // Predicated region
      $region81: #{tpu_custom_call.1} parent=5 // pred_check
        %p3804 = pneg %p3803
      $region82: #{tpu_custom_call.1} parent=5 // pred_check_branch
        %3806 = sbr.rel (%p3804) target = $region84
      $region83: #{tpu_custom_call.1} parent=5 // pred_region
        %s3807 = ssub.s32 %s23, 2
        // Predicated region
        $region85: #{tpu_custom_call.1} parent=83 // pred_check
          %p3808 = pneg %p246
        $region86: #{tpu_custom_call.1} parent=83 // pred_check_branch
          %3810 = sbr.rel (%p3808) target = $region88
        $region87: #{tpu_custom_call.1} parent=83 // pred_region
          %s3811 = sand.u32 %s231, 1
          %s3812 = scalar_lea.sflag [#allocation6], %s3811
          %s3813 = sand.u32 %s231, 1
          %s3814 = smul.addr %s3813, 128
          %s3815 = scalar_lea.vmem [#allocation13], %s3814
          %3816 = dma.done %s3812, 2048
        $region88: #{tpu_custom_call.1} parent=83 // pred_fallthru
          _
      $region84: #{tpu_custom_call.1} parent=5 // pred_fallthru
        _
    $region6: #{tpu_custom_call.1} parent=1 // loop_footer
      %s27 = sadd.s32 1, %s23
    $region7: #{tpu_custom_call.1} parent=1 // loop_footer_branch
      %22 = sbr.rel target = $region3
    $region8: #{tpu_custom_call.1} parent=1 // loop_exit
      _
    %3817 = vsyncpa [#allocation5], 1
    %s3818 = scalar_lea.sflag [#allocation5], 1
    %3819 = vsyncpa %s3818, 1
    %3820 = vsyncpa [#allocation8], 1
    %3821 = vsyncpa [#allocation11], 1
    %3822 = vsyncpa [#allocation6], 1
    %s3823 = scalar_lea.sflag [#allocation6], 1
    %3824 = vsyncpa %s3823, 1

</llo_original>
